<compile_context>
chip_gen: v7x
topology: tpu7x:2x2x1
jax: 0.10.0
libtpu: 0.0.40
codegen_flags: <defaults>
</compile_context>

<pallas_src>
import jax
import jax.numpy as jnp
from jax.experimental import pallas as pl
from jax.experimental.pallas import tpu as pltpu

EMBED = 32          # embed_size
HIDDEN = 64         # hidden_size (default of Discriminator)
KERNEL_DIMS = 64    # MinibatchDiscrimination kernel_dims
NUM_LAYERS = 3

# Gate order used inside the kernel: [i, f, o, g] (sigmoid gates contiguous,
# tanh gate last).  Source PyTorch order is [i, f, g, o].
_GATE_PERM = (0, 1, 3, 2)


# --------------------------------------------------------------------------
# Fused kernel: 3-layer LSTM (wavefront) -> c_n[-1] -> MinibatchDiscrimination
#               -> Linear(2H, 1) -> Sigmoid.
# --------------------------------------------------------------------------
def _disc_kernel(x_ref, w_ref, misc_ref, t_hbm, out_ref, t_vmem, t_sem):
    """Shapes:
         x_ref   : (S*B, E)     bf16 timestep-major flat input (row = t*B + b)
         w_ref   : (3H+E, 12H)  bf16 weight slab:
                     rows 0:3H    block-diag wavefront matrix
                                  [h0|h1|h2] @ W -> [z_l0 | z_l1 | z_l2]
                     rows 3H:3H+E layer-0 input weights Wx0 (cols 0:4H)
                   per-layer gate column order is [i, f, o, g]
         misc_ref: (2, 12H)     f32: row0 = fused biases (b_ih+b_hh) per layer
                                     row1 = [w_dec (2H) | b_dec (1) | 0 ...]
         t_hbm   : (H, K*H)     bf16 MBD tensor, k-major flat, left in HBM
         out_ref : (B, 1)       f32
         t_vmem  : VMEM scratch (H, K*H) bf16
         t_sem   : DMA semaphore
    """
    B = out_ref.shape[0]
    SB, E = x_ref.shape
    S = SB // B
    H = t_vmem.shape[0]
    KH = t_vmem.shape[1]
    L = NUM_LAYERS
    G4 = 4 * H

    # Kick off the MBD tensor copy immediately; it is only needed after the
    # whole recurrence, so the 0.5 MiB transfer hides behind the LSTM.
    t_copy = pltpu.make_async_copy(t_hbm, t_vmem, t_sem)
    t_copy.start()

    # Hoisted layer-0 input-path matmul for the whole sequence (off the
    # serial chain): (S*B, E) @ (E, 4H), f32 accumulation.
    xw0 = jnp.dot(x_ref[...], w_ref[L * H:L * H + E, 0:G4],
                  preferred_element_type=jnp.float32)            # (S*B, 4H)

    h = [jnp.zeros((B, H), jnp.float32) for _ in range(L)]
    c = [jnp.zeros((B, H), jnp.float32) for _ in range(L)]

    # Layer-wavefront recurrence: at wavefront w, layer l processes timestep
    # t = w - l.  Layer l's input at that timestep is exactly layer (l-1)'s
    # hidden state produced at wavefront w-1, so a single fused matmul using
    # the current [h0|h1|h2] gives all three layers' pre-activations.
    for w in range(S + L - 1):
        hcat = jnp.concatenate(h, axis=1).astype(jnp.bfloat16)   # (B, 3H)
        z = (jnp.dot(hcat, w_ref[0:L * H, :],
                     preferred_element_type=jnp.float32)
             + misc_ref[0:1, :])                                  # (B, 12H)
        for l in range(L):
            t = w - l
            if not (0 <= t < S):
                continue                       # layer idle at this wavefront
            zl = z[:, l * G4:(l + 1) * G4]                        # (B, 4H)
            if l == 0:
                zl = zl + xw0[t * B:(t + 1) * B, :]
            sg = jax.nn.sigmoid(zl[:, 0:3 * H])                   # [i | f | o]
            g = jnp.tanh(zl[:, 3 * H:G4])
            i_g = sg[:, 0:H]
            f_g = sg[:, H:2 * H]
            o_g = sg[:, 2 * H:3 * H]
            c[l] = f_g * c[l] + i_g * g
            h[l] = o_g * jnp.tanh(c[l])

    feat = c[L - 1]                            # c_n of the last layer, (B, H)

    # ---- MinibatchDiscrimination --------------------------------------
    t_copy.wait()                              # T is in VMEM by now
    # M (k-major flat): m[b, k*H + o] = sum_h feat[b,h] * T[h,o,k]
    m = jnp.dot(feat.astype(jnp.bfloat16), t_vmem[...],
                preferred_element_type=jnp.float32)               # (B, K*H)

    exp_sum = jnp.zeros((B, H), jnp.float32)
    for i in range(B):
        diff = jnp.abs(m - m[i:i + 1, :])      # (B, K*H): |M[j]-M[i]|
        # Sum over kernel_dims via log2(K) lane folds (k-major layout keeps
        # every fold aligned on H-sized column groups).
        width = KH
        while width > H:
            half = width // 2
            diff = diff[:, :half] + diff[:, half:width]
            width = half
        exp_sum = exp_sum + jnp.exp(-diff)     # diff: (B, H) L1 dists to i
    o_b = exp_sum - 1.0                        # removes the self term

    # ---- decider Linear(2H, 1) + Sigmoid (VPU multiply + lane reduce) ----
    w1 = misc_ref[1:2, 0:H]                    # (1, H) multiplies feat
    w2 = misc_ref[1:2, H:2 * H]                # (1, H) multiplies o_b
    bdec = misc_ref[1:2, 2 * H:2 * H + 1]      # (1, 1) decider bias
    logits = (jnp.sum(feat * w1, axis=-1, keepdims=True)
              + jnp.sum(o_b * w2, axis=-1, keepdims=True)
              + bdec)
    out_ref[...] = jax.nn.sigmoid(logits)


# --------------------------------------------------------------------------
# Parameter init / packing and the pallas_call wrapper.
# --------------------------------------------------------------------------
def init_params(key, embed=EMBED, hidden=HIDDEN, kdims=KERNEL_DIMS):
    keys = jax.random.split(key, 16)
    params = {}
    k = 1.0 / jnp.sqrt(jnp.float32(hidden))
    idx = 0
    for l in range(NUM_LAYERS):
        in_dim = embed if l == 0 else hidden
        w_ih = jax.random.uniform(keys[idx], (4 * hidden, in_dim), jnp.float32, -k, k); idx += 1
        w_hh = jax.random.uniform(keys[idx], (4 * hidden, hidden), jnp.float32, -k, k); idx += 1
        b_ih = jax.random.uniform(keys[idx], (4 * hidden,), jnp.float32, -k, k); idx += 1
        b_hh = jax.random.uniform(keys[idx], (4 * hidden,), jnp.float32, -k, k); idx += 1
        params[f"l{l}"] = (w_ih, w_hh, b_ih, b_hh)
    # MinibatchDiscrimination T ~ N(0, 1), shape (in, out, kernel_dims)
    params["T"] = jax.random.normal(keys[idx], (hidden, hidden, kdims), jnp.float32); idx += 1
    kd = 1.0 / jnp.sqrt(jnp.float32(2 * hidden))
    params["w_dec"] = jax.random.uniform(keys[idx], (1, 2 * hidden), jnp.float32, -kd, kd); idx += 1
    params["b_dec"] = jax.random.uniform(keys[idx], (1,), jnp.float32, -kd, kd)
    return params


def _reorder_gates(w, hidden):
    """Gate column blocks [i,f,g,o] -> [i,f,o,g]; w is (..., 4H)."""
    return jnp.concatenate(
        [w[..., s * hidden:(s + 1) * hidden] for s in _GATE_PERM], axis=-1)


def _pack_weights(params, embed, hidden):
    """Pack all LSTM weights into one bf16 slab + one small f32 slab."""
    H, L = hidden, NUM_LAYERS
    G4 = 4 * H
    w_slab = jnp.zeros((L * H + embed, L * G4), jnp.float32)
    b_all = jnp.zeros((1, L * G4), jnp.float32)
    for l in range(L):
        w_ih, w_hh, b_ih, b_hh = params[f"l{l}"]
        wx = _reorder_gates(w_ih.T, H)                    # (in_l, 4H)
        wh = _reorder_gates(w_hh.T, H)                    # (H, 4H)
        b = _reorder_gates((b_ih + b_hh)[None, :], H)     # (1, 4H)
        cs = l * G4
        # Hidden-path weights on the block diagonal (rows = h_l block).
        w_slab = w_slab.at[l * H:(l + 1) * H, cs:cs + G4].set(wh)
        if l == 0:
            # Layer-0 input weights live in the extra E rows; they are used
            # only by the hoisted sequence matmul, not the wavefront matmul.
            w_slab = w_slab.at[L * H:L * H + embed, 0:G4].set(wx)
        else:
            # Layer-l input is layer-(l-1)'s hidden state -> its input
            # weights sit in the h_{l-1} row block, in layer-l's columns.
            w_slab = w_slab.at[(l - 1) * H:l * H, cs:cs + G4].set(wx)
        b_all = b_all.at[:, cs:cs + G4].set(b)
    misc = jnp.zeros((2, L * G4), jnp.float32)
    misc = misc.at[0, :].set(b_all[0])
    misc = misc.at[1, 0:2 * H].set(params["w_dec"][0])
    misc = misc.at[1, 2 * H].set(params["b_dec"][0])
    return w_slab.astype(jnp.bfloat16), misc


@jax.jit
def discriminator_forward(x, params):
    B, S, E = x.shape
    H, K = HIDDEN, KERNEL_DIMS
    assert (K & (K - 1)) == 0, "kernel_dims must be a power of two for the lane fold"

    w_slab, misc = _pack_weights(params, E, H)
    # Timestep-major flat input (row = t*B + b); bf16 — default MXU precision
    # truncates to bf16 anyway, this just halves DMA bytes.
    x2d = jnp.transpose(x, (1, 0, 2)).reshape(S * B, E).astype(jnp.bfloat16)
    # k-major flattening of T (column = k*H + o), bf16, left in HBM and
    # DMA'd manually inside the kernel so the transfer overlaps the LSTM.
    t_km = jnp.transpose(params["T"], (0, 2, 1)).reshape(H, K * H).astype(jnp.bfloat16)

    vm = pl.BlockSpec(memory_space=pltpu.MemorySpace.VMEM)
    any_spec = pl.BlockSpec(memory_space=pl.ANY)

    out = pl.pallas_call(
        _disc_kernel,
        out_shape=jax.ShapeDtypeStruct((B, 1), jnp.float32),
        in_specs=[vm, vm, vm, any_spec],
        out_specs=vm,
        scratch_shapes=[
            pltpu.VMEM((H, K * H), jnp.bfloat16),   # T landing buffer
            pltpu.SemaphoreType.DMA(()),
        ],
    )(x2d, w_slab, misc, t_km)
    return out


# --------------------------------------------------------------------------
# Pure-JAX reference (mirrors the PyTorch forward) for a sanity check.
# Runs at default matmul precision, same effective bf16 operand path as the
# kernel (f32 accumulation).
# --------------------------------------------------------------------------
def reference_forward(x, params):
    B, S, _ = x.shape
    H = HIDDEN
    inp = [x[:, t, :] for t in range(S)]
    c_last = None
    for l in range(NUM_LAYERS):
        w_ih, w_hh, b_ih, b_hh = params[f"l{l}"]
        h = jnp.zeros((B, H), jnp.float32)
        c = jnp.zeros((B, H), jnp.float32)
        outs = []
        for t in range(S):
            gates = inp[t] @ w_ih.T + h @ w_hh.T + b_ih + b_hh
            i = jax.nn.sigmoid(gates[:, :H])
            f = jax.nn.sigmoid(gates[:, H:2 * H])
            g = jnp.tanh(gates[:, 2 * H:3 * H])
            o = jax.nn.sigmoid(gates[:, 3 * H:])
            c = f * c + i * g
            h = o * jnp.tanh(c)
            outs.append(h)
        inp = outs
        c_last = c
    feat = c_last
    M = (feat @ params["T"].reshape(H, -1)).reshape(B, H, KERNEL_DIMS)
    norm = jnp.abs(M[:, None] - M[None, :]).sum(-1)
    o_b = jnp.exp(-norm).sum(0) - 1.0
    feat2 = jnp.concatenate([feat, o_b], axis=1)
    return jax.nn.sigmoid(feat2 @ params["w_dec"].T + params["b_dec"])


if __name__ == "__main__":
    key = jax.random.PRNGKey(0)
    pkey, xkey = jax.random.split(key)
    params = init_params(pkey)

    batch, seq = 2, 8
    x = jax.random.normal(xkey, (batch, seq, EMBED), jnp.float32)

    out = discriminator_forward(x, params)
    out = jax.block_until_ready(out)

    assert out.shape == (batch, 1), out.shape
    ref = reference_forward(x, params)
    # Both kernel and reference use bf16-operand / f32-accumulate matmuls;
    # tolerance covers accumulation-order / rounding-path deltas.
    if not jnp.allclose(out, ref, atol=1e-2, rtol=1e-2):
        raise AssertionError(f"mismatch vs reference: {out} vs {ref}")
    print("KERNEL_OK")
</pallas_src>

<mosaic_0001>
module attributes {stable_mosaic.version = 11 : i64} {
  func.func @_disc_kernel(%arg0: memref<16x32xbf16, #tpu.memory_space<vmem>>, %arg1: memref<224x768xbf16, #tpu.memory_space<vmem>>, %arg2: memref<2x768xf32, #tpu.memory_space<vmem>>, %arg3: memref<64x4096xbf16, #tpu.memory_space<any>>, %arg4: memref<2x1xf32, #tpu.memory_space<vmem>>, %arg5: memref<64x4096xbf16, #tpu.memory_space<vmem>>, %arg6: memref<!tpu.dma_semaphore, #tpu.memory_space<semaphore_mem>>) attributes {dimension_semantics = [], scalar_prefetch = 0 : i64, scratch_operands = 2 : i64, tpu.core_type = #tpu.core_type<tc>} {
    tpu.enqueue_dma source(%arg3 : memref<64x4096xbf16, #tpu.memory_space<any>>) target(%arg5 : memref<64x4096xbf16, #tpu.memory_space<vmem>>) target_semaphore(%arg6 : memref<!tpu.dma_semaphore, #tpu.memory_space<semaphore_mem>>)
    %c0 = arith.constant 0 : index
    %c0_0 = arith.constant 0 : index
    %0 = vector.load %arg0[%c0, %c0_0] : memref<16x32xbf16, #tpu.memory_space<vmem>>, vector<16x32xbf16>
    %c192 = arith.constant 192 : index
    %c0_1 = arith.constant 0 : index
    %1 = vector.load %arg1[%c192, %c0_1] : memref<224x768xbf16, #tpu.memory_space<vmem>>, vector<32x256xbf16>
    %cst = arith.constant dense<0.000000e+00> : vector<16x256xf32>
    %2 = tpu.matmul %0, %1, %cst {dimension_numbers = #tpu.dot_dimension_numbers<[1], [0], [0], [1], [0, 0, 1, 1], [], []>} : vector<16x32xbf16>, vector<32x256xbf16>, vector<16x256xf32> -> vector<16x256xf32>
    %cst_2 = arith.constant 0.000000e+00 : f32
    %3 = vector.broadcast %cst_2 : f32 to vector<2x64xf32>
    %cst_3 = arith.constant 0.000000e+00 : f32
    %4 = vector.broadcast %cst_3 : f32 to vector<2x64xf32>
    %cst_4 = arith.constant 0.000000e+00 : f32
    %5 = vector.broadcast %cst_4 : f32 to vector<2x64xf32>
    %cst_5 = arith.constant 0.000000e+00 : f32
    %6 = vector.broadcast %cst_5 : f32 to vector<2x64xf32>
    %cst_6 = arith.constant 0.000000e+00 : f32
    %7 = vector.broadcast %cst_6 : f32 to vector<2x64xf32>
    %cst_7 = arith.constant 0.000000e+00 : f32
    %8 = vector.broadcast %cst_7 : f32 to vector<2x64xf32>
    %9 = tpu.concatenate %3, %4, %5 in 1 : vector<2x64xf32>, vector<2x64xf32>, vector<2x64xf32> -> vector<2x192xf32>
    %10 = arith.truncf %9 : vector<2x192xf32> to vector<2x192xbf16>
    %c0_8 = arith.constant 0 : index
    %c0_9 = arith.constant 0 : index
    %11 = vector.load %arg1[%c0_8, %c0_9] : memref<224x768xbf16, #tpu.memory_space<vmem>>, vector<192x768xbf16>
    %cst_10 = arith.constant dense<0.000000e+00> : vector<2x768xf32>
    %12 = tpu.matmul %10, %11, %cst_10 {dimension_numbers = #tpu.dot_dimension_numbers<[1], [0], [0], [1], [0, 0, 1, 1], [], []>} : vector<2x192xbf16>, vector<192x768xbf16>, vector<2x768xf32> -> vector<2x768xf32>
    %c0_11 = arith.constant 0 : index
    %c0_12 = arith.constant 0 : index
    %13 = vector.load %arg2[%c0_11, %c0_12] : memref<2x768xf32, #tpu.memory_space<vmem>>, vector<1x768xf32>
    %14 = vector.broadcast %13 : vector<1x768xf32> to vector<2x768xf32>
    %15 = arith.addf %12, %14 : vector<2x768xf32>
    %16 = vector.extract_strided_slice %15 {offsets = [0, 0], sizes = [2, 256], strides = [1, 1]} : vector<2x768xf32> to vector<2x256xf32>
    %17 = vector.extract_strided_slice %2 {offsets = [0, 0], sizes = [2, 256], strides = [1, 1]} : vector<16x256xf32> to vector<2x256xf32>
    %18 = arith.addf %16, %17 : vector<2x256xf32>
    %19 = vector.extract_strided_slice %18 {offsets = [0, 0], sizes = [2, 192], strides = [1, 1]} : vector<2x256xf32> to vector<2x192xf32>
    %20 = arith.negf %19 : vector<2x192xf32>
    %21 = math.exp %20 : vector<2x192xf32>
    %cst_13 = arith.constant 1.000000e+00 : f32
    %22 = vector.broadcast %cst_13 : f32 to vector<2x192xf32>
    %23 = arith.addf %22, %21 : vector<2x192xf32>
    %24 = arith.divf %22, %23 : vector<2x192xf32>
    %25 = vector.extract_strided_slice %18 {offsets = [0, 192], sizes = [2, 64], strides = [1, 1]} : vector<2x256xf32> to vector<2x64xf32>
    %26 = math.tanh %25 : vector<2x64xf32>
    %27 = vector.extract_strided_slice %24 {offsets = [0, 0], sizes = [2, 64], strides = [1, 1]} : vector<2x192xf32> to vector<2x64xf32>
    %28 = vector.extract_strided_slice %24 {offsets = [0, 64], sizes = [2, 64], strides = [1, 1]} : vector<2x192xf32> to vector<2x64xf32>
    %29 = vector.extract_strided_slice %24 {offsets = [0, 128], sizes = [2, 64], strides = [1, 1]} : vector<2x192xf32> to vector<2x64xf32>
    %30 = arith.mulf %28, %6 : vector<2x64xf32>
    %31 = arith.mulf %27, %26 : vector<2x64xf32>
    %32 = arith.addf %30, %31 : vector<2x64xf32>
    %33 = math.tanh %32 : vector<2x64xf32>
    %34 = arith.mulf %29, %33 : vector<2x64xf32>
    %35 = tpu.concatenate %34, %4, %5 in 1 : vector<2x64xf32>, vector<2x64xf32>, vector<2x64xf32> -> vector<2x192xf32>
    %36 = arith.truncf %35 : vector<2x192xf32> to vector<2x192xbf16>
    %c0_14 = arith.constant 0 : index
    %c0_15 = arith.constant 0 : index
    %37 = vector.load %arg1[%c0_14, %c0_15] : memref<224x768xbf16, #tpu.memory_space<vmem>>, vector<192x768xbf16>
    %cst_16 = arith.constant dense<0.000000e+00> : vector<2x768xf32>
    %38 = tpu.matmul %36, %37, %cst_16 {dimension_numbers = #tpu.dot_dimension_numbers<[1], [0], [0], [1], [0, 0, 1, 1], [], []>} : vector<2x192xbf16>, vector<192x768xbf16>, vector<2x768xf32> -> vector<2x768xf32>
    %c0_17 = arith.constant 0 : index
    %c0_18 = arith.constant 0 : index
    %39 = vector.load %arg2[%c0_17, %c0_18] : memref<2x768xf32, #tpu.memory_space<vmem>>, vector<1x768xf32>
    %40 = vector.broadcast %39 : vector<1x768xf32> to vector<2x768xf32>
    %41 = arith.addf %38, %40 : vector<2x768xf32>
    %42 = vector.extract_strided_slice %41 {offsets = [0, 0], sizes = [2, 256], strides = [1, 1]} : vector<2x768xf32> to vector<2x256xf32>
    %43 = vector.extract_strided_slice %2 {offsets = [2, 0], sizes = [2, 256], strides = [1, 1]} : vector<16x256xf32> to vector<2x256xf32>
    %44 = arith.addf %42, %43 : vector<2x256xf32>
    %45 = vector.extract_strided_slice %44 {offsets = [0, 0], sizes = [2, 192], strides = [1, 1]} : vector<2x256xf32> to vector<2x192xf32>
    %46 = arith.negf %45 : vector<2x192xf32>
    %47 = math.exp %46 : vector<2x192xf32>
    %cst_19 = arith.constant 1.000000e+00 : f32
    %48 = vector.broadcast %cst_19 : f32 to vector<2x192xf32>
    %49 = arith.addf %48, %47 : vector<2x192xf32>
    %50 = arith.divf %48, %49 : vector<2x192xf32>
    %51 = vector.extract_strided_slice %44 {offsets = [0, 192], sizes = [2, 64], strides = [1, 1]} : vector<2x256xf32> to vector<2x64xf32>
    %52 = math.tanh %51 : vector<2x64xf32>
    %53 = vector.extract_strided_slice %50 {offsets = [0, 0], sizes = [2, 64], strides = [1, 1]} : vector<2x192xf32> to vector<2x64xf32>
    %54 = vector.extract_strided_slice %50 {offsets = [0, 64], sizes = [2, 64], strides = [1, 1]} : vector<2x192xf32> to vector<2x64xf32>
    %55 = vector.extract_strided_slice %50 {offsets = [0, 128], sizes = [2, 64], strides = [1, 1]} : vector<2x192xf32> to vector<2x64xf32>
    %56 = arith.mulf %54, %32 : vector<2x64xf32>
    %57 = arith.mulf %53, %52 : vector<2x64xf32>
    %58 = arith.addf %56, %57 : vector<2x64xf32>
    %59 = math.tanh %58 : vector<2x64xf32>
    %60 = arith.mulf %55, %59 : vector<2x64xf32>
    %61 = vector.extract_strided_slice %41 {offsets = [0, 256], sizes = [2, 256], strides = [1, 1]} : vector<2x768xf32> to vector<2x256xf32>
    %62 = vector.extract_strided_slice %61 {offsets = [0, 0], sizes = [2, 192], strides = [1, 1]} : vector<2x256xf32> to vector<2x192xf32>
    %63 = arith.negf %62 : vector<2x192xf32>
    %64 = math.exp %63 : vector<2x192xf32>
    %cst_20 = arith.constant 1.000000e+00 : f32
    %65 = vector.broadcast %cst_20 : f32 to vector<2x192xf32>
    %66 = arith.addf %65, %64 : vector<2x192xf32>
    %67 = arith.divf %65, %66 : vector<2x192xf32>
    %68 = vector.extract_strided_slice %61 {offsets = [0, 192], sizes = [2, 64], strides = [1, 1]} : vector<2x256xf32> to vector<2x64xf32>
    %69 = math.tanh %68 : vector<2x64xf32>
    %70 = vector.extract_strided_slice %67 {offsets = [0, 0], sizes = [2, 64], strides = [1, 1]} : vector<2x192xf32> to vector<2x64xf32>
    %71 = vector.extract_strided_slice %67 {offsets = [0, 64], sizes = [2, 64], strides = [1, 1]} : vector<2x192xf32> to vector<2x64xf32>
    %72 = vector.extract_strided_slice %67 {offsets = [0, 128], sizes = [2, 64], strides = [1, 1]} : vector<2x192xf32> to vector<2x64xf32>
    %73 = arith.mulf %71, %7 : vector<2x64xf32>
    %74 = arith.mulf %70, %69 : vector<2x64xf32>
    %75 = arith.addf %73, %74 : vector<2x64xf32>
    %76 = math.tanh %75 : vector<2x64xf32>
    %77 = arith.mulf %72, %76 : vector<2x64xf32>
    %78 = tpu.concatenate %60, %77, %5 in 1 : vector<2x64xf32>, vector<2x64xf32>, vector<2x64xf32> -> vector<2x192xf32>
    %79 = arith.truncf %78 : vector<2x192xf32> to vector<2x192xbf16>
    %c0_21 = arith.constant 0 : index
    %c0_22 = arith.constant 0 : index
    %80 = vector.load %arg1[%c0_21, %c0_22] : memref<224x768xbf16, #tpu.memory_space<vmem>>, vector<192x768xbf16>
    %cst_23 = arith.constant dense<0.000000e+00> : vector<2x768xf32>
    %81 = tpu.matmul %79, %80, %cst_23 {dimension_numbers = #tpu.dot_dimension_numbers<[1], [0], [0], [1], [0, 0, 1, 1], [], []>} : vector<2x192xbf16>, vector<192x768xbf16>, vector<2x768xf32> -> vector<2x768xf32>
    %c0_24 = arith.constant 0 : index
    %c0_25 = arith.constant 0 : index
    %82 = vector.load %arg2[%c0_24, %c0_25] : memref<2x768xf32, #tpu.memory_space<vmem>>, vector<1x768xf32>
    %83 = vector.broadcast %82 : vector<1x768xf32> to vector<2x768xf32>
    %84 = arith.addf %81, %83 : vector<2x768xf32>
    %85 = vector.extract_strided_slice %84 {offsets = [0, 0], sizes = [2, 256], strides = [1, 1]} : vector<2x768xf32> to vector<2x256xf32>
    %86 = vector.extract_strided_slice %2 {offsets = [4, 0], sizes = [2, 256], strides = [1, 1]} : vector<16x256xf32> to vector<2x256xf32>
    %87 = arith.addf %85, %86 : vector<2x256xf32>
    %88 = vector.extract_strided_slice %87 {offsets = [0, 0], sizes = [2, 192], strides = [1, 1]} : vector<2x256xf32> to vector<2x192xf32>
    %89 = arith.negf %88 : vector<2x192xf32>
    %90 = math.exp %89 : vector<2x192xf32>
    %cst_26 = arith.constant 1.000000e+00 : f32
    %91 = vector.broadcast %cst_26 : f32 to vector<2x192xf32>
    %92 = arith.addf %91, %90 : vector<2x192xf32>
    %93 = arith.divf %91, %92 : vector<2x192xf32>
    %94 = vector.extract_strided_slice %87 {offsets = [0, 192], sizes = [2, 64], strides = [1, 1]} : vector<2x256xf32> to vector<2x64xf32>
    %95 = math.tanh %94 : vector<2x64xf32>
    %96 = vector.extract_strided_slice %93 {offsets = [0, 0], sizes = [2, 64], strides = [1, 1]} : vector<2x192xf32> to vector<2x64xf32>
    %97 = vector.extract_strided_slice %93 {offsets = [0, 64], sizes = [2, 64], strides = [1, 1]} : vector<2x192xf32> to vector<2x64xf32>
    %98 = vector.extract_strided_slice %93 {offsets = [0, 128], sizes = [2, 64], strides = [1, 1]} : vector<2x192xf32> to vector<2x64xf32>
    %99 = arith.mulf %97, %58 : vector<2x64xf32>
    %100 = arith.mulf %96, %95 : vector<2x64xf32>
    %101 = arith.addf %99, %100 : vector<2x64xf32>
    %102 = math.tanh %101 : vector<2x64xf32>
    %103 = arith.mulf %98, %102 : vector<2x64xf32>
    %104 = vector.extract_strided_slice %84 {offsets = [0, 256], sizes = [2, 256], strides = [1, 1]} : vector<2x768xf32> to vector<2x256xf32>
    %105 = vector.extract_strided_slice %104 {offsets = [0, 0], sizes = [2, 192], strides = [1, 1]} : vector<2x256xf32> to vector<2x192xf32>
    %106 = arith.negf %105 : vector<2x192xf32>
    %107 = math.exp %106 : vector<2x192xf32>
    %cst_27 = arith.constant 1.000000e+00 : f32
    %108 = vector.broadcast %cst_27 : f32 to vector<2x192xf32>
    %109 = arith.addf %108, %107 : vector<2x192xf32>
    %110 = arith.divf %108, %109 : vector<2x192xf32>
    %111 = vector.extract_strided_slice %104 {offsets = [0, 192], sizes = [2, 64], strides = [1, 1]} : vector<2x256xf32> to vector<2x64xf32>
    %112 = math.tanh %111 : vector<2x64xf32>
    %113 = vector.extract_strided_slice %110 {offsets = [0, 0], sizes = [2, 64], strides = [1, 1]} : vector<2x192xf32> to vector<2x64xf32>
    %114 = vector.extract_strided_slice %110 {offsets = [0, 64], sizes = [2, 64], strides = [1, 1]} : vector<2x192xf32> to vector<2x64xf32>
    %115 = vector.extract_strided_slice %110 {offsets = [0, 128], sizes = [2, 64], strides = [1, 1]} : vector<2x192xf32> to vector<2x64xf32>
    %116 = arith.mulf %114, %75 : vector<2x64xf32>
    %117 = arith.mulf %113, %112 : vector<2x64xf32>
    %118 = arith.addf %116, %117 : vector<2x64xf32>
    %119 = math.tanh %118 : vector<2x64xf32>
    %120 = arith.mulf %115, %119 : vector<2x64xf32>
    %121 = vector.extract_strided_slice %84 {offsets = [0, 512], sizes = [2, 256], strides = [1, 1]} : vector<2x768xf32> to vector<2x256xf32>
    %122 = vector.extract_strided_slice %121 {offsets = [0, 0], sizes = [2, 192], strides = [1, 1]} : vector<2x256xf32> to vector<2x192xf32>
    %123 = arith.negf %122 : vector<2x192xf32>
    %124 = math.exp %123 : vector<2x192xf32>
    %cst_28 = arith.constant 1.000000e+00 : f32
    %125 = vector.broadcast %cst_28 : f32 to vector<2x192xf32>
    %126 = arith.addf %125, %124 : vector<2x192xf32>
    %127 = arith.divf %125, %126 : vector<2x192xf32>
    %128 = vector.extract_strided_slice %121 {offsets = [0, 192], sizes = [2, 64], strides = [1, 1]} : vector<2x256xf32> to vector<2x64xf32>
    %129 = math.tanh %128 : vector<2x64xf32>
    %130 = vector.extract_strided_slice %127 {offsets = [0, 0], sizes = [2, 64], strides = [1, 1]} : vector<2x192xf32> to vector<2x64xf32>
    %131 = vector.extract_strided_slice %127 {offsets = [0, 64], sizes = [2, 64], strides = [1, 1]} : vector<2x192xf32> to vector<2x64xf32>
    %132 = vector.extract_strided_slice %127 {offsets = [0, 128], sizes = [2, 64], strides = [1, 1]} : vector<2x192xf32> to vector<2x64xf32>
    %133 = arith.mulf %131, %8 : vector<2x64xf32>
    %134 = arith.mulf %130, %129 : vector<2x64xf32>
    %135 = arith.addf %133, %134 : vector<2x64xf32>
    %136 = math.tanh %135 : vector<2x64xf32>
    %137 = arith.mulf %132, %136 : vector<2x64xf32>
    %138 = tpu.concatenate %103, %120, %137 in 1 : vector<2x64xf32>, vector<2x64xf32>, vector<2x64xf32> -> vector<2x192xf32>
    %139 = arith.truncf %138 : vector<2x192xf32> to vector<2x192xbf16>
    %c0_29 = arith.constant 0 : index
    %c0_30 = arith.constant 0 : index
    %140 = vector.load %arg1[%c0_29, %c0_30] : memref<224x768xbf16, #tpu.memory_space<vmem>>, vector<192x768xbf16>
    %cst_31 = arith.constant dense<0.000000e+00> : vector<2x768xf32>
    %141 = tpu.matmul %139, %140, %cst_31 {dimension_numbers = #tpu.dot_dimension_numbers<[1], [0], [0], [1], [0, 0, 1, 1], [], []>} : vector<2x192xbf16>, vector<192x768xbf16>, vector<2x768xf32> -> vector<2x768xf32>
    %c0_32 = arith.constant 0 : index
    %c0_33 = arith.constant 0 : index
    %142 = vector.load %arg2[%c0_32, %c0_33] : memref<2x768xf32, #tpu.memory_space<vmem>>, vector<1x768xf32>
    %143 = vector.broadcast %142 : vector<1x768xf32> to vector<2x768xf32>
    %144 = arith.addf %141, %143 : vector<2x768xf32>
    %145 = vector.extract_strided_slice %144 {offsets = [0, 0], sizes = [2, 256], strides = [1, 1]} : vector<2x768xf32> to vector<2x256xf32>
    %146 = vector.extract_strided_slice %2 {offsets = [6, 0], sizes = [2, 256], strides = [1, 1]} : vector<16x256xf32> to vector<2x256xf32>
    %147 = arith.addf %145, %146 : vector<2x256xf32>
    %148 = vector.extract_strided_slice %147 {offsets = [0, 0], sizes = [2, 192], strides = [1, 1]} : vector<2x256xf32> to vector<2x192xf32>
    %149 = arith.negf %148 : vector<2x192xf32>
    %150 = math.exp %149 : vector<2x192xf32>
    %cst_34 = arith.constant 1.000000e+00 : f32
    %151 = vector.broadcast %cst_34 : f32 to vector<2x192xf32>
    %152 = arith.addf %151, %150 : vector<2x192xf32>
    %153 = arith.divf %151, %152 : vector<2x192xf32>
    %154 = vector.extract_strided_slice %147 {offsets = [0, 192], sizes = [2, 64], strides = [1, 1]} : vector<2x256xf32> to vector<2x64xf32>
    %155 = math.tanh %154 : vector<2x64xf32>
    %156 = vector.extract_strided_slice %153 {offsets = [0, 0], sizes = [2, 64], strides = [1, 1]} : vector<2x192xf32> to vector<2x64xf32>
    %157 = vector.extract_strided_slice %153 {offsets = [0, 64], sizes = [2, 64], strides = [1, 1]} : vector<2x192xf32> to vector<2x64xf32>
    %158 = vector.extract_strided_slice %153 {offsets = [0, 128], sizes = [2, 64], strides = [1, 1]} : vector<2x192xf32> to vector<2x64xf32>
    %159 = arith.mulf %157, %101 : vector<2x64xf32>
    %160 = arith.mulf %156, %155 : vector<2x64xf32>
    %161 = arith.addf %159, %160 : vector<2x64xf32>
    %162 = math.tanh %161 : vector<2x64xf32>
    %163 = arith.mulf %158, %162 : vector<2x64xf32>
    %164 = vector.extract_strided_slice %144 {offsets = [0, 256], sizes = [2, 256], strides = [1, 1]} : vector<2x768xf32> to vector<2x256xf32>
    %165 = vector.extract_strided_slice %164 {offsets = [0, 0], sizes = [2, 192], strides = [1, 1]} : vector<2x256xf32> to vector<2x192xf32>
    %166 = arith.negf %165 : vector<2x192xf32>
    %167 = math.exp %166 : vector<2x192xf32>
    %cst_35 = arith.constant 1.000000e+00 : f32
    %168 = vector.broadcast %cst_35 : f32 to vector<2x192xf32>
    %169 = arith.addf %168, %167 : vector<2x192xf32>
    %170 = arith.divf %168, %169 : vector<2x192xf32>
    %171 = vector.extract_strided_slice %164 {offsets = [0, 192], sizes = [2, 64], strides = [1, 1]} : vector<2x256xf32> to vector<2x64xf32>
    %172 = math.tanh %171 : vector<2x64xf32>
    %173 = vector.extract_strided_slice %170 {offsets = [0, 0], sizes = [2, 64], strides = [1, 1]} : vector<2x192xf32> to vector<2x64xf32>
    %174 = vector.extract_strided_slice %170 {offsets = [0, 64], sizes = [2, 64], strides = [1, 1]} : vector<2x192xf32> to vector<2x64xf32>
    %175 = vector.extract_strided_slice %170 {offsets = [0, 128], sizes = [2, 64], strides = [1, 1]} : vector<2x192xf32> to vector<2x64xf32>
    %176 = arith.mulf %174, %118 : vector<2x64xf32>
    %177 = arith.mulf %173, %172 : vector<2x64xf32>
    %178 = arith.addf %176, %177 : vector<2x64xf32>
    %179 = math.tanh %178 : vector<2x64xf32>
    %180 = arith.mulf %175, %179 : vector<2x64xf32>
    %181 = vector.extract_strided_slice %144 {offsets = [0, 512], sizes = [2, 256], strides = [1, 1]} : vector<2x768xf32> to vector<2x256xf32>
    %182 = vector.extract_strided_slice %181 {offsets = [0, 0], sizes = [2, 192], strides = [1, 1]} : vector<2x256xf32> to vector<2x192xf32>
    %183 = arith.negf %182 : vector<2x192xf32>
    %184 = math.exp %183 : vector<2x192xf32>
    %cst_36 = arith.constant 1.000000e+00 : f32
    %185 = vector.broadcast %cst_36 : f32 to vector<2x192xf32>
    %186 = arith.addf %185, %184 : vector<2x192xf32>
    %187 = arith.divf %185, %186 : vector<2x192xf32>
    %188 = vector.extract_strided_slice %181 {offsets = [0, 192], sizes = [2, 64], strides = [1, 1]} : vector<2x256xf32> to vector<2x64xf32>
    %189 = math.tanh %188 : vector<2x64xf32>
    %190 = vector.extract_strided_slice %187 {offsets = [0, 0], sizes = [2, 64], strides = [1, 1]} : vector<2x192xf32> to vector<2x64xf32>
    %191 = vector.extract_strided_slice %187 {offsets = [0, 64], sizes = [2, 64], strides = [1, 1]} : vector<2x192xf32> to vector<2x64xf32>
    %192 = vector.extract_strided_slice %187 {offsets = [0, 128], sizes = [2, 64], strides = [1, 1]} : vector<2x192xf32> to vector<2x64xf32>
    %193 = arith.mulf %191, %135 : vector<2x64xf32>
    %194 = arith.mulf %190, %189 : vector<2x64xf32>
    %195 = arith.addf %193, %194 : vector<2x64xf32>
    %196 = math.tanh %195 : vector<2x64xf32>
    %197 = arith.mulf %192, %196 : vector<2x64xf32>
    %198 = tpu.concatenate %163, %180, %197 in 1 : vector<2x64xf32>, vector<2x64xf32>, vector<2x64xf32> -> vector<2x192xf32>
    %199 = arith.truncf %198 : vector<2x192xf32> to vector<2x192xbf16>
    %c0_37 = arith.constant 0 : index
    %c0_38 = arith.constant 0 : index
    %200 = vector.load %arg1[%c0_37, %c0_38] : memref<224x768xbf16, #tpu.memory_space<vmem>>, vector<192x768xbf16>
    %cst_39 = arith.constant dense<0.000000e+00> : vector<2x768xf32>
    %201 = tpu.matmul %199, %200, %cst_39 {dimension_numbers = #tpu.dot_dimension_numbers<[1], [0], [0], [1], [0, 0, 1, 1], [], []>} : vector<2x192xbf16>, vector<192x768xbf16>, vector<2x768xf32> -> vector<2x768xf32>
    %c0_40 = arith.constant 0 : index
    %c0_41 = arith.constant 0 : index
    %202 = vector.load %arg2[%c0_40, %c0_41] : memref<2x768xf32, #tpu.memory_space<vmem>>, vector<1x768xf32>
    %203 = vector.broadcast %202 : vector<1x768xf32> to vector<2x768xf32>
    %204 = arith.addf %201, %203 : vector<2x768xf32>
    %205 = vector.extract_strided_slice %204 {offsets = [0, 0], sizes = [2, 256], strides = [1, 1]} : vector<2x768xf32> to vector<2x256xf32>
    %206 = vector.extract_strided_slice %2 {offsets = [8, 0], sizes = [2, 256], strides = [1, 1]} : vector<16x256xf32> to vector<2x256xf32>
    %207 = arith.addf %205, %206 : vector<2x256xf32>
    %208 = vector.extract_strided_slice %207 {offsets = [0, 0], sizes = [2, 192], strides = [1, 1]} : vector<2x256xf32> to vector<2x192xf32>
    %209 = arith.negf %208 : vector<2x192xf32>
    %210 = math.exp %209 : vector<2x192xf32>
    %cst_42 = arith.constant 1.000000e+00 : f32
    %211 = vector.broadcast %cst_42 : f32 to vector<2x192xf32>
    %212 = arith.addf %211, %210 : vector<2x192xf32>
    %213 = arith.divf %211, %212 : vector<2x192xf32>
    %214 = vector.extract_strided_slice %207 {offsets = [0, 192], sizes = [2, 64], strides = [1, 1]} : vector<2x256xf32> to vector<2x64xf32>
    %215 = math.tanh %214 : vector<2x64xf32>
    %216 = vector.extract_strided_slice %213 {offsets = [0, 0], sizes = [2, 64], strides = [1, 1]} : vector<2x192xf32> to vector<2x64xf32>
    %217 = vector.extract_strided_slice %213 {offsets = [0, 64], sizes = [2, 64], strides = [1, 1]} : vector<2x192xf32> to vector<2x64xf32>
    %218 = vector.extract_strided_slice %213 {offsets = [0, 128], sizes = [2, 64], strides = [1, 1]} : vector<2x192xf32> to vector<2x64xf32>
    %219 = arith.mulf %217, %161 : vector<2x64xf32>
    %220 = arith.mulf %216, %215 : vector<2x64xf32>
    %221 = arith.addf %219, %220 : vector<2x64xf32>
    %222 = math.tanh %221 : vector<2x64xf32>
    %223 = arith.mulf %218, %222 : vector<2x64xf32>
    %224 = vector.extract_strided_slice %204 {offsets = [0, 256], sizes = [2, 256], strides = [1, 1]} : vector<2x768xf32> to vector<2x256xf32>
    %225 = vector.extract_strided_slice %224 {offsets = [0, 0], sizes = [2, 192], strides = [1, 1]} : vector<2x256xf32> to vector<2x192xf32>
    %226 = arith.negf %225 : vector<2x192xf32>
    %227 = math.exp %226 : vector<2x192xf32>
    %cst_43 = arith.constant 1.000000e+00 : f32
    %228 = vector.broadcast %cst_43 : f32 to vector<2x192xf32>
    %229 = arith.addf %228, %227 : vector<2x192xf32>
    %230 = arith.divf %228, %229 : vector<2x192xf32>
    %231 = vector.extract_strided_slice %224 {offsets = [0, 192], sizes = [2, 64], strides = [1, 1]} : vector<2x256xf32> to vector<2x64xf32>
    %232 = math.tanh %231 : vector<2x64xf32>
    %233 = vector.extract_strided_slice %230 {offsets = [0, 0], sizes = [2, 64], strides = [1, 1]} : vector<2x192xf32> to vector<2x64xf32>
    %234 = vector.extract_strided_slice %230 {offsets = [0, 64], sizes = [2, 64], strides = [1, 1]} : vector<2x192xf32> to vector<2x64xf32>
    %235 = vector.extract_strided_slice %230 {offsets = [0, 128], sizes = [2, 64], strides = [1, 1]} : vector<2x192xf32> to vector<2x64xf32>
    %236 = arith.mulf %234, %178 : vector<2x64xf32>
    %237 = arith.mulf %233, %232 : vector<2x64xf32>
    %238 = arith.addf %236, %237 : vector<2x64xf32>
    %239 = math.tanh %238 : vector<2x64xf32>
    %240 = arith.mulf %235, %239 : vector<2x64xf32>
    %241 = vector.extract_strided_slice %204 {offsets = [0, 512], sizes = [2, 256], strides = [1, 1]} : vector<2x768xf32> to vector<2x256xf32>
    %242 = vector.extract_strided_slice %241 {offsets = [0, 0], sizes = [2, 192], strides = [1, 1]} : vector<2x256xf32> to vector<2x192xf32>
    %243 = arith.negf %242 : vector<2x192xf32>
    %244 = math.exp %243 : vector<2x192xf32>
    %cst_44 = arith.constant 1.000000e+00 : f32
    %245 = vector.broadcast %cst_44 : f32 to vector<2x192xf32>
    %246 = arith.addf %245, %244 : vector<2x192xf32>
    %247 = arith.divf %245, %246 : vector<2x192xf32>
    %248 = vector.extract_strided_slice %241 {offsets = [0, 192], sizes = [2, 64], strides = [1, 1]} : vector<2x256xf32> to vector<2x64xf32>
    %249 = math.tanh %248 : vector<2x64xf32>
    %250 = vector.extract_strided_slice %247 {offsets = [0, 0], sizes = [2, 64], strides = [1, 1]} : vector<2x192xf32> to vector<2x64xf32>
    %251 = vector.extract_strided_slice %247 {offsets = [0, 64], sizes = [2, 64], strides = [1, 1]} : vector<2x192xf32> to vector<2x64xf32>
    %252 = vector.extract_strided_slice %247 {offsets = [0, 128], sizes = [2, 64], strides = [1, 1]} : vector<2x192xf32> to vector<2x64xf32>
    %253 = arith.mulf %251, %195 : vector<2x64xf32>
    %254 = arith.mulf %250, %249 : vector<2x64xf32>
    %255 = arith.addf %253, %254 : vector<2x64xf32>
    %256 = math.tanh %255 : vector<2x64xf32>
    %257 = arith.mulf %252, %256 : vector<2x64xf32>
    %258 = tpu.concatenate %223, %240, %257 in 1 : vector<2x64xf32>, vector<2x64xf32>, vector<2x64xf32> -> vector<2x192xf32>
    %259 = arith.truncf %258 : vector<2x192xf32> to vector<2x192xbf16>
    %c0_45 = arith.constant 0 : index
    %c0_46 = arith.constant 0 : index
    %260 = vector.load %arg1[%c0_45, %c0_46] : memref<224x768xbf16, #tpu.memory_space<vmem>>, vector<192x768xbf16>
    %cst_47 = arith.constant dense<0.000000e+00> : vector<2x768xf32>
    %261 = tpu.matmul %259, %260, %cst_47 {dimension_numbers = #tpu.dot_dimension_numbers<[1], [0], [0], [1], [0, 0, 1, 1], [], []>} : vector<2x192xbf16>, vector<192x768xbf16>, vector<2x768xf32> -> vector<2x768xf32>
    %c0_48 = arith.constant 0 : index
    %c0_49 = arith.constant 0 : index
    %262 = vector.load %arg2[%c0_48, %c0_49] : memref<2x768xf32, #tpu.memory_space<vmem>>, vector<1x768xf32>
    %263 = vector.broadcast %262 : vector<1x768xf32> to vector<2x768xf32>
    %264 = arith.addf %261, %263 : vector<2x768xf32>
    %265 = vector.extract_strided_slice %264 {offsets = [0, 0], sizes = [2, 256], strides = [1, 1]} : vector<2x768xf32> to vector<2x256xf32>
    %266 = vector.extract_strided_slice %2 {offsets = [10, 0], sizes = [2, 256], strides = [1, 1]} : vector<16x256xf32> to vector<2x256xf32>
    %267 = arith.addf %265, %266 : vector<2x256xf32>
    %268 = vector.extract_strided_slice %267 {offsets = [0, 0], sizes = [2, 192], strides = [1, 1]} : vector<2x256xf32> to vector<2x192xf32>
    %269 = arith.negf %268 : vector<2x192xf32>
    %270 = math.exp %269 : vector<2x192xf32>
    %cst_50 = arith.constant 1.000000e+00 : f32
    %271 = vector.broadcast %cst_50 : f32 to vector<2x192xf32>
    %272 = arith.addf %271, %270 : vector<2x192xf32>
    %273 = arith.divf %271, %272 : vector<2x192xf32>
    %274 = vector.extract_strided_slice %267 {offsets = [0, 192], sizes = [2, 64], strides = [1, 1]} : vector<2x256xf32> to vector<2x64xf32>
    %275 = math.tanh %274 : vector<2x64xf32>
    %276 = vector.extract_strided_slice %273 {offsets = [0, 0], sizes = [2, 64], strides = [1, 1]} : vector<2x192xf32> to vector<2x64xf32>
    %277 = vector.extract_strided_slice %273 {offsets = [0, 64], sizes = [2, 64], strides = [1, 1]} : vector<2x192xf32> to vector<2x64xf32>
    %278 = vector.extract_strided_slice %273 {offsets = [0, 128], sizes = [2, 64], strides = [1, 1]} : vector<2x192xf32> to vector<2x64xf32>
    %279 = arith.mulf %277, %221 : vector<2x64xf32>
    %280 = arith.mulf %276, %275 : vector<2x64xf32>
    %281 = arith.addf %279, %280 : vector<2x64xf32>
    %282 = math.tanh %281 : vector<2x64xf32>
    %283 = arith.mulf %278, %282 : vector<2x64xf32>
    %284 = vector.extract_strided_slice %264 {offsets = [0, 256], sizes = [2, 256], strides = [1, 1]} : vector<2x768xf32> to vector<2x256xf32>
    %285 = vector.extract_strided_slice %284 {offsets = [0, 0], sizes = [2, 192], strides = [1, 1]} : vector<2x256xf32> to vector<2x192xf32>
    %286 = arith.negf %285 : vector<2x192xf32>
    %287 = math.exp %286 : vector<2x192xf32>
    %cst_51 = arith.constant 1.000000e+00 : f32
    %288 = vector.broadcast %cst_51 : f32 to vector<2x192xf32>
    %289 = arith.addf %288, %287 : vector<2x192xf32>
    %290 = arith.divf %288, %289 : vector<2x192xf32>
    %291 = vector.extract_strided_slice %284 {offsets = [0, 192], sizes = [2, 64], strides = [1, 1]} : vector<2x256xf32> to vector<2x64xf32>
    %292 = math.tanh %291 : vector<2x64xf32>
    %293 = vector.extract_strided_slice %290 {offsets = [0, 0], sizes = [2, 64], strides = [1, 1]} : vector<2x192xf32> to vector<2x64xf32>
    %294 = vector.extract_strided_slice %290 {offsets = [0, 64], sizes = [2, 64], strides = [1, 1]} : vector<2x192xf32> to vector<2x64xf32>
    %295 = vector.extract_strided_slice %290 {offsets = [0, 128], sizes = [2, 64], strides = [1, 1]} : vector<2x192xf32> to vector<2x64xf32>
    %296 = arith.mulf %294, %238 : vector<2x64xf32>
    %297 = arith.mulf %293, %292 : vector<2x64xf32>
    %298 = arith.addf %296, %297 : vector<2x64xf32>
    %299 = math.tanh %298 : vector<2x64xf32>
    %300 = arith.mulf %295, %299 : vector<2x64xf32>
    %301 = vector.extract_strided_slice %264 {offsets = [0, 512], sizes = [2, 256], strides = [1, 1]} : vector<2x768xf32> to vector<2x256xf32>
    %302 = vector.extract_strided_slice %301 {offsets = [0, 0], sizes = [2, 192], strides = [1, 1]} : vector<2x256xf32> to vector<2x192xf32>
    %303 = arith.negf %302 : vector<2x192xf32>
    %304 = math.exp %303 : vector<2x192xf32>
    %cst_52 = arith.constant 1.000000e+00 : f32
    %305 = vector.broadcast %cst_52 : f32 to vector<2x192xf32>
    %306 = arith.addf %305, %304 : vector<2x192xf32>
    %307 = arith.divf %305, %306 : vector<2x192xf32>
    %308 = vector.extract_strided_slice %301 {offsets = [0, 192], sizes = [2, 64], strides = [1, 1]} : vector<2x256xf32> to vector<2x64xf32>
    %309 = math.tanh %308 : vector<2x64xf32>
    %310 = vector.extract_strided_slice %307 {offsets = [0, 0], sizes = [2, 64], strides = [1, 1]} : vector<2x192xf32> to vector<2x64xf32>
    %311 = vector.extract_strided_slice %307 {offsets = [0, 64], sizes = [2, 64], strides = [1, 1]} : vector<2x192xf32> to vector<2x64xf32>
    %312 = vector.extract_strided_slice %307 {offsets = [0, 128], sizes = [2, 64], strides = [1, 1]} : vector<2x192xf32> to vector<2x64xf32>
    %313 = arith.mulf %311, %255 : vector<2x64xf32>
    %314 = arith.mulf %310, %309 : vector<2x64xf32>
    %315 = arith.addf %313, %314 : vector<2x64xf32>
    %316 = math.tanh %315 : vector<2x64xf32>
    %317 = arith.mulf %312, %316 : vector<2x64xf32>
    %318 = tpu.concatenate %283, %300, %317 in 1 : vector<2x64xf32>, vector<2x64xf32>, vector<2x64xf32> -> vector<2x192xf32>
    %319 = arith.truncf %318 : vector<2x192xf32> to vector<2x192xbf16>
    %c0_53 = arith.constant 0 : index
    %c0_54 = arith.constant 0 : index
    %320 = vector.load %arg1[%c0_53, %c0_54] : memref<224x768xbf16, #tpu.memory_space<vmem>>, vector<192x768xbf16>
    %cst_55 = arith.constant dense<0.000000e+00> : vector<2x768xf32>
    %321 = tpu.matmul %319, %320, %cst_55 {dimension_numbers = #tpu.dot_dimension_numbers<[1], [0], [0], [1], [0, 0, 1, 1], [], []>} : vector<2x192xbf16>, vector<192x768xbf16>, vector<2x768xf32> -> vector<2x768xf32>
    %c0_56 = arith.constant 0 : index
    %c0_57 = arith.constant 0 : index
    %322 = vector.load %arg2[%c0_56, %c0_57] : memref<2x768xf32, #tpu.memory_space<vmem>>, vector<1x768xf32>
    %323 = vector.broadcast %322 : vector<1x768xf32> to vector<2x768xf32>
    %324 = arith.addf %321, %323 : vector<2x768xf32>
    %325 = vector.extract_strided_slice %324 {offsets = [0, 0], sizes = [2, 256], strides = [1, 1]} : vector<2x768xf32> to vector<2x256xf32>
    %326 = vector.extract_strided_slice %2 {offsets = [12, 0], sizes = [2, 256], strides = [1, 1]} : vector<16x256xf32> to vector<2x256xf32>
    %327 = arith.addf %325, %326 : vector<2x256xf32>
    %328 = vector.extract_strided_slice %327 {offsets = [0, 0], sizes = [2, 192], strides = [1, 1]} : vector<2x256xf32> to vector<2x192xf32>
    %329 = arith.negf %328 : vector<2x192xf32>
    %330 = math.exp %329 : vector<2x192xf32>
    %cst_58 = arith.constant 1.000000e+00 : f32
    %331 = vector.broadcast %cst_58 : f32 to vector<2x192xf32>
    %332 = arith.addf %331, %330 : vector<2x192xf32>
    %333 = arith.divf %331, %332 : vector<2x192xf32>
    %334 = vector.extract_strided_slice %327 {offsets = [0, 192], sizes = [2, 64], strides = [1, 1]} : vector<2x256xf32> to vector<2x64xf32>
    %335 = math.tanh %334 : vector<2x64xf32>
    %336 = vector.extract_strided_slice %333 {offsets = [0, 0], sizes = [2, 64], strides = [1, 1]} : vector<2x192xf32> to vector<2x64xf32>
    %337 = vector.extract_strided_slice %333 {offsets = [0, 64], sizes = [2, 64], strides = [1, 1]} : vector<2x192xf32> to vector<2x64xf32>
    %338 = vector.extract_strided_slice %333 {offsets = [0, 128], sizes = [2, 64], strides = [1, 1]} : vector<2x192xf32> to vector<2x64xf32>
    %339 = arith.mulf %337, %281 : vector<2x64xf32>
    %340 = arith.mulf %336, %335 : vector<2x64xf32>
    %341 = arith.addf %339, %340 : vector<2x64xf32>
    %342 = math.tanh %341 : vector<2x64xf32>
    %343 = arith.mulf %338, %342 : vector<2x64xf32>
    %344 = vector.extract_strided_slice %324 {offsets = [0, 256], sizes = [2, 256], strides = [1, 1]} : vector<2x768xf32> to vector<2x256xf32>
    %345 = vector.extract_strided_slice %344 {offsets = [0, 0], sizes = [2, 192], strides = [1, 1]} : vector<2x256xf32> to vector<2x192xf32>
    %346 = arith.negf %345 : vector<2x192xf32>
    %347 = math.exp %346 : vector<2x192xf32>
    %cst_59 = arith.constant 1.000000e+00 : f32
    %348 = vector.broadcast %cst_59 : f32 to vector<2x192xf32>
    %349 = arith.addf %348, %347 : vector<2x192xf32>
    %350 = arith.divf %348, %349 : vector<2x192xf32>
    %351 = vector.extract_strided_slice %344 {offsets = [0, 192], sizes = [2, 64], strides = [1, 1]} : vector<2x256xf32> to vector<2x64xf32>
    %352 = math.tanh %351 : vector<2x64xf32>
    %353 = vector.extract_strided_slice %350 {offsets = [0, 0], sizes = [2, 64], strides = [1, 1]} : vector<2x192xf32> to vector<2x64xf32>
    %354 = vector.extract_strided_slice %350 {offsets = [0, 64], sizes = [2, 64], strides = [1, 1]} : vector<2x192xf32> to vector<2x64xf32>
    %355 = vector.extract_strided_slice %350 {offsets = [0, 128], sizes = [2, 64], strides = [1, 1]} : vector<2x192xf32> to vector<2x64xf32>
    %356 = arith.mulf %354, %298 : vector<2x64xf32>
    %357 = arith.mulf %353, %352 : vector<2x64xf32>
    %358 = arith.addf %356, %357 : vector<2x64xf32>
    %359 = math.tanh %358 : vector<2x64xf32>
    %360 = arith.mulf %355, %359 : vector<2x64xf32>
    %361 = vector.extract_strided_slice %324 {offsets = [0, 512], sizes = [2, 256], strides = [1, 1]} : vector<2x768xf32> to vector<2x256xf32>
    %362 = vector.extract_strided_slice %361 {offsets = [0, 0], sizes = [2, 192], strides = [1, 1]} : vector<2x256xf32> to vector<2x192xf32>
    %363 = arith.negf %362 : vector<2x192xf32>
    %364 = math.exp %363 : vector<2x192xf32>
    %cst_60 = arith.constant 1.000000e+00 : f32
    %365 = vector.broadcast %cst_60 : f32 to vector<2x192xf32>
    %366 = arith.addf %365, %364 : vector<2x192xf32>
    %367 = arith.divf %365, %366 : vector<2x192xf32>
    %368 = vector.extract_strided_slice %361 {offsets = [0, 192], sizes = [2, 64], strides = [1, 1]} : vector<2x256xf32> to vector<2x64xf32>
    %369 = math.tanh %368 : vector<2x64xf32>
    %370 = vector.extract_strided_slice %367 {offsets = [0, 0], sizes = [2, 64], strides = [1, 1]} : vector<2x192xf32> to vector<2x64xf32>
    %371 = vector.extract_strided_slice %367 {offsets = [0, 64], sizes = [2, 64], strides = [1, 1]} : vector<2x192xf32> to vector<2x64xf32>
    %372 = vector.extract_strided_slice %367 {offsets = [0, 128], sizes = [2, 64], strides = [1, 1]} : vector<2x192xf32> to vector<2x64xf32>
    %373 = arith.mulf %371, %315 : vector<2x64xf32>
    %374 = arith.mulf %370, %369 : vector<2x64xf32>
    %375 = arith.addf %373, %374 : vector<2x64xf32>
    %376 = math.tanh %375 : vector<2x64xf32>
    %377 = arith.mulf %372, %376 : vector<2x64xf32>
    %378 = tpu.concatenate %343, %360, %377 in 1 : vector<2x64xf32>, vector<2x64xf32>, vector<2x64xf32> -> vector<2x192xf32>
    %379 = arith.truncf %378 : vector<2x192xf32> to vector<2x192xbf16>
    %c0_61 = arith.constant 0 : index
    %c0_62 = arith.constant 0 : index
    %380 = vector.load %arg1[%c0_61, %c0_62] : memref<224x768xbf16, #tpu.memory_space<vmem>>, vector<192x768xbf16>
    %cst_63 = arith.constant dense<0.000000e+00> : vector<2x768xf32>
    %381 = tpu.matmul %379, %380, %cst_63 {dimension_numbers = #tpu.dot_dimension_numbers<[1], [0], [0], [1], [0, 0, 1, 1], [], []>} : vector<2x192xbf16>, vector<192x768xbf16>, vector<2x768xf32> -> vector<2x768xf32>
    %c0_64 = arith.constant 0 : index
    %c0_65 = arith.constant 0 : index
    %382 = vector.load %arg2[%c0_64, %c0_65] : memref<2x768xf32, #tpu.memory_space<vmem>>, vector<1x768xf32>
    %383 = vector.broadcast %382 : vector<1x768xf32> to vector<2x768xf32>
    %384 = arith.addf %381, %383 : vector<2x768xf32>
    %385 = vector.extract_strided_slice %384 {offsets = [0, 0], sizes = [2, 256], strides = [1, 1]} : vector<2x768xf32> to vector<2x256xf32>
    %386 = vector.extract_strided_slice %2 {offsets = [14, 0], sizes = [2, 256], strides = [1, 1]} : vector<16x256xf32> to vector<2x256xf32>
    %387 = arith.addf %385, %386 : vector<2x256xf32>
    %388 = vector.extract_strided_slice %387 {offsets = [0, 0], sizes = [2, 192], strides = [1, 1]} : vector<2x256xf32> to vector<2x192xf32>
    %389 = arith.negf %388 : vector<2x192xf32>
    %390 = math.exp %389 : vector<2x192xf32>
    %cst_66 = arith.constant 1.000000e+00 : f32
    %391 = vector.broadcast %cst_66 : f32 to vector<2x192xf32>
    %392 = arith.addf %391, %390 : vector<2x192xf32>
    %393 = arith.divf %391, %392 : vector<2x192xf32>
    %394 = vector.extract_strided_slice %387 {offsets = [0, 192], sizes = [2, 64], strides = [1, 1]} : vector<2x256xf32> to vector<2x64xf32>
    %395 = math.tanh %394 : vector<2x64xf32>
    %396 = vector.extract_strided_slice %393 {offsets = [0, 0], sizes = [2, 64], strides = [1, 1]} : vector<2x192xf32> to vector<2x64xf32>
    %397 = vector.extract_strided_slice %393 {offsets = [0, 64], sizes = [2, 64], strides = [1, 1]} : vector<2x192xf32> to vector<2x64xf32>
    %398 = vector.extract_strided_slice %393 {offsets = [0, 128], sizes = [2, 64], strides = [1, 1]} : vector<2x192xf32> to vector<2x64xf32>
    %399 = arith.mulf %397, %341 : vector<2x64xf32>
    %400 = arith.mulf %396, %395 : vector<2x64xf32>
    %401 = arith.addf %399, %400 : vector<2x64xf32>
    %402 = math.tanh %401 : vector<2x64xf32>
    %403 = arith.mulf %398, %402 : vector<2x64xf32>
    %404 = vector.extract_strided_slice %384 {offsets = [0, 256], sizes = [2, 256], strides = [1, 1]} : vector<2x768xf32> to vector<2x256xf32>
    %405 = vector.extract_strided_slice %404 {offsets = [0, 0], sizes = [2, 192], strides = [1, 1]} : vector<2x256xf32> to vector<2x192xf32>
    %406 = arith.negf %405 : vector<2x192xf32>
    %407 = math.exp %406 : vector<2x192xf32>
    %cst_67 = arith.constant 1.000000e+00 : f32
    %408 = vector.broadcast %cst_67 : f32 to vector<2x192xf32>
    %409 = arith.addf %408, %407 : vector<2x192xf32>
    %410 = arith.divf %408, %409 : vector<2x192xf32>
    %411 = vector.extract_strided_slice %404 {offsets = [0, 192], sizes = [2, 64], strides = [1, 1]} : vector<2x256xf32> to vector<2x64xf32>
    %412 = math.tanh %411 : vector<2x64xf32>
    %413 = vector.extract_strided_slice %410 {offsets = [0, 0], sizes = [2, 64], strides = [1, 1]} : vector<2x192xf32> to vector<2x64xf32>
    %414 = vector.extract_strided_slice %410 {offsets = [0, 64], sizes = [2, 64], strides = [1, 1]} : vector<2x192xf32> to vector<2x64xf32>
    %415 = vector.extract_strided_slice %410 {offsets = [0, 128], sizes = [2, 64], strides = [1, 1]} : vector<2x192xf32> to vector<2x64xf32>
    %416 = arith.mulf %414, %358 : vector<2x64xf32>
    %417 = arith.mulf %413, %412 : vector<2x64xf32>
    %418 = arith.addf %416, %417 : vector<2x64xf32>
    %419 = math.tanh %418 : vector<2x64xf32>
    %420 = arith.mulf %415, %419 : vector<2x64xf32>
    %421 = vector.extract_strided_slice %384 {offsets = [0, 512], sizes = [2, 256], strides = [1, 1]} : vector<2x768xf32> to vector<2x256xf32>
    %422 = vector.extract_strided_slice %421 {offsets = [0, 0], sizes = [2, 192], strides = [1, 1]} : vector<2x256xf32> to vector<2x192xf32>
    %423 = arith.negf %422 : vector<2x192xf32>
    %424 = math.exp %423 : vector<2x192xf32>
    %cst_68 = arith.constant 1.000000e+00 : f32
    %425 = vector.broadcast %cst_68 : f32 to vector<2x192xf32>
    %426 = arith.addf %425, %424 : vector<2x192xf32>
    %427 = arith.divf %425, %426 : vector<2x192xf32>
    %428 = vector.extract_strided_slice %421 {offsets = [0, 192], sizes = [2, 64], strides = [1, 1]} : vector<2x256xf32> to vector<2x64xf32>
    %429 = math.tanh %428 : vector<2x64xf32>
    %430 = vector.extract_strided_slice %427 {offsets = [0, 0], sizes = [2, 64], strides = [1, 1]} : vector<2x192xf32> to vector<2x64xf32>
    %431 = vector.extract_strided_slice %427 {offsets = [0, 64], sizes = [2, 64], strides = [1, 1]} : vector<2x192xf32> to vector<2x64xf32>
    %432 = vector.extract_strided_slice %427 {offsets = [0, 128], sizes = [2, 64], strides = [1, 1]} : vector<2x192xf32> to vector<2x64xf32>
    %433 = arith.mulf %431, %375 : vector<2x64xf32>
    %434 = arith.mulf %430, %429 : vector<2x64xf32>
    %435 = arith.addf %433, %434 : vector<2x64xf32>
    %436 = math.tanh %435 : vector<2x64xf32>
    %437 = arith.mulf %432, %436 : vector<2x64xf32>
    %438 = tpu.concatenate %403, %420, %437 in 1 : vector<2x64xf32>, vector<2x64xf32>, vector<2x64xf32> -> vector<2x192xf32>
    %439 = arith.truncf %438 : vector<2x192xf32> to vector<2x192xbf16>
    %c0_69 = arith.constant 0 : index
    %c0_70 = arith.constant 0 : index
    %440 = vector.load %arg1[%c0_69, %c0_70] : memref<224x768xbf16, #tpu.memory_space<vmem>>, vector<192x768xbf16>
    %cst_71 = arith.constant dense<0.000000e+00> : vector<2x768xf32>
    %441 = tpu.matmul %439, %440, %cst_71 {dimension_numbers = #tpu.dot_dimension_numbers<[1], [0], [0], [1], [0, 0, 1, 1], [], []>} : vector<2x192xbf16>, vector<192x768xbf16>, vector<2x768xf32> -> vector<2x768xf32>
    %c0_72 = arith.constant 0 : index
    %c0_73 = arith.constant 0 : index
    %442 = vector.load %arg2[%c0_72, %c0_73] : memref<2x768xf32, #tpu.memory_space<vmem>>, vector<1x768xf32>
    %443 = vector.broadcast %442 : vector<1x768xf32> to vector<2x768xf32>
    %444 = arith.addf %441, %443 : vector<2x768xf32>
    %445 = vector.extract_strided_slice %444 {offsets = [0, 256], sizes = [2, 256], strides = [1, 1]} : vector<2x768xf32> to vector<2x256xf32>
    %446 = vector.extract_strided_slice %445 {offsets = [0, 0], sizes = [2, 192], strides = [1, 1]} : vector<2x256xf32> to vector<2x192xf32>
    %447 = arith.negf %446 : vector<2x192xf32>
    %448 = math.exp %447 : vector<2x192xf32>
    %cst_74 = arith.constant 1.000000e+00 : f32
    %449 = vector.broadcast %cst_74 : f32 to vector<2x192xf32>
    %450 = arith.addf %449, %448 : vector<2x192xf32>
    %451 = arith.divf %449, %450 : vector<2x192xf32>
    %452 = vector.extract_strided_slice %445 {offsets = [0, 192], sizes = [2, 64], strides = [1, 1]} : vector<2x256xf32> to vector<2x64xf32>
    %453 = math.tanh %452 : vector<2x64xf32>
    %454 = vector.extract_strided_slice %451 {offsets = [0, 0], sizes = [2, 64], strides = [1, 1]} : vector<2x192xf32> to vector<2x64xf32>
    %455 = vector.extract_strided_slice %451 {offsets = [0, 64], sizes = [2, 64], strides = [1, 1]} : vector<2x192xf32> to vector<2x64xf32>
    %456 = vector.extract_strided_slice %451 {offsets = [0, 128], sizes = [2, 64], strides = [1, 1]} : vector<2x192xf32> to vector<2x64xf32>
    %457 = arith.mulf %455, %418 : vector<2x64xf32>
    %458 = arith.mulf %454, %453 : vector<2x64xf32>
    %459 = arith.addf %457, %458 : vector<2x64xf32>
    %460 = math.tanh %459 : vector<2x64xf32>
    %461 = arith.mulf %456, %460 : vector<2x64xf32>
    %462 = vector.extract_strided_slice %444 {offsets = [0, 512], sizes = [2, 256], strides = [1, 1]} : vector<2x768xf32> to vector<2x256xf32>
    %463 = vector.extract_strided_slice %462 {offsets = [0, 0], sizes = [2, 192], strides = [1, 1]} : vector<2x256xf32> to vector<2x192xf32>
    %464 = arith.negf %463 : vector<2x192xf32>
    %465 = math.exp %464 : vector<2x192xf32>
    %cst_75 = arith.constant 1.000000e+00 : f32
    %466 = vector.broadcast %cst_75 : f32 to vector<2x192xf32>
    %467 = arith.addf %466, %465 : vector<2x192xf32>
    %468 = arith.divf %466, %467 : vector<2x192xf32>
    %469 = vector.extract_strided_slice %462 {offsets = [0, 192], sizes = [2, 64], strides = [1, 1]} : vector<2x256xf32> to vector<2x64xf32>
    %470 = math.tanh %469 : vector<2x64xf32>
    %471 = vector.extract_strided_slice %468 {offsets = [0, 0], sizes = [2, 64], strides = [1, 1]} : vector<2x192xf32> to vector<2x64xf32>
    %472 = vector.extract_strided_slice %468 {offsets = [0, 64], sizes = [2, 64], strides = [1, 1]} : vector<2x192xf32> to vector<2x64xf32>
    %473 = vector.extract_strided_slice %468 {offsets = [0, 128], sizes = [2, 64], strides = [1, 1]} : vector<2x192xf32> to vector<2x64xf32>
    %474 = arith.mulf %472, %435 : vector<2x64xf32>
    %475 = arith.mulf %471, %470 : vector<2x64xf32>
    %476 = arith.addf %474, %475 : vector<2x64xf32>
    %477 = math.tanh %476 : vector<2x64xf32>
    %478 = arith.mulf %473, %477 : vector<2x64xf32>
    %479 = tpu.concatenate %403, %461, %478 in 1 : vector<2x64xf32>, vector<2x64xf32>, vector<2x64xf32> -> vector<2x192xf32>
    %480 = arith.truncf %479 : vector<2x192xf32> to vector<2x192xbf16>
    %c0_76 = arith.constant 0 : index
    %c0_77 = arith.constant 0 : index
    %481 = vector.load %arg1[%c0_76, %c0_77] : memref<224x768xbf16, #tpu.memory_space<vmem>>, vector<192x768xbf16>
    %cst_78 = arith.constant dense<0.000000e+00> : vector<2x768xf32>
    %482 = tpu.matmul %480, %481, %cst_78 {dimension_numbers = #tpu.dot_dimension_numbers<[1], [0], [0], [1], [0, 0, 1, 1], [], []>} : vector<2x192xbf16>, vector<192x768xbf16>, vector<2x768xf32> -> vector<2x768xf32>
    %c0_79 = arith.constant 0 : index
    %c0_80 = arith.constant 0 : index
    %483 = vector.load %arg2[%c0_79, %c0_80] : memref<2x768xf32, #tpu.memory_space<vmem>>, vector<1x768xf32>
    %484 = vector.broadcast %483 : vector<1x768xf32> to vector<2x768xf32>
    %485 = arith.addf %482, %484 : vector<2x768xf32>
    %486 = vector.extract_strided_slice %485 {offsets = [0, 512], sizes = [2, 256], strides = [1, 1]} : vector<2x768xf32> to vector<2x256xf32>
    %487 = vector.extract_strided_slice %486 {offsets = [0, 0], sizes = [2, 192], strides = [1, 1]} : vector<2x256xf32> to vector<2x192xf32>
    %488 = arith.negf %487 : vector<2x192xf32>
    %489 = math.exp %488 : vector<2x192xf32>
    %cst_81 = arith.constant 1.000000e+00 : f32
    %490 = vector.broadcast %cst_81 : f32 to vector<2x192xf32>
    %491 = arith.addf %490, %489 : vector<2x192xf32>
    %492 = arith.divf %490, %491 : vector<2x192xf32>
    %493 = vector.extract_strided_slice %486 {offsets = [0, 192], sizes = [2, 64], strides = [1, 1]} : vector<2x256xf32> to vector<2x64xf32>
    %494 = math.tanh %493 : vector<2x64xf32>
    %495 = vector.extract_strided_slice %492 {offsets = [0, 0], sizes = [2, 64], strides = [1, 1]} : vector<2x192xf32> to vector<2x64xf32>
    %496 = vector.extract_strided_slice %492 {offsets = [0, 64], sizes = [2, 64], strides = [1, 1]} : vector<2x192xf32> to vector<2x64xf32>
    %497 = arith.mulf %496, %476 : vector<2x64xf32>
    %498 = arith.mulf %495, %494 : vector<2x64xf32>
    %499 = arith.addf %497, %498 : vector<2x64xf32>
    tpu.wait_dma2 semaphore(%arg6 : memref<!tpu.dma_semaphore, #tpu.memory_space<semaphore_mem>>) src(%arg3 : memref<64x4096xbf16, #tpu.memory_space<any>>) dst(%arg5 : memref<64x4096xbf16, #tpu.memory_space<vmem>>)
    %500 = arith.truncf %499 : vector<2x64xf32> to vector<2x64xbf16>
    %c0_82 = arith.constant 0 : index
    %c0_83 = arith.constant 0 : index
    %501 = vector.load %arg5[%c0_82, %c0_83] : memref<64x4096xbf16, #tpu.memory_space<vmem>>, vector<64x4096xbf16>
    %cst_84 = arith.constant dense<0.000000e+00> : vector<2x4096xf32>
    %502 = tpu.matmul %500, %501, %cst_84 {dimension_numbers = #tpu.dot_dimension_numbers<[1], [0], [0], [1], [0, 0, 1, 1], [], []>} : vector<2x64xbf16>, vector<64x4096xbf16>, vector<2x4096xf32> -> vector<2x4096xf32>
    %cst_85 = arith.constant 0.000000e+00 : f32
    %503 = vector.broadcast %cst_85 : f32 to vector<2x64xf32>
    %504 = vector.extract_strided_slice %502 {offsets = [0, 0], sizes = [1, 4096], strides = [1, 1]} : vector<2x4096xf32> to vector<1x4096xf32>
    %505 = vector.broadcast %504 : vector<1x4096xf32> to vector<2x4096xf32>
    %506 = arith.subf %502, %505 : vector<2x4096xf32>
    %507 = math.absf %506 : vector<2x4096xf32>
    %508 = vector.extract_strided_slice %507 {offsets = [0, 0], sizes = [2, 2048], strides = [1, 1]} : vector<2x4096xf32> to vector<2x2048xf32>
    %509 = vector.extract_strided_slice %507 {offsets = [0, 2048], sizes = [2, 2048], strides = [1, 1]} : vector<2x4096xf32> to vector<2x2048xf32>
    %510 = arith.addf %508, %509 : vector<2x2048xf32>
    %511 = vector.extract_strided_slice %510 {offsets = [0, 0], sizes = [2, 1024], strides = [1, 1]} : vector<2x2048xf32> to vector<2x1024xf32>
    %512 = vector.extract_strided_slice %510 {offsets = [0, 1024], sizes = [2, 1024], strides = [1, 1]} : vector<2x2048xf32> to vector<2x1024xf32>
    %513 = arith.addf %511, %512 : vector<2x1024xf32>
    %514 = vector.extract_strided_slice %513 {offsets = [0, 0], sizes = [2, 512], strides = [1, 1]} : vector<2x1024xf32> to vector<2x512xf32>
    %515 = vector.extract_strided_slice %513 {offsets = [0, 512], sizes = [2, 512], strides = [1, 1]} : vector<2x1024xf32> to vector<2x512xf32>
    %516 = arith.addf %514, %515 : vector<2x512xf32>
    %517 = vector.extract_strided_slice %516 {offsets = [0, 0], sizes = [2, 256], strides = [1, 1]} : vector<2x512xf32> to vector<2x256xf32>
    %518 = vector.extract_strided_slice %516 {offsets = [0, 256], sizes = [2, 256], strides = [1, 1]} : vector<2x512xf32> to vector<2x256xf32>
    %519 = arith.addf %517, %518 : vector<2x256xf32>
    %520 = vector.extract_strided_slice %519 {offsets = [0, 0], sizes = [2, 128], strides = [1, 1]} : vector<2x256xf32> to vector<2x128xf32>
    %521 = vector.extract_strided_slice %519 {offsets = [0, 128], sizes = [2, 128], strides = [1, 1]} : vector<2x256xf32> to vector<2x128xf32>
    %522 = arith.addf %520, %521 : vector<2x128xf32>
    %523 = vector.extract_strided_slice %522 {offsets = [0, 0], sizes = [2, 64], strides = [1, 1]} : vector<2x128xf32> to vector<2x64xf32>
    %524 = vector.extract_strided_slice %522 {offsets = [0, 64], sizes = [2, 64], strides = [1, 1]} : vector<2x128xf32> to vector<2x64xf32>
    %525 = arith.addf %523, %524 : vector<2x64xf32>
    %cst_86 = arith.constant 0.000000e+00 : f32
    %526 = vector.broadcast %cst_86 : f32 to vector<2x64xf32>
    %527 = arith.subf %526, %525 : vector<2x64xf32>
    %528 = math.exp %527 : vector<2x64xf32>
    %529 = arith.addf %503, %528 : vector<2x64xf32>
    %530 = vector.extract_strided_slice %502 {offsets = [1, 0], sizes = [1, 4096], strides = [1, 1]} : vector<2x4096xf32> to vector<1x4096xf32>
    %531 = vector.broadcast %530 : vector<1x4096xf32> to vector<2x4096xf32>
    %532 = arith.subf %502, %531 : vector<2x4096xf32>
    %533 = math.absf %532 : vector<2x4096xf32>
    %534 = vector.extract_strided_slice %533 {offsets = [0, 0], sizes = [2, 2048], strides = [1, 1]} : vector<2x4096xf32> to vector<2x2048xf32>
    %535 = vector.extract_strided_slice %533 {offsets = [0, 2048], sizes = [2, 2048], strides = [1, 1]} : vector<2x4096xf32> to vector<2x2048xf32>
    %536 = arith.addf %534, %535 : vector<2x2048xf32>
    %537 = vector.extract_strided_slice %536 {offsets = [0, 0], sizes = [2, 1024], strides = [1, 1]} : vector<2x2048xf32> to vector<2x1024xf32>
    %538 = vector.extract_strided_slice %536 {offsets = [0, 1024], sizes = [2, 1024], strides = [1, 1]} : vector<2x2048xf32> to vector<2x1024xf32>
    %539 = arith.addf %537, %538 : vector<2x1024xf32>
    %540 = vector.extract_strided_slice %539 {offsets = [0, 0], sizes = [2, 512], strides = [1, 1]} : vector<2x1024xf32> to vector<2x512xf32>
    %541 = vector.extract_strided_slice %539 {offsets = [0, 512], sizes = [2, 512], strides = [1, 1]} : vector<2x1024xf32> to vector<2x512xf32>
    %542 = arith.addf %540, %541 : vector<2x512xf32>
    %543 = vector.extract_strided_slice %542 {offsets = [0, 0], sizes = [2, 256], strides = [1, 1]} : vector<2x512xf32> to vector<2x256xf32>
    %544 = vector.extract_strided_slice %542 {offsets = [0, 256], sizes = [2, 256], strides = [1, 1]} : vector<2x512xf32> to vector<2x256xf32>
    %545 = arith.addf %543, %544 : vector<2x256xf32>
    %546 = vector.extract_strided_slice %545 {offsets = [0, 0], sizes = [2, 128], strides = [1, 1]} : vector<2x256xf32> to vector<2x128xf32>
    %547 = vector.extract_strided_slice %545 {offsets = [0, 128], sizes = [2, 128], strides = [1, 1]} : vector<2x256xf32> to vector<2x128xf32>
    %548 = arith.addf %546, %547 : vector<2x128xf32>
    %549 = vector.extract_strided_slice %548 {offsets = [0, 0], sizes = [2, 64], strides = [1, 1]} : vector<2x128xf32> to vector<2x64xf32>
    %550 = vector.extract_strided_slice %548 {offsets = [0, 64], sizes = [2, 64], strides = [1, 1]} : vector<2x128xf32> to vector<2x64xf32>
    %551 = arith.addf %549, %550 : vector<2x64xf32>
    %cst_87 = arith.constant 0.000000e+00 : f32
    %552 = vector.broadcast %cst_87 : f32 to vector<2x64xf32>
    %553 = arith.subf %552, %551 : vector<2x64xf32>
    %554 = math.exp %553 : vector<2x64xf32>
    %555 = arith.addf %529, %554 : vector<2x64xf32>
    %cst_88 = arith.constant 1.000000e+00 : f32
    %556 = vector.broadcast %cst_88 : f32 to vector<2x64xf32>
    %557 = arith.subf %555, %556 : vector<2x64xf32>
    %c1 = arith.constant 1 : index
    %c0_89 = arith.constant 0 : index
    %558 = vector.load %arg2[%c1, %c0_89] : memref<2x768xf32, #tpu.memory_space<vmem>>, vector<1x64xf32>
    %c1_90 = arith.constant 1 : index
    %c64 = arith.constant 64 : index
    %559 = vector.load %arg2[%c1_90, %c64] : memref<2x768xf32, #tpu.memory_space<vmem>>, vector<1x64xf32>
    %c1_91 = arith.constant 1 : index
    %c128 = arith.constant 128 : index
    %560 = vector.load %arg2[%c1_91, %c128] : memref<2x768xf32, #tpu.memory_space<vmem>>, vector<1x1xf32>
    %561 = vector.broadcast %558 : vector<1x64xf32> to vector<2x64xf32>
    %562 = arith.mulf %499, %561 : vector<2x64xf32>
    %cst_92 = arith.constant dense<0.000000e+00> : vector<2xf32>
    %563 = vector.multi_reduction <add>, %562, %cst_92 [1] : vector<2x64xf32> to vector<2xf32>
    %564 = vector.shape_cast %563 : vector<2xf32> to vector<2x1xf32>
    %565 = vector.broadcast %559 : vector<1x64xf32> to vector<2x64xf32>
    %566 = arith.mulf %557, %565 : vector<2x64xf32>
    %cst_93 = arith.constant dense<0.000000e+00> : vector<2xf32>
    %567 = vector.multi_reduction <add>, %566, %cst_93 [1] : vector<2x64xf32> to vector<2xf32>
    %568 = vector.shape_cast %567 : vector<2xf32> to vector<2x1xf32>
    %569 = arith.addf %564, %568 : vector<2x1xf32>
    %570 = vector.broadcast %560 : vector<1x1xf32> to vector<2x1xf32>
    %571 = arith.addf %569, %570 : vector<2x1xf32>
    %572 = arith.negf %571 : vector<2x1xf32>
    %573 = math.exp %572 : vector<2x1xf32>
    %cst_94 = arith.constant 1.000000e+00 : f32
    %574 = vector.broadcast %cst_94 : f32 to vector<2x1xf32>
    %575 = arith.addf %574, %573 : vector<2x1xf32>
    %576 = arith.divf %574, %575 : vector<2x1xf32>
    %c0_95 = arith.constant 0 : index
    %c0_96 = arith.constant 0 : index
    %577 = vector.load %arg4[%c0_95, %c0_96] : memref<2x1xf32, #tpu.memory_space<vmem>>, vector<2x1xf32>
    tpu.vector_store %arg4[%c0_95, %c0_96], %576 {strides = array<i32>} : memref<2x1xf32, #tpu.memory_space<vmem>>, vector<2x1xf32>,
    return
  }
}

</mosaic_0001>

<llo_original>
// kernel: discriminator_forward.1
$region0: #{discriminator_forward.1}
  #allocation0 [shape = 'u32[]', space=smem, size = 0x4, offset = 0x4, fixed_abs, tag = 'smem constant byte address 0x4 - core index']
  #allocation1 [shape = 'u32[144,128]{1,0:T(1,128)}', space=vmem, size = 0x12000, scoped, tag = 'internal scratch']
  #allocation2 [shape = 'bf16[64,4096]{1,0:T(16,128)(2,1)}', space=vmem, size = 0x80000, scoped, tag = 'scratch operand']
  #allocation3 [shape = 's32[1]{0}', space=sflag, size = 0x4, scoped, tag = 'scratch operand']
  #allocation4 [shape = 's32[]', space=sflag, size = 0x4, offset = 0, fixed_abs, tag = 'sflag constant byte address 0x0 - dummy sync flag']
  %s0 = inlined_call_operand.vmem [shape: bf16[16,32], index: 0, kind: input, shape index: {}]
  %s1 = inlined_call_operand.vmem [shape: bf16[224,768], index: 1, kind: input, shape index: {}]
  %s2 = inlined_call_operand.vmem [shape: f32[2,768], index: 2, kind: input, shape index: {}]
  %s3 = inlined_call_operand.vmem [shape: bf16[64,4096], index: 3, kind: input, shape index: {}]
  %s4 = inlined_call_operand.vmem [shape: f32[2,1], index: 4, kind: output, shape index: {}]
  %s5 = sld [smem:[#allocation0]]
  $region59: #{discriminator_forward.1} parent=0
    _
  %s7 = ssub.s32 1, %s5
  %s8 = scalar_select 0, %s7, %s5
  // Predicated region
  $region2: #{discriminator_forward.1} parent=0 // pred_check
    _
  $region3: #{discriminator_forward.1} parent=0 // pred_check_branch
    %10 = sbr.rel (0) target = $region5
  $region4: #{discriminator_forward.1} parent=0 // pred_region
    _
  $region5: #{discriminator_forward.1} parent=0 // pred_fallthru
    _
  // Predicated region
  $region6: #{discriminator_forward.1} parent=0 // pred_check
    _
  $region7: #{discriminator_forward.1} parent=0 // pred_check_branch
    %12 = sbr.rel (0) target = $region9
  $region8: #{discriminator_forward.1} parent=0 // pred_region
    _
  $region9: #{discriminator_forward.1} parent=0 // pred_fallthru
    _
  // Predicated region
  $region10: #{discriminator_forward.1} parent=0 // pred_check
    _
  $region11: #{discriminator_forward.1} parent=0 // pred_check_branch
    %14 = sbr.rel (0) target = $region13
  $region12: #{discriminator_forward.1} parent=0 // pred_region
    _
  $region13: #{discriminator_forward.1} parent=0 // pred_fallthru
    _
  %p17 = scmp.lt.u32.totalorder 4, 8
  %p18 = pneg %p17
  // Predicated region
  $region14: #{discriminator_forward.1} parent=0 // pred_check
    _
  $region15: #{discriminator_forward.1} parent=0 // pred_check_branch
    %20 = sbr.rel (%p17) target = $region17
  $region16: #{discriminator_forward.1} parent=0 // pred_region
    %s545 = sand.u32 4, 7
    %p546 = scmp.eq.s32.totalorder %s545, 0
    %p547 = pneg %p546
    // Predicated region
    $region29: #{discriminator_forward.1} parent=16 // pred_check
      _
    $region30: #{discriminator_forward.1} parent=16 // pred_check_branch
      %549 = sbr.rel (%p546) target = $region32
    $region31: #{discriminator_forward.1} parent=16 // pred_region
      %s550 = sand.u32 4, 7
      %s551 = ssub.s32 4, %s550
      %s552 = scalar_lea.vmem %s3, %s551
      %s553 = ssub.s32 4, %s550
      %s554 = scalar_lea.vmem [#allocation2], %s553
      loop: start=0, step=1, limit=1
      $region33: #{discriminator_forward.1} parent=31 // loop_pre_header
        _
      $region34: #{discriminator_forward.1} parent=31 // loop_header
        %s556 = sphi 0, %s560
        %p557 = scmp.ge.s32.totalorder %s556, 1
        %s561 = sphi %s3, %s3
        %s562 = sphi [#allocation2], [#allocation2]
      $region35: #{discriminator_forward.1} parent=31 // loop_header_branch
        %559 = sbr.rel (%p557) target = $region39
      $region36: #{discriminator_forward.1} parent=31 // loop_body
        _
      $region37: #{discriminator_forward.1} parent=31 // loop_footer
        %s560 = sadd.s32 1, %s556
      $region38: #{discriminator_forward.1} parent=31 // loop_footer_branch
        %555 = sbr.rel target = $region34
      $region39: #{discriminator_forward.1} parent=31 // loop_exit
        _
      %s563 = sshllo.u32 0, %s550
      loop: start=0, step=1, limit=1
      $region40: #{discriminator_forward.1} parent=31 // loop_pre_header
        _
      $region41: #{discriminator_forward.1} parent=31 // loop_header
        %s565 = sphi 0, %s569
        %p566 = scmp.ge.s32.totalorder %s565, 1
        %s570 = sphi %s552, %s552
        %s571 = sphi %s554, %s554
      $region42: #{discriminator_forward.1} parent=31 // loop_header_branch
        %568 = sbr.rel (%p566) target = $region46
      $region43: #{discriminator_forward.1} parent=31 // loop_body
        %v572 = vld [vmem:[%s570] sm:%s563]
        %573 = vst [vmem:[%s571] sm:%s563] %v572
        %v574 = vld [vmem:[%s570 + $0x80] sm:%s563]
        %575 = vst [vmem:[%s571 + $0x4] sm:%s563] %v574
        %v576 = vld [vmem:[%s570 + $0x4] sm:%s563]
        %577 = vst [vmem:[%s571 + $0x8] sm:%s563] %v576
        %v578 = vld [vmem:[%s570 + $0x84] sm:%s563]
        %579 = vst [vmem:[%s571 + $0xc] sm:%s563] %v578
        %v580 = vld [vmem:[%s570 + $0x8] sm:%s563]
        %581 = vst [vmem:[%s571 + $0x10] sm:%s563] %v580
        %v582 = vld [vmem:[%s570 + $0x88] sm:%s563]
        %583 = vst [vmem:[%s571 + $0x14] sm:%s563] %v582
        %v584 = vld [vmem:[%s570 + $0xc] sm:%s563]
        %585 = vst [vmem:[%s571 + $0x18] sm:%s563] %v584
        %v586 = vld [vmem:[%s570 + $0x8c] sm:%s563]
        %587 = vst [vmem:[%s571 + $0x1c] sm:%s563] %v586
        %v588 = vld [vmem:[%s570 + $0x10] sm:%s563]
        %589 = vst [vmem:[%s571 + $0x20] sm:%s563] %v588
        %v590 = vld [vmem:[%s570 + $0x90] sm:%s563]
        %591 = vst [vmem:[%s571 + $0x24] sm:%s563] %v590
        %v592 = vld [vmem:[%s570 + $0x14] sm:%s563]
        %593 = vst [vmem:[%s571 + $0x28] sm:%s563] %v592
        %v594 = vld [vmem:[%s570 + $0x94] sm:%s563]
        %595 = vst [vmem:[%s571 + $0x2c] sm:%s563] %v594
        %v596 = vld [vmem:[%s570 + $0x18] sm:%s563]
        %597 = vst [vmem:[%s571 + $0x30] sm:%s563] %v596
        %v598 = vld [vmem:[%s570 + $0x98] sm:%s563]
        %599 = vst [vmem:[%s571 + $0x34] sm:%s563] %v598
        %v600 = vld [vmem:[%s570 + $0x1c] sm:%s563]
        %601 = vst [vmem:[%s571 + $0x38] sm:%s563] %v600
        %v602 = vld [vmem:[%s570 + $0x9c] sm:%s563]
        %603 = vst [vmem:[%s571 + $0x3c] sm:%s563] %v602
        %v604 = vld [vmem:[%s570 + $0x20] sm:%s563]
        %605 = vst [vmem:[%s571 + $0x40] sm:%s563] %v604
        %v606 = vld [vmem:[%s570 + $0xa0] sm:%s563]
        %607 = vst [vmem:[%s571 + $0x44] sm:%s563] %v606
        %v608 = vld [vmem:[%s570 + $0x24] sm:%s563]
        %609 = vst [vmem:[%s571 + $0x48] sm:%s563] %v608
        %v610 = vld [vmem:[%s570 + $0xa4] sm:%s563]
        %611 = vst [vmem:[%s571 + $0x4c] sm:%s563] %v610
        %v612 = vld [vmem:[%s570 + $0x28] sm:%s563]
        %613 = vst [vmem:[%s571 + $0x50] sm:%s563] %v612
        %v614 = vld [vmem:[%s570 + $0xa8] sm:%s563]
        %615 = vst [vmem:[%s571 + $0x54] sm:%s563] %v614
        %v616 = vld [vmem:[%s570 + $0x2c] sm:%s563]
        %617 = vst [vmem:[%s571 + $0x58] sm:%s563] %v616
        %v618 = vld [vmem:[%s570 + $0xac] sm:%s563]
        %619 = vst [vmem:[%s571 + $0x5c] sm:%s563] %v618
        %v620 = vld [vmem:[%s570 + $0x30] sm:%s563]
        %621 = vst [vmem:[%s571 + $0x60] sm:%s563] %v620
        %v622 = vld [vmem:[%s570 + $0xb0] sm:%s563]
        %623 = vst [vmem:[%s571 + $0x64] sm:%s563] %v622
        %v624 = vld [vmem:[%s570 + $0x34] sm:%s563]
        %625 = vst [vmem:[%s571 + $0x68] sm:%s563] %v624
        %v626 = vld [vmem:[%s570 + $0xb4] sm:%s563]
        %627 = vst [vmem:[%s571 + $0x6c] sm:%s563] %v626
        %v628 = vld [vmem:[%s570 + $0x38] sm:%s563]
        %629 = vst [vmem:[%s571 + $0x70] sm:%s563] %v628
        %v630 = vld [vmem:[%s570 + $0xb8] sm:%s563]
        %631 = vst [vmem:[%s571 + $0x74] sm:%s563] %v630
        %v632 = vld [vmem:[%s570 + $0x3c] sm:%s563]
        %633 = vst [vmem:[%s571 + $0x78] sm:%s563] %v632
        %v634 = vld [vmem:[%s570 + $0xbc] sm:%s563]
        %635 = vst [vmem:[%s571 + $0x7c] sm:%s563] %v634
        %v636 = vld [vmem:[%s570 + $0x40] sm:%s563]
        %637 = vst [vmem:[%s571 + $0x80] sm:%s563] %v636
        %v638 = vld [vmem:[%s570 + $0xc0] sm:%s563]
        %639 = vst [vmem:[%s571 + $0x84] sm:%s563] %v638
        %v640 = vld [vmem:[%s570 + $0x44] sm:%s563]
        %641 = vst [vmem:[%s571 + $0x88] sm:%s563] %v640
        %v642 = vld [vmem:[%s570 + $0xc4] sm:%s563]
        %643 = vst [vmem:[%s571 + $0x8c] sm:%s563] %v642
        %v644 = vld [vmem:[%s570 + $0x48] sm:%s563]
        %645 = vst [vmem:[%s571 + $0x90] sm:%s563] %v644
        %v646 = vld [vmem:[%s570 + $0xc8] sm:%s563]
        %647 = vst [vmem:[%s571 + $0x94] sm:%s563] %v646
        %v648 = vld [vmem:[%s570 + $0x4c] sm:%s563]
        %649 = vst [vmem:[%s571 + $0x98] sm:%s563] %v648
        %v650 = vld [vmem:[%s570 + $0xcc] sm:%s563]
        %651 = vst [vmem:[%s571 + $0x9c] sm:%s563] %v650
        %v652 = vld [vmem:[%s570 + $0x50] sm:%s563]
        %653 = vst [vmem:[%s571 + $0xa0] sm:%s563] %v652
        %v654 = vld [vmem:[%s570 + $0xd0] sm:%s563]
        %655 = vst [vmem:[%s571 + $0xa4] sm:%s563] %v654
        %v656 = vld [vmem:[%s570 + $0x54] sm:%s563]
        %657 = vst [vmem:[%s571 + $0xa8] sm:%s563] %v656
        %v658 = vld [vmem:[%s570 + $0xd4] sm:%s563]
        %659 = vst [vmem:[%s571 + $0xac] sm:%s563] %v658
        %v660 = vld [vmem:[%s570 + $0x58] sm:%s563]
        %661 = vst [vmem:[%s571 + $0xb0] sm:%s563] %v660
        %v662 = vld [vmem:[%s570 + $0xd8] sm:%s563]
        %663 = vst [vmem:[%s571 + $0xb4] sm:%s563] %v662
        %v664 = vld [vmem:[%s570 + $0x5c] sm:%s563]
        %665 = vst [vmem:[%s571 + $0xb8] sm:%s563] %v664
        %v666 = vld [vmem:[%s570 + $0xdc] sm:%s563]
        %667 = vst [vmem:[%s571 + $0xbc] sm:%s563] %v666
        %v668 = vld [vmem:[%s570 + $0x60] sm:%s563]
        %669 = vst [vmem:[%s571 + $0xc0] sm:%s563] %v668
        %v670 = vld [vmem:[%s570 + $0xe0] sm:%s563]
        %671 = vst [vmem:[%s571 + $0xc4] sm:%s563] %v670
        %v672 = vld [vmem:[%s570 + $0x64] sm:%s563]
        %673 = vst [vmem:[%s571 + $0xc8] sm:%s563] %v672
        %v674 = vld [vmem:[%s570 + $0xe4] sm:%s563]
        %675 = vst [vmem:[%s571 + $0xcc] sm:%s563] %v674
        %v676 = vld [vmem:[%s570 + $0x68] sm:%s563]
        %677 = vst [vmem:[%s571 + $0xd0] sm:%s563] %v676
        %v678 = vld [vmem:[%s570 + $0xe8] sm:%s563]
        %679 = vst [vmem:[%s571 + $0xd4] sm:%s563] %v678
        %v680 = vld [vmem:[%s570 + $0x6c] sm:%s563]
        %681 = vst [vmem:[%s571 + $0xd8] sm:%s563] %v680
        %v682 = vld [vmem:[%s570 + $0xec] sm:%s563]
        %683 = vst [vmem:[%s571 + $0xdc] sm:%s563] %v682
        %v684 = vld [vmem:[%s570 + $0x70] sm:%s563]
        %685 = vst [vmem:[%s571 + $0xe0] sm:%s563] %v684
        %v686 = vld [vmem:[%s570 + $0xf0] sm:%s563]
        %687 = vst [vmem:[%s571 + $0xe4] sm:%s563] %v686
        %v688 = vld [vmem:[%s570 + $0x74] sm:%s563]
        %689 = vst [vmem:[%s571 + $0xe8] sm:%s563] %v688
        %v690 = vld [vmem:[%s570 + $0xf4] sm:%s563]
        %691 = vst [vmem:[%s571 + $0xec] sm:%s563] %v690
        %v692 = vld [vmem:[%s570 + $0x78] sm:%s563]
        %693 = vst [vmem:[%s571 + $0xf0] sm:%s563] %v692
        %v694 = vld [vmem:[%s570 + $0xf8] sm:%s563]
        %695 = vst [vmem:[%s571 + $0xf4] sm:%s563] %v694
        %v696 = vld [vmem:[%s570 + $0x7c] sm:%s563]
        %697 = vst [vmem:[%s571 + $0xf8] sm:%s563] %v696
        %v698 = vld [vmem:[%s570 + $0xfc] sm:%s563]
        %699 = vst [vmem:[%s571 + $0xfc] sm:%s563] %v698
        %v700 = vld [vmem:[%s570 + $0x100] sm:%s563]
        %701 = vst [vmem:[%s571 + $0x100] sm:%s563] %v700
        %v702 = vld [vmem:[%s570 + $0x180] sm:%s563]
        %703 = vst [vmem:[%s571 + $0x104] sm:%s563] %v702
        %v704 = vld [vmem:[%s570 + $0x104] sm:%s563]
        %705 = vst [vmem:[%s571 + $0x108] sm:%s563] %v704
        %v706 = vld [vmem:[%s570 + $0x184] sm:%s563]
        %707 = vst [vmem:[%s571 + $0x10c] sm:%s563] %v706
        %v708 = vld [vmem:[%s570 + $0x108] sm:%s563]
        %709 = vst [vmem:[%s571 + $0x110] sm:%s563] %v708
        %v710 = vld [vmem:[%s570 + $0x188] sm:%s563]
        %711 = vst [vmem:[%s571 + $0x114] sm:%s563] %v710
        %v712 = vld [vmem:[%s570 + $0x10c] sm:%s563]
        %713 = vst [vmem:[%s571 + $0x118] sm:%s563] %v712
        %v714 = vld [vmem:[%s570 + $0x18c] sm:%s563]
        %715 = vst [vmem:[%s571 + $0x11c] sm:%s563] %v714
        %v716 = vld [vmem:[%s570 + $0x110] sm:%s563]
        %717 = vst [vmem:[%s571 + $0x120] sm:%s563] %v716
        %v718 = vld [vmem:[%s570 + $0x190] sm:%s563]
        %719 = vst [vmem:[%s571 + $0x124] sm:%s563] %v718
        %v720 = vld [vmem:[%s570 + $0x114] sm:%s563]
        %721 = vst [vmem:[%s571 + $0x128] sm:%s563] %v720
        %v722 = vld [vmem:[%s570 + $0x194] sm:%s563]
        %723 = vst [vmem:[%s571 + $0x12c] sm:%s563] %v722
        %v724 = vld [vmem:[%s570 + $0x118] sm:%s563]
        %725 = vst [vmem:[%s571 + $0x130] sm:%s563] %v724
        %v726 = vld [vmem:[%s570 + $0x198] sm:%s563]
        %727 = vst [vmem:[%s571 + $0x134] sm:%s563] %v726
        %v728 = vld [vmem:[%s570 + $0x11c] sm:%s563]
        %729 = vst [vmem:[%s571 + $0x138] sm:%s563] %v728
        %v730 = vld [vmem:[%s570 + $0x19c] sm:%s563]
        %731 = vst [vmem:[%s571 + $0x13c] sm:%s563] %v730
        %v732 = vld [vmem:[%s570 + $0x120] sm:%s563]
        %733 = vst [vmem:[%s571 + $0x140] sm:%s563] %v732
        %v734 = vld [vmem:[%s570 + $0x1a0] sm:%s563]
        %735 = vst [vmem:[%s571 + $0x144] sm:%s563] %v734
        %v736 = vld [vmem:[%s570 + $0x124] sm:%s563]
        %737 = vst [vmem:[%s571 + $0x148] sm:%s563] %v736
        %v738 = vld [vmem:[%s570 + $0x1a4] sm:%s563]
        %739 = vst [vmem:[%s571 + $0x14c] sm:%s563] %v738
        %v740 = vld [vmem:[%s570 + $0x128] sm:%s563]
        %741 = vst [vmem:[%s571 + $0x150] sm:%s563] %v740
        %v742 = vld [vmem:[%s570 + $0x1a8] sm:%s563]
        %743 = vst [vmem:[%s571 + $0x154] sm:%s563] %v742
        %v744 = vld [vmem:[%s570 + $0x12c] sm:%s563]
        %745 = vst [vmem:[%s571 + $0x158] sm:%s563] %v744
        %v746 = vld [vmem:[%s570 + $0x1ac] sm:%s563]
        %747 = vst [vmem:[%s571 + $0x15c] sm:%s563] %v746
        %v748 = vld [vmem:[%s570 + $0x130] sm:%s563]
        %749 = vst [vmem:[%s571 + $0x160] sm:%s563] %v748
        %v750 = vld [vmem:[%s570 + $0x1b0] sm:%s563]
        %751 = vst [vmem:[%s571 + $0x164] sm:%s563] %v750
        %v752 = vld [vmem:[%s570 + $0x134] sm:%s563]
        %753 = vst [vmem:[%s571 + $0x168] sm:%s563] %v752
        %v754 = vld [vmem:[%s570 + $0x1b4] sm:%s563]
        %755 = vst [vmem:[%s571 + $0x16c] sm:%s563] %v754
        %v756 = vld [vmem:[%s570 + $0x138] sm:%s563]
        %757 = vst [vmem:[%s571 + $0x170] sm:%s563] %v756
        %v758 = vld [vmem:[%s570 + $0x1b8] sm:%s563]
        %759 = vst [vmem:[%s571 + $0x174] sm:%s563] %v758
        %v760 = vld [vmem:[%s570 + $0x13c] sm:%s563]
        %761 = vst [vmem:[%s571 + $0x178] sm:%s563] %v760
        %v762 = vld [vmem:[%s570 + $0x1bc] sm:%s563]
        %763 = vst [vmem:[%s571 + $0x17c] sm:%s563] %v762
        %v764 = vld [vmem:[%s570 + $0x140] sm:%s563]
        %765 = vst [vmem:[%s571 + $0x180] sm:%s563] %v764
        %v766 = vld [vmem:[%s570 + $0x1c0] sm:%s563]
        %767 = vst [vmem:[%s571 + $0x184] sm:%s563] %v766
        %v768 = vld [vmem:[%s570 + $0x144] sm:%s563]
        %769 = vst [vmem:[%s571 + $0x188] sm:%s563] %v768
        %v770 = vld [vmem:[%s570 + $0x1c4] sm:%s563]
        %771 = vst [vmem:[%s571 + $0x18c] sm:%s563] %v770
        %v772 = vld [vmem:[%s570 + $0x148] sm:%s563]
        %773 = vst [vmem:[%s571 + $0x190] sm:%s563] %v772
        %v774 = vld [vmem:[%s570 + $0x1c8] sm:%s563]
        %775 = vst [vmem:[%s571 + $0x194] sm:%s563] %v774
        %v776 = vld [vmem:[%s570 + $0x14c] sm:%s563]
        %777 = vst [vmem:[%s571 + $0x198] sm:%s563] %v776
        %v778 = vld [vmem:[%s570 + $0x1cc] sm:%s563]
        %779 = vst [vmem:[%s571 + $0x19c] sm:%s563] %v778
        %v780 = vld [vmem:[%s570 + $0x150] sm:%s563]
        %781 = vst [vmem:[%s571 + $0x1a0] sm:%s563] %v780
        %v782 = vld [vmem:[%s570 + $0x1d0] sm:%s563]
        %783 = vst [vmem:[%s571 + $0x1a4] sm:%s563] %v782
        %v784 = vld [vmem:[%s570 + $0x154] sm:%s563]
        %785 = vst [vmem:[%s571 + $0x1a8] sm:%s563] %v784
        %v786 = vld [vmem:[%s570 + $0x1d4] sm:%s563]
        %787 = vst [vmem:[%s571 + $0x1ac] sm:%s563] %v786
        %v788 = vld [vmem:[%s570 + $0x158] sm:%s563]
        %789 = vst [vmem:[%s571 + $0x1b0] sm:%s563] %v788
        %v790 = vld [vmem:[%s570 + $0x1d8] sm:%s563]
        %791 = vst [vmem:[%s571 + $0x1b4] sm:%s563] %v790
        %v792 = vld [vmem:[%s570 + $0x15c] sm:%s563]
        %793 = vst [vmem:[%s571 + $0x1b8] sm:%s563] %v792
        %v794 = vld [vmem:[%s570 + $0x1dc] sm:%s563]
        %795 = vst [vmem:[%s571 + $0x1bc] sm:%s563] %v794
        %v796 = vld [vmem:[%s570 + $0x160] sm:%s563]
        %797 = vst [vmem:[%s571 + $0x1c0] sm:%s563] %v796
        %v798 = vld [vmem:[%s570 + $0x1e0] sm:%s563]
        %799 = vst [vmem:[%s571 + $0x1c4] sm:%s563] %v798
        %v800 = vld [vmem:[%s570 + $0x164] sm:%s563]
        %801 = vst [vmem:[%s571 + $0x1c8] sm:%s563] %v800
        %v802 = vld [vmem:[%s570 + $0x1e4] sm:%s563]
        %803 = vst [vmem:[%s571 + $0x1cc] sm:%s563] %v802
        %v804 = vld [vmem:[%s570 + $0x168] sm:%s563]
        %805 = vst [vmem:[%s571 + $0x1d0] sm:%s563] %v804
        %v806 = vld [vmem:[%s570 + $0x1e8] sm:%s563]
        %807 = vst [vmem:[%s571 + $0x1d4] sm:%s563] %v806
        %v808 = vld [vmem:[%s570 + $0x16c] sm:%s563]
        %809 = vst [vmem:[%s571 + $0x1d8] sm:%s563] %v808
        %v810 = vld [vmem:[%s570 + $0x1ec] sm:%s563]
        %811 = vst [vmem:[%s571 + $0x1dc] sm:%s563] %v810
        %v812 = vld [vmem:[%s570 + $0x170] sm:%s563]
        %813 = vst [vmem:[%s571 + $0x1e0] sm:%s563] %v812
        %v814 = vld [vmem:[%s570 + $0x1f0] sm:%s563]
        %815 = vst [vmem:[%s571 + $0x1e4] sm:%s563] %v814
        %v816 = vld [vmem:[%s570 + $0x174] sm:%s563]
        %817 = vst [vmem:[%s571 + $0x1e8] sm:%s563] %v816
        %v818 = vld [vmem:[%s570 + $0x1f4] sm:%s563]
        %819 = vst [vmem:[%s571 + $0x1ec] sm:%s563] %v818
        %v820 = vld [vmem:[%s570 + $0x178] sm:%s563]
        %821 = vst [vmem:[%s571 + $0x1f0] sm:%s563] %v820
        %v822 = vld [vmem:[%s570 + $0x1f8] sm:%s563]
        %823 = vst [vmem:[%s571 + $0x1f4] sm:%s563] %v822
        %v824 = vld [vmem:[%s570 + $0x17c] sm:%s563]
        %825 = vst [vmem:[%s571 + $0x1f8] sm:%s563] %v824
        %v826 = vld [vmem:[%s570 + $0x1fc] sm:%s563]
        %827 = vst [vmem:[%s571 + $0x1fc] sm:%s563] %v826
        %v828 = vld [vmem:[%s570 + $0x200] sm:%s563]
        %829 = vst [vmem:[%s571 + $0x200] sm:%s563] %v828
        %v830 = vld [vmem:[%s570 + $0x280] sm:%s563]
        %831 = vst [vmem:[%s571 + $0x204] sm:%s563] %v830
        %v832 = vld [vmem:[%s570 + $0x204] sm:%s563]
        %833 = vst [vmem:[%s571 + $0x208] sm:%s563] %v832
        %v834 = vld [vmem:[%s570 + $0x284] sm:%s563]
        %835 = vst [vmem:[%s571 + $0x20c] sm:%s563] %v834
        %v836 = vld [vmem:[%s570 + $0x208] sm:%s563]
        %837 = vst [vmem:[%s571 + $0x210] sm:%s563] %v836
        %v838 = vld [vmem:[%s570 + $0x288] sm:%s563]
        %839 = vst [vmem:[%s571 + $0x214] sm:%s563] %v838
        %v840 = vld [vmem:[%s570 + $0x20c] sm:%s563]
        %841 = vst [vmem:[%s571 + $0x218] sm:%s563] %v840
        %v842 = vld [vmem:[%s570 + $0x28c] sm:%s563]
        %843 = vst [vmem:[%s571 + $0x21c] sm:%s563] %v842
        %v844 = vld [vmem:[%s570 + $0x210] sm:%s563]
        %845 = vst [vmem:[%s571 + $0x220] sm:%s563] %v844
        %v846 = vld [vmem:[%s570 + $0x290] sm:%s563]
        %847 = vst [vmem:[%s571 + $0x224] sm:%s563] %v846
        %v848 = vld [vmem:[%s570 + $0x214] sm:%s563]
        %849 = vst [vmem:[%s571 + $0x228] sm:%s563] %v848
        %v850 = vld [vmem:[%s570 + $0x294] sm:%s563]
        %851 = vst [vmem:[%s571 + $0x22c] sm:%s563] %v850
        %v852 = vld [vmem:[%s570 + $0x218] sm:%s563]
        %853 = vst [vmem:[%s571 + $0x230] sm:%s563] %v852
        %v854 = vld [vmem:[%s570 + $0x298] sm:%s563]
        %855 = vst [vmem:[%s571 + $0x234] sm:%s563] %v854
        %v856 = vld [vmem:[%s570 + $0x21c] sm:%s563]
        %857 = vst [vmem:[%s571 + $0x238] sm:%s563] %v856
        %v858 = vld [vmem:[%s570 + $0x29c] sm:%s563]
        %859 = vst [vmem:[%s571 + $0x23c] sm:%s563] %v858
        %v860 = vld [vmem:[%s570 + $0x220] sm:%s563]
        %861 = vst [vmem:[%s571 + $0x240] sm:%s563] %v860
        %v862 = vld [vmem:[%s570 + $0x2a0] sm:%s563]
        %863 = vst [vmem:[%s571 + $0x244] sm:%s563] %v862
        %v864 = vld [vmem:[%s570 + $0x224] sm:%s563]
        %865 = vst [vmem:[%s571 + $0x248] sm:%s563] %v864
        %v866 = vld [vmem:[%s570 + $0x2a4] sm:%s563]
        %867 = vst [vmem:[%s571 + $0x24c] sm:%s563] %v866
        %v868 = vld [vmem:[%s570 + $0x228] sm:%s563]
        %869 = vst [vmem:[%s571 + $0x250] sm:%s563] %v868
        %v870 = vld [vmem:[%s570 + $0x2a8] sm:%s563]
        %871 = vst [vmem:[%s571 + $0x254] sm:%s563] %v870
        %v872 = vld [vmem:[%s570 + $0x22c] sm:%s563]
        %873 = vst [vmem:[%s571 + $0x258] sm:%s563] %v872
        %v874 = vld [vmem:[%s570 + $0x2ac] sm:%s563]
        %875 = vst [vmem:[%s571 + $0x25c] sm:%s563] %v874
        %v876 = vld [vmem:[%s570 + $0x230] sm:%s563]
        %877 = vst [vmem:[%s571 + $0x260] sm:%s563] %v876
        %v878 = vld [vmem:[%s570 + $0x2b0] sm:%s563]
        %879 = vst [vmem:[%s571 + $0x264] sm:%s563] %v878
        %v880 = vld [vmem:[%s570 + $0x234] sm:%s563]
        %881 = vst [vmem:[%s571 + $0x268] sm:%s563] %v880
        %v882 = vld [vmem:[%s570 + $0x2b4] sm:%s563]
        %883 = vst [vmem:[%s571 + $0x26c] sm:%s563] %v882
        %v884 = vld [vmem:[%s570 + $0x238] sm:%s563]
        %885 = vst [vmem:[%s571 + $0x270] sm:%s563] %v884
        %v886 = vld [vmem:[%s570 + $0x2b8] sm:%s563]
        %887 = vst [vmem:[%s571 + $0x274] sm:%s563] %v886
        %v888 = vld [vmem:[%s570 + $0x23c] sm:%s563]
        %889 = vst [vmem:[%s571 + $0x278] sm:%s563] %v888
        %v890 = vld [vmem:[%s570 + $0x2bc] sm:%s563]
        %891 = vst [vmem:[%s571 + $0x27c] sm:%s563] %v890
        %v892 = vld [vmem:[%s570 + $0x240] sm:%s563]
        %893 = vst [vmem:[%s571 + $0x280] sm:%s563] %v892
        %v894 = vld [vmem:[%s570 + $0x2c0] sm:%s563]
        %895 = vst [vmem:[%s571 + $0x284] sm:%s563] %v894
        %v896 = vld [vmem:[%s570 + $0x244] sm:%s563]
        %897 = vst [vmem:[%s571 + $0x288] sm:%s563] %v896
        %v898 = vld [vmem:[%s570 + $0x2c4] sm:%s563]
        %899 = vst [vmem:[%s571 + $0x28c] sm:%s563] %v898
        %v900 = vld [vmem:[%s570 + $0x248] sm:%s563]
        %901 = vst [vmem:[%s571 + $0x290] sm:%s563] %v900
        %v902 = vld [vmem:[%s570 + $0x2c8] sm:%s563]
        %903 = vst [vmem:[%s571 + $0x294] sm:%s563] %v902
        %v904 = vld [vmem:[%s570 + $0x24c] sm:%s563]
        %905 = vst [vmem:[%s571 + $0x298] sm:%s563] %v904
        %v906 = vld [vmem:[%s570 + $0x2cc] sm:%s563]
        %907 = vst [vmem:[%s571 + $0x29c] sm:%s563] %v906
        %v908 = vld [vmem:[%s570 + $0x250] sm:%s563]
        %909 = vst [vmem:[%s571 + $0x2a0] sm:%s563] %v908
        %v910 = vld [vmem:[%s570 + $0x2d0] sm:%s563]
        %911 = vst [vmem:[%s571 + $0x2a4] sm:%s563] %v910
        %v912 = vld [vmem:[%s570 + $0x254] sm:%s563]
        %913 = vst [vmem:[%s571 + $0x2a8] sm:%s563] %v912
        %v914 = vld [vmem:[%s570 + $0x2d4] sm:%s563]
        %915 = vst [vmem:[%s571 + $0x2ac] sm:%s563] %v914
        %v916 = vld [vmem:[%s570 + $0x258] sm:%s563]
        %917 = vst [vmem:[%s571 + $0x2b0] sm:%s563] %v916
        %v918 = vld [vmem:[%s570 + $0x2d8] sm:%s563]
        %919 = vst [vmem:[%s571 + $0x2b4] sm:%s563] %v918
        %v920 = vld [vmem:[%s570 + $0x25c] sm:%s563]
        %921 = vst [vmem:[%s571 + $0x2b8] sm:%s563] %v920
        %v922 = vld [vmem:[%s570 + $0x2dc] sm:%s563]
        %923 = vst [vmem:[%s571 + $0x2bc] sm:%s563] %v922
        %v924 = vld [vmem:[%s570 + $0x260] sm:%s563]
        %925 = vst [vmem:[%s571 + $0x2c0] sm:%s563] %v924
        %v926 = vld [vmem:[%s570 + $0x2e0] sm:%s563]
        %927 = vst [vmem:[%s571 + $0x2c4] sm:%s563] %v926
        %v928 = vld [vmem:[%s570 + $0x264] sm:%s563]
        %929 = vst [vmem:[%s571 + $0x2c8] sm:%s563] %v928
        %v930 = vld [vmem:[%s570 + $0x2e4] sm:%s563]
        %931 = vst [vmem:[%s571 + $0x2cc] sm:%s563] %v930
        %v932 = vld [vmem:[%s570 + $0x268] sm:%s563]
        %933 = vst [vmem:[%s571 + $0x2d0] sm:%s563] %v932
        %v934 = vld [vmem:[%s570 + $0x2e8] sm:%s563]
        %935 = vst [vmem:[%s571 + $0x2d4] sm:%s563] %v934
        %v936 = vld [vmem:[%s570 + $0x26c] sm:%s563]
        %937 = vst [vmem:[%s571 + $0x2d8] sm:%s563] %v936
        %v938 = vld [vmem:[%s570 + $0x2ec] sm:%s563]
        %939 = vst [vmem:[%s571 + $0x2dc] sm:%s563] %v938
        %v940 = vld [vmem:[%s570 + $0x270] sm:%s563]
        %941 = vst [vmem:[%s571 + $0x2e0] sm:%s563] %v940
        %v942 = vld [vmem:[%s570 + $0x2f0] sm:%s563]
        %943 = vst [vmem:[%s571 + $0x2e4] sm:%s563] %v942
        %v944 = vld [vmem:[%s570 + $0x274] sm:%s563]
        %945 = vst [vmem:[%s571 + $0x2e8] sm:%s563] %v944
        %v946 = vld [vmem:[%s570 + $0x2f4] sm:%s563]
        %947 = vst [vmem:[%s571 + $0x2ec] sm:%s563] %v946
        %v948 = vld [vmem:[%s570 + $0x278] sm:%s563]
        %949 = vst [vmem:[%s571 + $0x2f0] sm:%s563] %v948
        %v950 = vld [vmem:[%s570 + $0x2f8] sm:%s563]
        %951 = vst [vmem:[%s571 + $0x2f4] sm:%s563] %v950
        %v952 = vld [vmem:[%s570 + $0x27c] sm:%s563]
        %953 = vst [vmem:[%s571 + $0x2f8] sm:%s563] %v952
        %v954 = vld [vmem:[%s570 + $0x2fc] sm:%s563]
        %955 = vst [vmem:[%s571 + $0x2fc] sm:%s563] %v954
        %v956 = vld [vmem:[%s570 + $0x300] sm:%s563]
        %957 = vst [vmem:[%s571 + $0x300] sm:%s563] %v956
        %v958 = vld [vmem:[%s570 + $0x380] sm:%s563]
        %959 = vst [vmem:[%s571 + $0x304] sm:%s563] %v958
        %v960 = vld [vmem:[%s570 + $0x304] sm:%s563]
        %961 = vst [vmem:[%s571 + $0x308] sm:%s563] %v960
        %v962 = vld [vmem:[%s570 + $0x384] sm:%s563]
        %963 = vst [vmem:[%s571 + $0x30c] sm:%s563] %v962
        %v964 = vld [vmem:[%s570 + $0x308] sm:%s563]
        %965 = vst [vmem:[%s571 + $0x310] sm:%s563] %v964
        %v966 = vld [vmem:[%s570 + $0x388] sm:%s563]
        %967 = vst [vmem:[%s571 + $0x314] sm:%s563] %v966
        %v968 = vld [vmem:[%s570 + $0x30c] sm:%s563]
        %969 = vst [vmem:[%s571 + $0x318] sm:%s563] %v968
        %v970 = vld [vmem:[%s570 + $0x38c] sm:%s563]
        %971 = vst [vmem:[%s571 + $0x31c] sm:%s563] %v970
        %v972 = vld [vmem:[%s570 + $0x310] sm:%s563]
        %973 = vst [vmem:[%s571 + $0x320] sm:%s563] %v972
        %v974 = vld [vmem:[%s570 + $0x390] sm:%s563]
        %975 = vst [vmem:[%s571 + $0x324] sm:%s563] %v974
        %v976 = vld [vmem:[%s570 + $0x314] sm:%s563]
        %977 = vst [vmem:[%s571 + $0x328] sm:%s563] %v976
        %v978 = vld [vmem:[%s570 + $0x394] sm:%s563]
        %979 = vst [vmem:[%s571 + $0x32c] sm:%s563] %v978
        %v980 = vld [vmem:[%s570 + $0x318] sm:%s563]
        %981 = vst [vmem:[%s571 + $0x330] sm:%s563] %v980
        %v982 = vld [vmem:[%s570 + $0x398] sm:%s563]
        %983 = vst [vmem:[%s571 + $0x334] sm:%s563] %v982
        %v984 = vld [vmem:[%s570 + $0x31c] sm:%s563]
        %985 = vst [vmem:[%s571 + $0x338] sm:%s563] %v984
        %v986 = vld [vmem:[%s570 + $0x39c] sm:%s563]
        %987 = vst [vmem:[%s571 + $0x33c] sm:%s563] %v986
        %v988 = vld [vmem:[%s570 + $0x320] sm:%s563]
        %989 = vst [vmem:[%s571 + $0x340] sm:%s563] %v988
        %v990 = vld [vmem:[%s570 + $0x3a0] sm:%s563]
        %991 = vst [vmem:[%s571 + $0x344] sm:%s563] %v990
        %v992 = vld [vmem:[%s570 + $0x324] sm:%s563]
        %993 = vst [vmem:[%s571 + $0x348] sm:%s563] %v992
        %v994 = vld [vmem:[%s570 + $0x3a4] sm:%s563]
        %995 = vst [vmem:[%s571 + $0x34c] sm:%s563] %v994
        %v996 = vld [vmem:[%s570 + $0x328] sm:%s563]
        %997 = vst [vmem:[%s571 + $0x350] sm:%s563] %v996
        %v998 = vld [vmem:[%s570 + $0x3a8] sm:%s563]
        %999 = vst [vmem:[%s571 + $0x354] sm:%s563] %v998
        %v1000 = vld [vmem:[%s570 + $0x32c] sm:%s563]
        %1001 = vst [vmem:[%s571 + $0x358] sm:%s563] %v1000
        %v1002 = vld [vmem:[%s570 + $0x3ac] sm:%s563]
        %1003 = vst [vmem:[%s571 + $0x35c] sm:%s563] %v1002
        %v1004 = vld [vmem:[%s570 + $0x330] sm:%s563]
        %1005 = vst [vmem:[%s571 + $0x360] sm:%s563] %v1004
        %v1006 = vld [vmem:[%s570 + $0x3b0] sm:%s563]
        %1007 = vst [vmem:[%s571 + $0x364] sm:%s563] %v1006
        %v1008 = vld [vmem:[%s570 + $0x334] sm:%s563]
        %1009 = vst [vmem:[%s571 + $0x368] sm:%s563] %v1008
        %v1010 = vld [vmem:[%s570 + $0x3b4] sm:%s563]
        %1011 = vst [vmem:[%s571 + $0x36c] sm:%s563] %v1010
        %v1012 = vld [vmem:[%s570 + $0x338] sm:%s563]
        %1013 = vst [vmem:[%s571 + $0x370] sm:%s563] %v1012
        %v1014 = vld [vmem:[%s570 + $0x3b8] sm:%s563]
        %1015 = vst [vmem:[%s571 + $0x374] sm:%s563] %v1014
        %v1016 = vld [vmem:[%s570 + $0x33c] sm:%s563]
        %1017 = vst [vmem:[%s571 + $0x378] sm:%s563] %v1016
        %v1018 = vld [vmem:[%s570 + $0x3bc] sm:%s563]
        %1019 = vst [vmem:[%s571 + $0x37c] sm:%s563] %v1018
        %v1020 = vld [vmem:[%s570 + $0x340] sm:%s563]
        %1021 = vst [vmem:[%s571 + $0x380] sm:%s563] %v1020
        %v1022 = vld [vmem:[%s570 + $0x3c0] sm:%s563]
        %1023 = vst [vmem:[%s571 + $0x384] sm:%s563] %v1022
        %v1024 = vld [vmem:[%s570 + $0x344] sm:%s563]
        %1025 = vst [vmem:[%s571 + $0x388] sm:%s563] %v1024
        %v1026 = vld [vmem:[%s570 + $0x3c4] sm:%s563]
        %1027 = vst [vmem:[%s571 + $0x38c] sm:%s563] %v1026
        %v1028 = vld [vmem:[%s570 + $0x348] sm:%s563]
        %1029 = vst [vmem:[%s571 + $0x390] sm:%s563] %v1028
        %v1030 = vld [vmem:[%s570 + $0x3c8] sm:%s563]
        %1031 = vst [vmem:[%s571 + $0x394] sm:%s563] %v1030
        %v1032 = vld [vmem:[%s570 + $0x34c] sm:%s563]
        %1033 = vst [vmem:[%s571 + $0x398] sm:%s563] %v1032
        %v1034 = vld [vmem:[%s570 + $0x3cc] sm:%s563]
        %1035 = vst [vmem:[%s571 + $0x39c] sm:%s563] %v1034
        %v1036 = vld [vmem:[%s570 + $0x350] sm:%s563]
        %1037 = vst [vmem:[%s571 + $0x3a0] sm:%s563] %v1036
        %v1038 = vld [vmem:[%s570 + $0x3d0] sm:%s563]
        %1039 = vst [vmem:[%s571 + $0x3a4] sm:%s563] %v1038
        %v1040 = vld [vmem:[%s570 + $0x354] sm:%s563]
        %1041 = vst [vmem:[%s571 + $0x3a8] sm:%s563] %v1040
        %v1042 = vld [vmem:[%s570 + $0x3d4] sm:%s563]
        %1043 = vst [vmem:[%s571 + $0x3ac] sm:%s563] %v1042
        %v1044 = vld [vmem:[%s570 + $0x358] sm:%s563]
        %1045 = vst [vmem:[%s571 + $0x3b0] sm:%s563] %v1044
        %v1046 = vld [vmem:[%s570 + $0x3d8] sm:%s563]
        %1047 = vst [vmem:[%s571 + $0x3b4] sm:%s563] %v1046
        %v1048 = vld [vmem:[%s570 + $0x35c] sm:%s563]
        %1049 = vst [vmem:[%s571 + $0x3b8] sm:%s563] %v1048
        %v1050 = vld [vmem:[%s570 + $0x3dc] sm:%s563]
        %1051 = vst [vmem:[%s571 + $0x3bc] sm:%s563] %v1050
        %v1052 = vld [vmem:[%s570 + $0x360] sm:%s563]
        %1053 = vst [vmem:[%s571 + $0x3c0] sm:%s563] %v1052
        %v1054 = vld [vmem:[%s570 + $0x3e0] sm:%s563]
        %1055 = vst [vmem:[%s571 + $0x3c4] sm:%s563] %v1054
        %v1056 = vld [vmem:[%s570 + $0x364] sm:%s563]
        %1057 = vst [vmem:[%s571 + $0x3c8] sm:%s563] %v1056
        %v1058 = vld [vmem:[%s570 + $0x3e4] sm:%s563]
        %1059 = vst [vmem:[%s571 + $0x3cc] sm:%s563] %v1058
        %v1060 = vld [vmem:[%s570 + $0x368] sm:%s563]
        %1061 = vst [vmem:[%s571 + $0x3d0] sm:%s563] %v1060
        %v1062 = vld [vmem:[%s570 + $0x3e8] sm:%s563]
        %1063 = vst [vmem:[%s571 + $0x3d4] sm:%s563] %v1062
        %v1064 = vld [vmem:[%s570 + $0x36c] sm:%s563]
        %1065 = vst [vmem:[%s571 + $0x3d8] sm:%s563] %v1064
        %v1066 = vld [vmem:[%s570 + $0x3ec] sm:%s563]
        %1067 = vst [vmem:[%s571 + $0x3dc] sm:%s563] %v1066
        %v1068 = vld [vmem:[%s570 + $0x370] sm:%s563]
        %1069 = vst [vmem:[%s571 + $0x3e0] sm:%s563] %v1068
        %v1070 = vld [vmem:[%s570 + $0x3f0] sm:%s563]
        %1071 = vst [vmem:[%s571 + $0x3e4] sm:%s563] %v1070
        %v1072 = vld [vmem:[%s570 + $0x374] sm:%s563]
        %1073 = vst [vmem:[%s571 + $0x3e8] sm:%s563] %v1072
        %v1074 = vld [vmem:[%s570 + $0x3f4] sm:%s563]
        %1075 = vst [vmem:[%s571 + $0x3ec] sm:%s563] %v1074
        %v1076 = vld [vmem:[%s570 + $0x378] sm:%s563]
        %1077 = vst [vmem:[%s571 + $0x3f0] sm:%s563] %v1076
        %v1078 = vld [vmem:[%s570 + $0x3f8] sm:%s563]
        %1079 = vst [vmem:[%s571 + $0x3f4] sm:%s563] %v1078
        %v1080 = vld [vmem:[%s570 + $0x37c] sm:%s563]
        %1081 = vst [vmem:[%s571 + $0x3f8] sm:%s563] %v1080
        %v1082 = vld [vmem:[%s570 + $0x3fc] sm:%s563]
        %1083 = vst [vmem:[%s571 + $0x3fc] sm:%s563] %v1082
      $region44: #{discriminator_forward.1} parent=31 // loop_footer
        %s569 = sadd.s32 1, %s565
      $region45: #{discriminator_forward.1} parent=31 // loop_footer_branch
        %564 = sbr.rel target = $region41
      $region46: #{discriminator_forward.1} parent=31 // loop_exit
        _
    $region32: #{discriminator_forward.1} parent=16 // pred_fallthru
      _
  $region17: #{discriminator_forward.1} parent=0 // pred_fallthru
    _
  // Predicated region
  $region18: #{discriminator_forward.1} parent=0 // pred_check
    %p21 = pneg %p17
  $region19: #{discriminator_forward.1} parent=0 // pred_check_branch
    %23 = sbr.rel (%p21) target = $region21
  $region20: #{discriminator_forward.1} parent=0 // pred_region
    %s24 = sshllo.u32 0, 4
    loop: start=0, step=1, limit=1
    $region22: #{discriminator_forward.1} parent=20 // loop_pre_header
      _
    $region23: #{discriminator_forward.1} parent=20 // loop_header
      %s26 = sphi 0, %s30
      %p27 = scmp.ge.s32.totalorder %s26, 1
      %s31 = sphi %s3, %s3
      %s32 = sphi [#allocation2], [#allocation2]
    $region24: #{discriminator_forward.1} parent=20 // loop_header_branch
      %29 = sbr.rel (%p27) target = $region28
    $region25: #{discriminator_forward.1} parent=20 // loop_body
      %v33 = vld [vmem:[%s31] sm:%s24]
      %34 = vst [vmem:[%s32] sm:%s24] %v33
      %v35 = vld [vmem:[%s31 + $0x80] sm:%s24]
      %36 = vst [vmem:[%s32 + $0x4] sm:%s24] %v35
      %v37 = vld [vmem:[%s31 + $0x4] sm:%s24]
      %38 = vst [vmem:[%s32 + $0x8] sm:%s24] %v37
      %v39 = vld [vmem:[%s31 + $0x84] sm:%s24]
      %40 = vst [vmem:[%s32 + $0xc] sm:%s24] %v39
      %v41 = vld [vmem:[%s31 + $0x8] sm:%s24]
      %42 = vst [vmem:[%s32 + $0x10] sm:%s24] %v41
      %v43 = vld [vmem:[%s31 + $0x88] sm:%s24]
      %44 = vst [vmem:[%s32 + $0x14] sm:%s24] %v43
      %v45 = vld [vmem:[%s31 + $0xc] sm:%s24]
      %46 = vst [vmem:[%s32 + $0x18] sm:%s24] %v45
      %v47 = vld [vmem:[%s31 + $0x8c] sm:%s24]
      %48 = vst [vmem:[%s32 + $0x1c] sm:%s24] %v47
      %v49 = vld [vmem:[%s31 + $0x10] sm:%s24]
      %50 = vst [vmem:[%s32 + $0x20] sm:%s24] %v49
      %v51 = vld [vmem:[%s31 + $0x90] sm:%s24]
      %52 = vst [vmem:[%s32 + $0x24] sm:%s24] %v51
      %v53 = vld [vmem:[%s31 + $0x14] sm:%s24]
      %54 = vst [vmem:[%s32 + $0x28] sm:%s24] %v53
      %v55 = vld [vmem:[%s31 + $0x94] sm:%s24]
      %56 = vst [vmem:[%s32 + $0x2c] sm:%s24] %v55
      %v57 = vld [vmem:[%s31 + $0x18] sm:%s24]
      %58 = vst [vmem:[%s32 + $0x30] sm:%s24] %v57
      %v59 = vld [vmem:[%s31 + $0x98] sm:%s24]
      %60 = vst [vmem:[%s32 + $0x34] sm:%s24] %v59
      %v61 = vld [vmem:[%s31 + $0x1c] sm:%s24]
      %62 = vst [vmem:[%s32 + $0x38] sm:%s24] %v61
      %v63 = vld [vmem:[%s31 + $0x9c] sm:%s24]
      %64 = vst [vmem:[%s32 + $0x3c] sm:%s24] %v63
      %v65 = vld [vmem:[%s31 + $0x20] sm:%s24]
      %66 = vst [vmem:[%s32 + $0x40] sm:%s24] %v65
      %v67 = vld [vmem:[%s31 + $0xa0] sm:%s24]
      %68 = vst [vmem:[%s32 + $0x44] sm:%s24] %v67
      %v69 = vld [vmem:[%s31 + $0x24] sm:%s24]
      %70 = vst [vmem:[%s32 + $0x48] sm:%s24] %v69
      %v71 = vld [vmem:[%s31 + $0xa4] sm:%s24]
      %72 = vst [vmem:[%s32 + $0x4c] sm:%s24] %v71
      %v73 = vld [vmem:[%s31 + $0x28] sm:%s24]
      %74 = vst [vmem:[%s32 + $0x50] sm:%s24] %v73
      %v75 = vld [vmem:[%s31 + $0xa8] sm:%s24]
      %76 = vst [vmem:[%s32 + $0x54] sm:%s24] %v75
      %v77 = vld [vmem:[%s31 + $0x2c] sm:%s24]
      %78 = vst [vmem:[%s32 + $0x58] sm:%s24] %v77
      %v79 = vld [vmem:[%s31 + $0xac] sm:%s24]
      %80 = vst [vmem:[%s32 + $0x5c] sm:%s24] %v79
      %v81 = vld [vmem:[%s31 + $0x30] sm:%s24]
      %82 = vst [vmem:[%s32 + $0x60] sm:%s24] %v81
      %v83 = vld [vmem:[%s31 + $0xb0] sm:%s24]
      %84 = vst [vmem:[%s32 + $0x64] sm:%s24] %v83
      %v85 = vld [vmem:[%s31 + $0x34] sm:%s24]
      %86 = vst [vmem:[%s32 + $0x68] sm:%s24] %v85
      %v87 = vld [vmem:[%s31 + $0xb4] sm:%s24]
      %88 = vst [vmem:[%s32 + $0x6c] sm:%s24] %v87
      %v89 = vld [vmem:[%s31 + $0x38] sm:%s24]
      %90 = vst [vmem:[%s32 + $0x70] sm:%s24] %v89
      %v91 = vld [vmem:[%s31 + $0xb8] sm:%s24]
      %92 = vst [vmem:[%s32 + $0x74] sm:%s24] %v91
      %v93 = vld [vmem:[%s31 + $0x3c] sm:%s24]
      %94 = vst [vmem:[%s32 + $0x78] sm:%s24] %v93
      %v95 = vld [vmem:[%s31 + $0xbc] sm:%s24]
      %96 = vst [vmem:[%s32 + $0x7c] sm:%s24] %v95
      %v97 = vld [vmem:[%s31 + $0x40] sm:%s24]
      %98 = vst [vmem:[%s32 + $0x80] sm:%s24] %v97
      %v99 = vld [vmem:[%s31 + $0xc0] sm:%s24]
      %100 = vst [vmem:[%s32 + $0x84] sm:%s24] %v99
      %v101 = vld [vmem:[%s31 + $0x44] sm:%s24]
      %102 = vst [vmem:[%s32 + $0x88] sm:%s24] %v101
      %v103 = vld [vmem:[%s31 + $0xc4] sm:%s24]
      %104 = vst [vmem:[%s32 + $0x8c] sm:%s24] %v103
      %v105 = vld [vmem:[%s31 + $0x48] sm:%s24]
      %106 = vst [vmem:[%s32 + $0x90] sm:%s24] %v105
      %v107 = vld [vmem:[%s31 + $0xc8] sm:%s24]
      %108 = vst [vmem:[%s32 + $0x94] sm:%s24] %v107
      %v109 = vld [vmem:[%s31 + $0x4c] sm:%s24]
      %110 = vst [vmem:[%s32 + $0x98] sm:%s24] %v109
      %v111 = vld [vmem:[%s31 + $0xcc] sm:%s24]
      %112 = vst [vmem:[%s32 + $0x9c] sm:%s24] %v111
      %v113 = vld [vmem:[%s31 + $0x50] sm:%s24]
      %114 = vst [vmem:[%s32 + $0xa0] sm:%s24] %v113
      %v115 = vld [vmem:[%s31 + $0xd0] sm:%s24]
      %116 = vst [vmem:[%s32 + $0xa4] sm:%s24] %v115
      %v117 = vld [vmem:[%s31 + $0x54] sm:%s24]
      %118 = vst [vmem:[%s32 + $0xa8] sm:%s24] %v117
      %v119 = vld [vmem:[%s31 + $0xd4] sm:%s24]
      %120 = vst [vmem:[%s32 + $0xac] sm:%s24] %v119
      %v121 = vld [vmem:[%s31 + $0x58] sm:%s24]
      %122 = vst [vmem:[%s32 + $0xb0] sm:%s24] %v121
      %v123 = vld [vmem:[%s31 + $0xd8] sm:%s24]
      %124 = vst [vmem:[%s32 + $0xb4] sm:%s24] %v123
      %v125 = vld [vmem:[%s31 + $0x5c] sm:%s24]
      %126 = vst [vmem:[%s32 + $0xb8] sm:%s24] %v125
      %v127 = vld [vmem:[%s31 + $0xdc] sm:%s24]
      %128 = vst [vmem:[%s32 + $0xbc] sm:%s24] %v127
      %v129 = vld [vmem:[%s31 + $0x60] sm:%s24]
      %130 = vst [vmem:[%s32 + $0xc0] sm:%s24] %v129
      %v131 = vld [vmem:[%s31 + $0xe0] sm:%s24]
      %132 = vst [vmem:[%s32 + $0xc4] sm:%s24] %v131
      %v133 = vld [vmem:[%s31 + $0x64] sm:%s24]
      %134 = vst [vmem:[%s32 + $0xc8] sm:%s24] %v133
      %v135 = vld [vmem:[%s31 + $0xe4] sm:%s24]
      %136 = vst [vmem:[%s32 + $0xcc] sm:%s24] %v135
      %v137 = vld [vmem:[%s31 + $0x68] sm:%s24]
      %138 = vst [vmem:[%s32 + $0xd0] sm:%s24] %v137
      %v139 = vld [vmem:[%s31 + $0xe8] sm:%s24]
      %140 = vst [vmem:[%s32 + $0xd4] sm:%s24] %v139
      %v141 = vld [vmem:[%s31 + $0x6c] sm:%s24]
      %142 = vst [vmem:[%s32 + $0xd8] sm:%s24] %v141
      %v143 = vld [vmem:[%s31 + $0xec] sm:%s24]
      %144 = vst [vmem:[%s32 + $0xdc] sm:%s24] %v143
      %v145 = vld [vmem:[%s31 + $0x70] sm:%s24]
      %146 = vst [vmem:[%s32 + $0xe0] sm:%s24] %v145
      %v147 = vld [vmem:[%s31 + $0xf0] sm:%s24]
      %148 = vst [vmem:[%s32 + $0xe4] sm:%s24] %v147
      %v149 = vld [vmem:[%s31 + $0x74] sm:%s24]
      %150 = vst [vmem:[%s32 + $0xe8] sm:%s24] %v149
      %v151 = vld [vmem:[%s31 + $0xf4] sm:%s24]
      %152 = vst [vmem:[%s32 + $0xec] sm:%s24] %v151
      %v153 = vld [vmem:[%s31 + $0x78] sm:%s24]
      %154 = vst [vmem:[%s32 + $0xf0] sm:%s24] %v153
      %v155 = vld [vmem:[%s31 + $0xf8] sm:%s24]
      %156 = vst [vmem:[%s32 + $0xf4] sm:%s24] %v155
      %v157 = vld [vmem:[%s31 + $0x7c] sm:%s24]
      %158 = vst [vmem:[%s32 + $0xf8] sm:%s24] %v157
      %v159 = vld [vmem:[%s31 + $0xfc] sm:%s24]
      %160 = vst [vmem:[%s32 + $0xfc] sm:%s24] %v159
      %v161 = vld [vmem:[%s31 + $0x100] sm:%s24]
      %162 = vst [vmem:[%s32 + $0x100] sm:%s24] %v161
      %v163 = vld [vmem:[%s31 + $0x180] sm:%s24]
      %164 = vst [vmem:[%s32 + $0x104] sm:%s24] %v163
      %v165 = vld [vmem:[%s31 + $0x104] sm:%s24]
      %166 = vst [vmem:[%s32 + $0x108] sm:%s24] %v165
      %v167 = vld [vmem:[%s31 + $0x184] sm:%s24]
      %168 = vst [vmem:[%s32 + $0x10c] sm:%s24] %v167
      %v169 = vld [vmem:[%s31 + $0x108] sm:%s24]
      %170 = vst [vmem:[%s32 + $0x110] sm:%s24] %v169
      %v171 = vld [vmem:[%s31 + $0x188] sm:%s24]
      %172 = vst [vmem:[%s32 + $0x114] sm:%s24] %v171
      %v173 = vld [vmem:[%s31 + $0x10c] sm:%s24]
      %174 = vst [vmem:[%s32 + $0x118] sm:%s24] %v173
      %v175 = vld [vmem:[%s31 + $0x18c] sm:%s24]
      %176 = vst [vmem:[%s32 + $0x11c] sm:%s24] %v175
      %v177 = vld [vmem:[%s31 + $0x110] sm:%s24]
      %178 = vst [vmem:[%s32 + $0x120] sm:%s24] %v177
      %v179 = vld [vmem:[%s31 + $0x190] sm:%s24]
      %180 = vst [vmem:[%s32 + $0x124] sm:%s24] %v179
      %v181 = vld [vmem:[%s31 + $0x114] sm:%s24]
      %182 = vst [vmem:[%s32 + $0x128] sm:%s24] %v181
      %v183 = vld [vmem:[%s31 + $0x194] sm:%s24]
      %184 = vst [vmem:[%s32 + $0x12c] sm:%s24] %v183
      %v185 = vld [vmem:[%s31 + $0x118] sm:%s24]
      %186 = vst [vmem:[%s32 + $0x130] sm:%s24] %v185
      %v187 = vld [vmem:[%s31 + $0x198] sm:%s24]
      %188 = vst [vmem:[%s32 + $0x134] sm:%s24] %v187
      %v189 = vld [vmem:[%s31 + $0x11c] sm:%s24]
      %190 = vst [vmem:[%s32 + $0x138] sm:%s24] %v189
      %v191 = vld [vmem:[%s31 + $0x19c] sm:%s24]
      %192 = vst [vmem:[%s32 + $0x13c] sm:%s24] %v191
      %v193 = vld [vmem:[%s31 + $0x120] sm:%s24]
      %194 = vst [vmem:[%s32 + $0x140] sm:%s24] %v193
      %v195 = vld [vmem:[%s31 + $0x1a0] sm:%s24]
      %196 = vst [vmem:[%s32 + $0x144] sm:%s24] %v195
      %v197 = vld [vmem:[%s31 + $0x124] sm:%s24]
      %198 = vst [vmem:[%s32 + $0x148] sm:%s24] %v197
      %v199 = vld [vmem:[%s31 + $0x1a4] sm:%s24]
      %200 = vst [vmem:[%s32 + $0x14c] sm:%s24] %v199
      %v201 = vld [vmem:[%s31 + $0x128] sm:%s24]
      %202 = vst [vmem:[%s32 + $0x150] sm:%s24] %v201
      %v203 = vld [vmem:[%s31 + $0x1a8] sm:%s24]
      %204 = vst [vmem:[%s32 + $0x154] sm:%s24] %v203
      %v205 = vld [vmem:[%s31 + $0x12c] sm:%s24]
      %206 = vst [vmem:[%s32 + $0x158] sm:%s24] %v205
      %v207 = vld [vmem:[%s31 + $0x1ac] sm:%s24]
      %208 = vst [vmem:[%s32 + $0x15c] sm:%s24] %v207
      %v209 = vld [vmem:[%s31 + $0x130] sm:%s24]
      %210 = vst [vmem:[%s32 + $0x160] sm:%s24] %v209
      %v211 = vld [vmem:[%s31 + $0x1b0] sm:%s24]
      %212 = vst [vmem:[%s32 + $0x164] sm:%s24] %v211
      %v213 = vld [vmem:[%s31 + $0x134] sm:%s24]
      %214 = vst [vmem:[%s32 + $0x168] sm:%s24] %v213
      %v215 = vld [vmem:[%s31 + $0x1b4] sm:%s24]
      %216 = vst [vmem:[%s32 + $0x16c] sm:%s24] %v215
      %v217 = vld [vmem:[%s31 + $0x138] sm:%s24]
      %218 = vst [vmem:[%s32 + $0x170] sm:%s24] %v217
      %v219 = vld [vmem:[%s31 + $0x1b8] sm:%s24]
      %220 = vst [vmem:[%s32 + $0x174] sm:%s24] %v219
      %v221 = vld [vmem:[%s31 + $0x13c] sm:%s24]
      %222 = vst [vmem:[%s32 + $0x178] sm:%s24] %v221
      %v223 = vld [vmem:[%s31 + $0x1bc] sm:%s24]
      %224 = vst [vmem:[%s32 + $0x17c] sm:%s24] %v223
      %v225 = vld [vmem:[%s31 + $0x140] sm:%s24]
      %226 = vst [vmem:[%s32 + $0x180] sm:%s24] %v225
      %v227 = vld [vmem:[%s31 + $0x1c0] sm:%s24]
      %228 = vst [vmem:[%s32 + $0x184] sm:%s24] %v227
      %v229 = vld [vmem:[%s31 + $0x144] sm:%s24]
      %230 = vst [vmem:[%s32 + $0x188] sm:%s24] %v229
      %v231 = vld [vmem:[%s31 + $0x1c4] sm:%s24]
      %232 = vst [vmem:[%s32 + $0x18c] sm:%s24] %v231
      %v233 = vld [vmem:[%s31 + $0x148] sm:%s24]
      %234 = vst [vmem:[%s32 + $0x190] sm:%s24] %v233
      %v235 = vld [vmem:[%s31 + $0x1c8] sm:%s24]
      %236 = vst [vmem:[%s32 + $0x194] sm:%s24] %v235
      %v237 = vld [vmem:[%s31 + $0x14c] sm:%s24]
      %238 = vst [vmem:[%s32 + $0x198] sm:%s24] %v237
      %v239 = vld [vmem:[%s31 + $0x1cc] sm:%s24]
      %240 = vst [vmem:[%s32 + $0x19c] sm:%s24] %v239
      %v241 = vld [vmem:[%s31 + $0x150] sm:%s24]
      %242 = vst [vmem:[%s32 + $0x1a0] sm:%s24] %v241
      %v243 = vld [vmem:[%s31 + $0x1d0] sm:%s24]
      %244 = vst [vmem:[%s32 + $0x1a4] sm:%s24] %v243
      %v245 = vld [vmem:[%s31 + $0x154] sm:%s24]
      %246 = vst [vmem:[%s32 + $0x1a8] sm:%s24] %v245
      %v247 = vld [vmem:[%s31 + $0x1d4] sm:%s24]
      %248 = vst [vmem:[%s32 + $0x1ac] sm:%s24] %v247
      %v249 = vld [vmem:[%s31 + $0x158] sm:%s24]
      %250 = vst [vmem:[%s32 + $0x1b0] sm:%s24] %v249
      %v251 = vld [vmem:[%s31 + $0x1d8] sm:%s24]
      %252 = vst [vmem:[%s32 + $0x1b4] sm:%s24] %v251
      %v253 = vld [vmem:[%s31 + $0x15c] sm:%s24]
      %254 = vst [vmem:[%s32 + $0x1b8] sm:%s24] %v253
      %v255 = vld [vmem:[%s31 + $0x1dc] sm:%s24]
      %256 = vst [vmem:[%s32 + $0x1bc] sm:%s24] %v255
      %v257 = vld [vmem:[%s31 + $0x160] sm:%s24]
      %258 = vst [vmem:[%s32 + $0x1c0] sm:%s24] %v257
      %v259 = vld [vmem:[%s31 + $0x1e0] sm:%s24]
      %260 = vst [vmem:[%s32 + $0x1c4] sm:%s24] %v259
      %v261 = vld [vmem:[%s31 + $0x164] sm:%s24]
      %262 = vst [vmem:[%s32 + $0x1c8] sm:%s24] %v261
      %v263 = vld [vmem:[%s31 + $0x1e4] sm:%s24]
      %264 = vst [vmem:[%s32 + $0x1cc] sm:%s24] %v263
      %v265 = vld [vmem:[%s31 + $0x168] sm:%s24]
      %266 = vst [vmem:[%s32 + $0x1d0] sm:%s24] %v265
      %v267 = vld [vmem:[%s31 + $0x1e8] sm:%s24]
      %268 = vst [vmem:[%s32 + $0x1d4] sm:%s24] %v267
      %v269 = vld [vmem:[%s31 + $0x16c] sm:%s24]
      %270 = vst [vmem:[%s32 + $0x1d8] sm:%s24] %v269
      %v271 = vld [vmem:[%s31 + $0x1ec] sm:%s24]
      %272 = vst [vmem:[%s32 + $0x1dc] sm:%s24] %v271
      %v273 = vld [vmem:[%s31 + $0x170] sm:%s24]
      %274 = vst [vmem:[%s32 + $0x1e0] sm:%s24] %v273
      %v275 = vld [vmem:[%s31 + $0x1f0] sm:%s24]
      %276 = vst [vmem:[%s32 + $0x1e4] sm:%s24] %v275
      %v277 = vld [vmem:[%s31 + $0x174] sm:%s24]
      %278 = vst [vmem:[%s32 + $0x1e8] sm:%s24] %v277
      %v279 = vld [vmem:[%s31 + $0x1f4] sm:%s24]
      %280 = vst [vmem:[%s32 + $0x1ec] sm:%s24] %v279
      %v281 = vld [vmem:[%s31 + $0x178] sm:%s24]
      %282 = vst [vmem:[%s32 + $0x1f0] sm:%s24] %v281
      %v283 = vld [vmem:[%s31 + $0x1f8] sm:%s24]
      %284 = vst [vmem:[%s32 + $0x1f4] sm:%s24] %v283
      %v285 = vld [vmem:[%s31 + $0x17c] sm:%s24]
      %286 = vst [vmem:[%s32 + $0x1f8] sm:%s24] %v285
      %v287 = vld [vmem:[%s31 + $0x1fc] sm:%s24]
      %288 = vst [vmem:[%s32 + $0x1fc] sm:%s24] %v287
      %v289 = vld [vmem:[%s31 + $0x200] sm:%s24]
      %290 = vst [vmem:[%s32 + $0x200] sm:%s24] %v289
      %v291 = vld [vmem:[%s31 + $0x280] sm:%s24]
      %292 = vst [vmem:[%s32 + $0x204] sm:%s24] %v291
      %v293 = vld [vmem:[%s31 + $0x204] sm:%s24]
      %294 = vst [vmem:[%s32 + $0x208] sm:%s24] %v293
      %v295 = vld [vmem:[%s31 + $0x284] sm:%s24]
      %296 = vst [vmem:[%s32 + $0x20c] sm:%s24] %v295
      %v297 = vld [vmem:[%s31 + $0x208] sm:%s24]
      %298 = vst [vmem:[%s32 + $0x210] sm:%s24] %v297
      %v299 = vld [vmem:[%s31 + $0x288] sm:%s24]
      %300 = vst [vmem:[%s32 + $0x214] sm:%s24] %v299
      %v301 = vld [vmem:[%s31 + $0x20c] sm:%s24]
      %302 = vst [vmem:[%s32 + $0x218] sm:%s24] %v301
      %v303 = vld [vmem:[%s31 + $0x28c] sm:%s24]
      %304 = vst [vmem:[%s32 + $0x21c] sm:%s24] %v303
      %v305 = vld [vmem:[%s31 + $0x210] sm:%s24]
      %306 = vst [vmem:[%s32 + $0x220] sm:%s24] %v305
      %v307 = vld [vmem:[%s31 + $0x290] sm:%s24]
      %308 = vst [vmem:[%s32 + $0x224] sm:%s24] %v307
      %v309 = vld [vmem:[%s31 + $0x214] sm:%s24]
      %310 = vst [vmem:[%s32 + $0x228] sm:%s24] %v309
      %v311 = vld [vmem:[%s31 + $0x294] sm:%s24]
      %312 = vst [vmem:[%s32 + $0x22c] sm:%s24] %v311
      %v313 = vld [vmem:[%s31 + $0x218] sm:%s24]
      %314 = vst [vmem:[%s32 + $0x230] sm:%s24] %v313
      %v315 = vld [vmem:[%s31 + $0x298] sm:%s24]
      %316 = vst [vmem:[%s32 + $0x234] sm:%s24] %v315
      %v317 = vld [vmem:[%s31 + $0x21c] sm:%s24]
      %318 = vst [vmem:[%s32 + $0x238] sm:%s24] %v317
      %v319 = vld [vmem:[%s31 + $0x29c] sm:%s24]
      %320 = vst [vmem:[%s32 + $0x23c] sm:%s24] %v319
      %v321 = vld [vmem:[%s31 + $0x220] sm:%s24]
      %322 = vst [vmem:[%s32 + $0x240] sm:%s24] %v321
      %v323 = vld [vmem:[%s31 + $0x2a0] sm:%s24]
      %324 = vst [vmem:[%s32 + $0x244] sm:%s24] %v323
      %v325 = vld [vmem:[%s31 + $0x224] sm:%s24]
      %326 = vst [vmem:[%s32 + $0x248] sm:%s24] %v325
      %v327 = vld [vmem:[%s31 + $0x2a4] sm:%s24]
      %328 = vst [vmem:[%s32 + $0x24c] sm:%s24] %v327
      %v329 = vld [vmem:[%s31 + $0x228] sm:%s24]
      %330 = vst [vmem:[%s32 + $0x250] sm:%s24] %v329
      %v331 = vld [vmem:[%s31 + $0x2a8] sm:%s24]
      %332 = vst [vmem:[%s32 + $0x254] sm:%s24] %v331
      %v333 = vld [vmem:[%s31 + $0x22c] sm:%s24]
      %334 = vst [vmem:[%s32 + $0x258] sm:%s24] %v333
      %v335 = vld [vmem:[%s31 + $0x2ac] sm:%s24]
      %336 = vst [vmem:[%s32 + $0x25c] sm:%s24] %v335
      %v337 = vld [vmem:[%s31 + $0x230] sm:%s24]
      %338 = vst [vmem:[%s32 + $0x260] sm:%s24] %v337
      %v339 = vld [vmem:[%s31 + $0x2b0] sm:%s24]
      %340 = vst [vmem:[%s32 + $0x264] sm:%s24] %v339
      %v341 = vld [vmem:[%s31 + $0x234] sm:%s24]
      %342 = vst [vmem:[%s32 + $0x268] sm:%s24] %v341
      %v343 = vld [vmem:[%s31 + $0x2b4] sm:%s24]
      %344 = vst [vmem:[%s32 + $0x26c] sm:%s24] %v343
      %v345 = vld [vmem:[%s31 + $0x238] sm:%s24]
      %346 = vst [vmem:[%s32 + $0x270] sm:%s24] %v345
      %v347 = vld [vmem:[%s31 + $0x2b8] sm:%s24]
      %348 = vst [vmem:[%s32 + $0x274] sm:%s24] %v347
      %v349 = vld [vmem:[%s31 + $0x23c] sm:%s24]
      %350 = vst [vmem:[%s32 + $0x278] sm:%s24] %v349
      %v351 = vld [vmem:[%s31 + $0x2bc] sm:%s24]
      %352 = vst [vmem:[%s32 + $0x27c] sm:%s24] %v351
      %v353 = vld [vmem:[%s31 + $0x240] sm:%s24]
      %354 = vst [vmem:[%s32 + $0x280] sm:%s24] %v353
      %v355 = vld [vmem:[%s31 + $0x2c0] sm:%s24]
      %356 = vst [vmem:[%s32 + $0x284] sm:%s24] %v355
      %v357 = vld [vmem:[%s31 + $0x244] sm:%s24]
      %358 = vst [vmem:[%s32 + $0x288] sm:%s24] %v357
      %v359 = vld [vmem:[%s31 + $0x2c4] sm:%s24]
      %360 = vst [vmem:[%s32 + $0x28c] sm:%s24] %v359
      %v361 = vld [vmem:[%s31 + $0x248] sm:%s24]
      %362 = vst [vmem:[%s32 + $0x290] sm:%s24] %v361
      %v363 = vld [vmem:[%s31 + $0x2c8] sm:%s24]
      %364 = vst [vmem:[%s32 + $0x294] sm:%s24] %v363
      %v365 = vld [vmem:[%s31 + $0x24c] sm:%s24]
      %366 = vst [vmem:[%s32 + $0x298] sm:%s24] %v365
      %v367 = vld [vmem:[%s31 + $0x2cc] sm:%s24]
      %368 = vst [vmem:[%s32 + $0x29c] sm:%s24] %v367
      %v369 = vld [vmem:[%s31 + $0x250] sm:%s24]
      %370 = vst [vmem:[%s32 + $0x2a0] sm:%s24] %v369
      %v371 = vld [vmem:[%s31 + $0x2d0] sm:%s24]
      %372 = vst [vmem:[%s32 + $0x2a4] sm:%s24] %v371
      %v373 = vld [vmem:[%s31 + $0x254] sm:%s24]
      %374 = vst [vmem:[%s32 + $0x2a8] sm:%s24] %v373
      %v375 = vld [vmem:[%s31 + $0x2d4] sm:%s24]
      %376 = vst [vmem:[%s32 + $0x2ac] sm:%s24] %v375
      %v377 = vld [vmem:[%s31 + $0x258] sm:%s24]
      %378 = vst [vmem:[%s32 + $0x2b0] sm:%s24] %v377
      %v379 = vld [vmem:[%s31 + $0x2d8] sm:%s24]
      %380 = vst [vmem:[%s32 + $0x2b4] sm:%s24] %v379
      %v381 = vld [vmem:[%s31 + $0x25c] sm:%s24]
      %382 = vst [vmem:[%s32 + $0x2b8] sm:%s24] %v381
      %v383 = vld [vmem:[%s31 + $0x2dc] sm:%s24]
      %384 = vst [vmem:[%s32 + $0x2bc] sm:%s24] %v383
      %v385 = vld [vmem:[%s31 + $0x260] sm:%s24]
      %386 = vst [vmem:[%s32 + $0x2c0] sm:%s24] %v385
      %v387 = vld [vmem:[%s31 + $0x2e0] sm:%s24]
      %388 = vst [vmem:[%s32 + $0x2c4] sm:%s24] %v387
      %v389 = vld [vmem:[%s31 + $0x264] sm:%s24]
      %390 = vst [vmem:[%s32 + $0x2c8] sm:%s24] %v389
      %v391 = vld [vmem:[%s31 + $0x2e4] sm:%s24]
      %392 = vst [vmem:[%s32 + $0x2cc] sm:%s24] %v391
      %v393 = vld [vmem:[%s31 + $0x268] sm:%s24]
      %394 = vst [vmem:[%s32 + $0x2d0] sm:%s24] %v393
      %v395 = vld [vmem:[%s31 + $0x2e8] sm:%s24]
      %396 = vst [vmem:[%s32 + $0x2d4] sm:%s24] %v395
      %v397 = vld [vmem:[%s31 + $0x26c] sm:%s24]
      %398 = vst [vmem:[%s32 + $0x2d8] sm:%s24] %v397
      %v399 = vld [vmem:[%s31 + $0x2ec] sm:%s24]
      %400 = vst [vmem:[%s32 + $0x2dc] sm:%s24] %v399
      %v401 = vld [vmem:[%s31 + $0x270] sm:%s24]
      %402 = vst [vmem:[%s32 + $0x2e0] sm:%s24] %v401
      %v403 = vld [vmem:[%s31 + $0x2f0] sm:%s24]
      %404 = vst [vmem:[%s32 + $0x2e4] sm:%s24] %v403
      %v405 = vld [vmem:[%s31 + $0x274] sm:%s24]
      %406 = vst [vmem:[%s32 + $0x2e8] sm:%s24] %v405
      %v407 = vld [vmem:[%s31 + $0x2f4] sm:%s24]
      %408 = vst [vmem:[%s32 + $0x2ec] sm:%s24] %v407
      %v409 = vld [vmem:[%s31 + $0x278] sm:%s24]
      %410 = vst [vmem:[%s32 + $0x2f0] sm:%s24] %v409
      %v411 = vld [vmem:[%s31 + $0x2f8] sm:%s24]
      %412 = vst [vmem:[%s32 + $0x2f4] sm:%s24] %v411
      %v413 = vld [vmem:[%s31 + $0x27c] sm:%s24]
      %414 = vst [vmem:[%s32 + $0x2f8] sm:%s24] %v413
      %v415 = vld [vmem:[%s31 + $0x2fc] sm:%s24]
      %416 = vst [vmem:[%s32 + $0x2fc] sm:%s24] %v415
      %v417 = vld [vmem:[%s31 + $0x300] sm:%s24]
      %418 = vst [vmem:[%s32 + $0x300] sm:%s24] %v417
      %v419 = vld [vmem:[%s31 + $0x380] sm:%s24]
      %420 = vst [vmem:[%s32 + $0x304] sm:%s24] %v419
      %v421 = vld [vmem:[%s31 + $0x304] sm:%s24]
      %422 = vst [vmem:[%s32 + $0x308] sm:%s24] %v421
      %v423 = vld [vmem:[%s31 + $0x384] sm:%s24]
      %424 = vst [vmem:[%s32 + $0x30c] sm:%s24] %v423
      %v425 = vld [vmem:[%s31 + $0x308] sm:%s24]
      %426 = vst [vmem:[%s32 + $0x310] sm:%s24] %v425
      %v427 = vld [vmem:[%s31 + $0x388] sm:%s24]
      %428 = vst [vmem:[%s32 + $0x314] sm:%s24] %v427
      %v429 = vld [vmem:[%s31 + $0x30c] sm:%s24]
      %430 = vst [vmem:[%s32 + $0x318] sm:%s24] %v429
      %v431 = vld [vmem:[%s31 + $0x38c] sm:%s24]
      %432 = vst [vmem:[%s32 + $0x31c] sm:%s24] %v431
      %v433 = vld [vmem:[%s31 + $0x310] sm:%s24]
      %434 = vst [vmem:[%s32 + $0x320] sm:%s24] %v433
      %v435 = vld [vmem:[%s31 + $0x390] sm:%s24]
      %436 = vst [vmem:[%s32 + $0x324] sm:%s24] %v435
      %v437 = vld [vmem:[%s31 + $0x314] sm:%s24]
      %438 = vst [vmem:[%s32 + $0x328] sm:%s24] %v437
      %v439 = vld [vmem:[%s31 + $0x394] sm:%s24]
      %440 = vst [vmem:[%s32 + $0x32c] sm:%s24] %v439
      %v441 = vld [vmem:[%s31 + $0x318] sm:%s24]
      %442 = vst [vmem:[%s32 + $0x330] sm:%s24] %v441
      %v443 = vld [vmem:[%s31 + $0x398] sm:%s24]
      %444 = vst [vmem:[%s32 + $0x334] sm:%s24] %v443
      %v445 = vld [vmem:[%s31 + $0x31c] sm:%s24]
      %446 = vst [vmem:[%s32 + $0x338] sm:%s24] %v445
      %v447 = vld [vmem:[%s31 + $0x39c] sm:%s24]
      %448 = vst [vmem:[%s32 + $0x33c] sm:%s24] %v447
      %v449 = vld [vmem:[%s31 + $0x320] sm:%s24]
      %450 = vst [vmem:[%s32 + $0x340] sm:%s24] %v449
      %v451 = vld [vmem:[%s31 + $0x3a0] sm:%s24]
      %452 = vst [vmem:[%s32 + $0x344] sm:%s24] %v451
      %v453 = vld [vmem:[%s31 + $0x324] sm:%s24]
      %454 = vst [vmem:[%s32 + $0x348] sm:%s24] %v453
      %v455 = vld [vmem:[%s31 + $0x3a4] sm:%s24]
      %456 = vst [vmem:[%s32 + $0x34c] sm:%s24] %v455
      %v457 = vld [vmem:[%s31 + $0x328] sm:%s24]
      %458 = vst [vmem:[%s32 + $0x350] sm:%s24] %v457
      %v459 = vld [vmem:[%s31 + $0x3a8] sm:%s24]
      %460 = vst [vmem:[%s32 + $0x354] sm:%s24] %v459
      %v461 = vld [vmem:[%s31 + $0x32c] sm:%s24]
      %462 = vst [vmem:[%s32 + $0x358] sm:%s24] %v461
      %v463 = vld [vmem:[%s31 + $0x3ac] sm:%s24]
      %464 = vst [vmem:[%s32 + $0x35c] sm:%s24] %v463
      %v465 = vld [vmem:[%s31 + $0x330] sm:%s24]
      %466 = vst [vmem:[%s32 + $0x360] sm:%s24] %v465
      %v467 = vld [vmem:[%s31 + $0x3b0] sm:%s24]
      %468 = vst [vmem:[%s32 + $0x364] sm:%s24] %v467
      %v469 = vld [vmem:[%s31 + $0x334] sm:%s24]
      %470 = vst [vmem:[%s32 + $0x368] sm:%s24] %v469
      %v471 = vld [vmem:[%s31 + $0x3b4] sm:%s24]
      %472 = vst [vmem:[%s32 + $0x36c] sm:%s24] %v471
      %v473 = vld [vmem:[%s31 + $0x338] sm:%s24]
      %474 = vst [vmem:[%s32 + $0x370] sm:%s24] %v473
      %v475 = vld [vmem:[%s31 + $0x3b8] sm:%s24]
      %476 = vst [vmem:[%s32 + $0x374] sm:%s24] %v475
      %v477 = vld [vmem:[%s31 + $0x33c] sm:%s24]
      %478 = vst [vmem:[%s32 + $0x378] sm:%s24] %v477
      %v479 = vld [vmem:[%s31 + $0x3bc] sm:%s24]
      %480 = vst [vmem:[%s32 + $0x37c] sm:%s24] %v479
      %v481 = vld [vmem:[%s31 + $0x340] sm:%s24]
      %482 = vst [vmem:[%s32 + $0x380] sm:%s24] %v481
      %v483 = vld [vmem:[%s31 + $0x3c0] sm:%s24]
      %484 = vst [vmem:[%s32 + $0x384] sm:%s24] %v483
      %v485 = vld [vmem:[%s31 + $0x344] sm:%s24]
      %486 = vst [vmem:[%s32 + $0x388] sm:%s24] %v485
      %v487 = vld [vmem:[%s31 + $0x3c4] sm:%s24]
      %488 = vst [vmem:[%s32 + $0x38c] sm:%s24] %v487
      %v489 = vld [vmem:[%s31 + $0x348] sm:%s24]
      %490 = vst [vmem:[%s32 + $0x390] sm:%s24] %v489
      %v491 = vld [vmem:[%s31 + $0x3c8] sm:%s24]
      %492 = vst [vmem:[%s32 + $0x394] sm:%s24] %v491
      %v493 = vld [vmem:[%s31 + $0x34c] sm:%s24]
      %494 = vst [vmem:[%s32 + $0x398] sm:%s24] %v493
      %v495 = vld [vmem:[%s31 + $0x3cc] sm:%s24]
      %496 = vst [vmem:[%s32 + $0x39c] sm:%s24] %v495
      %v497 = vld [vmem:[%s31 + $0x350] sm:%s24]
      %498 = vst [vmem:[%s32 + $0x3a0] sm:%s24] %v497
      %v499 = vld [vmem:[%s31 + $0x3d0] sm:%s24]
      %500 = vst [vmem:[%s32 + $0x3a4] sm:%s24] %v499
      %v501 = vld [vmem:[%s31 + $0x354] sm:%s24]
      %502 = vst [vmem:[%s32 + $0x3a8] sm:%s24] %v501
      %v503 = vld [vmem:[%s31 + $0x3d4] sm:%s24]
      %504 = vst [vmem:[%s32 + $0x3ac] sm:%s24] %v503
      %v505 = vld [vmem:[%s31 + $0x358] sm:%s24]
      %506 = vst [vmem:[%s32 + $0x3b0] sm:%s24] %v505
      %v507 = vld [vmem:[%s31 + $0x3d8] sm:%s24]
      %508 = vst [vmem:[%s32 + $0x3b4] sm:%s24] %v507
      %v509 = vld [vmem:[%s31 + $0x35c] sm:%s24]
      %510 = vst [vmem:[%s32 + $0x3b8] sm:%s24] %v509
      %v511 = vld [vmem:[%s31 + $0x3dc] sm:%s24]
      %512 = vst [vmem:[%s32 + $0x3bc] sm:%s24] %v511
      %v513 = vld [vmem:[%s31 + $0x360] sm:%s24]
      %514 = vst [vmem:[%s32 + $0x3c0] sm:%s24] %v513
      %v515 = vld [vmem:[%s31 + $0x3e0] sm:%s24]
      %516 = vst [vmem:[%s32 + $0x3c4] sm:%s24] %v515
      %v517 = vld [vmem:[%s31 + $0x364] sm:%s24]
      %518 = vst [vmem:[%s32 + $0x3c8] sm:%s24] %v517
      %v519 = vld [vmem:[%s31 + $0x3e4] sm:%s24]
      %520 = vst [vmem:[%s32 + $0x3cc] sm:%s24] %v519
      %v521 = vld [vmem:[%s31 + $0x368] sm:%s24]
      %522 = vst [vmem:[%s32 + $0x3d0] sm:%s24] %v521
      %v523 = vld [vmem:[%s31 + $0x3e8] sm:%s24]
      %524 = vst [vmem:[%s32 + $0x3d4] sm:%s24] %v523
      %v525 = vld [vmem:[%s31 + $0x36c] sm:%s24]
      %526 = vst [vmem:[%s32 + $0x3d8] sm:%s24] %v525
      %v527 = vld [vmem:[%s31 + $0x3ec] sm:%s24]
      %528 = vst [vmem:[%s32 + $0x3dc] sm:%s24] %v527
      %v529 = vld [vmem:[%s31 + $0x370] sm:%s24]
      %530 = vst [vmem:[%s32 + $0x3e0] sm:%s24] %v529
      %v531 = vld [vmem:[%s31 + $0x3f0] sm:%s24]
      %532 = vst [vmem:[%s32 + $0x3e4] sm:%s24] %v531
      %v533 = vld [vmem:[%s31 + $0x374] sm:%s24]
      %534 = vst [vmem:[%s32 + $0x3e8] sm:%s24] %v533
      %v535 = vld [vmem:[%s31 + $0x3f4] sm:%s24]
      %536 = vst [vmem:[%s32 + $0x3ec] sm:%s24] %v535
      %v537 = vld [vmem:[%s31 + $0x378] sm:%s24]
      %538 = vst [vmem:[%s32 + $0x3f0] sm:%s24] %v537
      %v539 = vld [vmem:[%s31 + $0x3f8] sm:%s24]
      %540 = vst [vmem:[%s32 + $0x3f4] sm:%s24] %v539
      %v541 = vld [vmem:[%s31 + $0x37c] sm:%s24]
      %542 = vst [vmem:[%s32 + $0x3f8] sm:%s24] %v541
      %v543 = vld [vmem:[%s31 + $0x3fc] sm:%s24]
      %544 = vst [vmem:[%s32 + $0x3fc] sm:%s24] %v543
    $region26: #{discriminator_forward.1} parent=20 // loop_footer
      %s30 = sadd.s32 1, %s26
    $region27: #{discriminator_forward.1} parent=20 // loop_footer_branch
      %25 = sbr.rel target = $region23
    $region28: #{discriminator_forward.1} parent=20 // loop_exit
      _
  $region21: #{discriminator_forward.1} parent=0 // pred_fallthru
    _
  // Predicated region
  $region47: #{discriminator_forward.1} parent=0 // pred_check
    _
  $region48: #{discriminator_forward.1} parent=0 // pred_check_branch
    %1086 = sbr.rel (0) target = $region50
  $region49: #{discriminator_forward.1} parent=0 // pred_region
    %1087 = vsyncadd [#allocation3], 16384
  $region50: #{discriminator_forward.1} parent=0 // pred_fallthru
    _
  %v1088 = vld [vmem:[%s0] sm:$0xf]
  %v1089 = vld [vmem:[%s0 + $0x4] sm:$0xf]
  %v1090 = vld [vmem:[%s1 + $0x240] sm:$0xff]
  %v1091 = vld [vmem:[%s1 + $0x258] sm:$0xff]
  %v1092 = vld [vmem:[%s1 + $0x270] sm:$0xff]
  %v1093 = vld [vmem:[%s1 + $0x288] sm:$0xff]
  %v1096 = vunpack.c.l.b16 %v1088
  %v1097 = vunpack.c.l.b16 %v1089
  %v1098 = vpack.c.b16 %v1097, %v1096
  %v1103 = vunpack.c.l.b16 %v1090
  %v1104 = vunpack.c.h.b16 %v1090
  %v1105 = vunpack.c.l.b16 %v1091
  %v1106 = vunpack.c.h.b16 %v1091
  %v1107 = vunpack.c.l.b16 %v1092
  %v1108 = vunpack.c.h.b16 %v1092
  %v1109 = vunpack.c.l.b16 %v1093
  %v1110 = vunpack.c.h.b16 %v1093
  %v1111 = vpack.c.b16 %v1105, %v1103
  %v1112 = vpack.c.b16 %v1106, %v1104
  %v1113 = vpack.c.b16 %v1109, %v1107
  %v1114 = vpack.c.b16 %v1110, %v1108
  %vm1119 = vcmask 261120
  %v1121 = vsel %vm1119, %v1098, 0
  %1123 = vmatprep.subr.bf16.mxu0 %v1112
  %1124 = vmatpush1.bf16.msra.mxu0 %v1111
  %1125 = vmatprep.subr.bf16.mxu0 %v1114
  %1126 = vmatpush1.bf16.msra.mxu0 %v1113
  %1127 = vmatprep.subr.bf16.mxu0 0
  %1128 = vmatpush1.bf16.msra.mxu0 0
  %1129 = vmatprep.subr.bf16.mxu0 0
  %1130 = vmatpush1.bf16.msra.mxu0 0
  %1131 = vmatprep.subr.bf16.mxu0 0
  %1132 = vmatpush1.bf16.msra.mxu0 0
  %1133 = vmatprep.subr.bf16.mxu0 0
  %1134 = vmatpush1.bf16.msra.mxu0 0
  %1135 = vmatprep.subr.bf16.mxu0 0
  %1136 = vmatpush1.bf16.msra.mxu0 0
  %1137 = vmatprep.subr.bf16.mxu0 0
  %1138 = vmatpush1.bf16.msra.mxu0 0
  %1139 = vmatprep.subr.bf16.mxu0 0
  %1140 = vmatpush1.bf16.msra.mxu0 0
  %1141 = vmatprep.subr.bf16.mxu0 0
  %1142 = vmatpush1.bf16.msra.mxu0 0
  %1143 = vmatprep.subr.bf16.mxu0 0
  %1144 = vmatpush1.bf16.msra.mxu0 0
  %1145 = vmatprep.subr.bf16.mxu0 0
  %1146 = vmatpush1.bf16.msra.mxu0 0
  %1147 = vmatprep.subr.bf16.mxu0 0
  %1148 = vmatpush1.bf16.msra.mxu0 0
  %1149 = vmatprep.subr.bf16.mxu0 0
  %1150 = vmatpush1.bf16.msra.mxu0 0
  %1151 = vmatprep.subr.bf16.mxu0 0
  %1152 = vmatpush1.bf16.msra.mxu0 0
  %1153 = vmatprep.subr.bf16.mxu0 0
  %1154 = vmatpush1.bf16.msra.mxu0 0
  %1155 = vmatprep.mubr.bf16.mxu0 0
  %1156 = vmatmul.mubr.bf16.gmra.mrb[0].mxu0 %v1121
  %v1157 = vpop.f32.mrb[0].mxu0
  %v1158 = vadd.f32 0.0, %v1157
  %v1159 = vpop.f32.mrb[0].mxu0
  %v1160 = vadd.f32 0.0, %v1159
  %v1161 = vpop.f32.mrb[0].mxu0
  %v1162 = vadd.f32 0.0, %v1161
  %v1163 = vpop.f32.mrb[0].mxu0
  %v1164 = vadd.f32 0.0, %v1163
  %1165 = vdwg.mxu0
  %v1166 = vpack.c.bf16 0.0, 0.0
  %v1167 = vld [vmem:[%s1] sm:$0xff]
  %v1168 = vld [vmem:[%s1 + $0x8] sm:$0xff]
  %v1169 = vld [vmem:[%s1 + $0x10] sm:$0xff]
  %v1170 = vld [vmem:[%s1 + $0x18] sm:$0xff]
  %v1171 = vld [vmem:[%s1 + $0x20] sm:$0xff]
  %v1172 = vld [vmem:[%s1 + $0x28] sm:$0xff]
  %v1173 = vld [vmem:[%s1 + $0x30] sm:$0xff]
  %v1174 = vld [vmem:[%s1 + $0x38] sm:$0xff]
  %v1175 = vld [vmem:[%s1 + $0x40] sm:$0xff]
  %v1176 = vld [vmem:[%s1 + $0x48] sm:$0xff]
  %v1177 = vld [vmem:[%s1 + $0x50] sm:$0xff]
  %v1178 = vld [vmem:[%s1 + $0x58] sm:$0xff]
  %v1179 = vld [vmem:[%s1 + $0x60] sm:$0xff]
  %v1180 = vld [vmem:[%s1 + $0x68] sm:$0xff]
  %v1181 = vld [vmem:[%s1 + $0x70] sm:$0xff]
  %v1182 = vld [vmem:[%s1 + $0x78] sm:$0xff]
  %v1183 = vld [vmem:[%s1 + $0x80] sm:$0xff]
  %v1184 = vld [vmem:[%s1 + $0x88] sm:$0xff]
  %v1185 = vld [vmem:[%s1 + $0x90] sm:$0xff]
  %v1186 = vld [vmem:[%s1 + $0x98] sm:$0xff]
  %v1187 = vld [vmem:[%s1 + $0xa0] sm:$0xff]
  %v1188 = vld [vmem:[%s1 + $0xa8] sm:$0xff]
  %v1189 = vld [vmem:[%s1 + $0xb0] sm:$0xff]
  %v1190 = vld [vmem:[%s1 + $0xb8] sm:$0xff]
  %v1191 = vld [vmem:[%s1 + $0xc0] sm:$0xff]
  %v1192 = vld [vmem:[%s1 + $0xc8] sm:$0xff]
  %v1193 = vld [vmem:[%s1 + $0xd0] sm:$0xff]
  %v1194 = vld [vmem:[%s1 + $0xd8] sm:$0xff]
  %v1195 = vld [vmem:[%s1 + $0xe0] sm:$0xff]
  %v1196 = vld [vmem:[%s1 + $0xe8] sm:$0xff]
  %v1197 = vld [vmem:[%s1 + $0xf0] sm:$0xff]
  %v1198 = vld [vmem:[%s1 + $0xf8] sm:$0xff]
  %v1199 = vld [vmem:[%s1 + $0x100] sm:$0xff]
  %v1200 = vld [vmem:[%s1 + $0x108] sm:$0xff]
  %v1201 = vld [vmem:[%s1 + $0x110] sm:$0xff]
  %v1202 = vld [vmem:[%s1 + $0x118] sm:$0xff]
  %v1203 = vld [vmem:[%s1 + $0x120] sm:$0xff]
  %v1204 = vld [vmem:[%s1 + $0x128] sm:$0xff]
  %v1205 = vld [vmem:[%s1 + $0x130] sm:$0xff]
  %v1206 = vld [vmem:[%s1 + $0x138] sm:$0xff]
  %v1207 = vld [vmem:[%s1 + $0x140] sm:$0xff]
  %v1208 = vld [vmem:[%s1 + $0x148] sm:$0xff]
  %v1209 = vld [vmem:[%s1 + $0x150] sm:$0xff]
  %v1210 = vld [vmem:[%s1 + $0x158] sm:$0xff]
  %v1211 = vld [vmem:[%s1 + $0x160] sm:$0xff]
  %v1212 = vld [vmem:[%s1 + $0x168] sm:$0xff]
  %v1213 = vld [vmem:[%s1 + $0x170] sm:$0xff]
  %v1214 = vld [vmem:[%s1 + $0x178] sm:$0xff]
  %v1215 = vld [vmem:[%s1 + $0x180] sm:$0xff]
  %v1216 = vld [vmem:[%s1 + $0x188] sm:$0xff]
  %v1217 = vld [vmem:[%s1 + $0x190] sm:$0xff]
  %v1218 = vld [vmem:[%s1 + $0x198] sm:$0xff]
  %v1219 = vld [vmem:[%s1 + $0x1a0] sm:$0xff]
  %v1220 = vld [vmem:[%s1 + $0x1a8] sm:$0xff]
  %v1221 = vld [vmem:[%s1 + $0x1b0] sm:$0xff]
  %v1222 = vld [vmem:[%s1 + $0x1b8] sm:$0xff]
  %v1223 = vld [vmem:[%s1 + $0x1c0] sm:$0xff]
  %v1224 = vld [vmem:[%s1 + $0x1c8] sm:$0xff]
  %v1225 = vld [vmem:[%s1 + $0x1d0] sm:$0xff]
  %v1226 = vld [vmem:[%s1 + $0x1d8] sm:$0xff]
  %v1227 = vld [vmem:[%s1 + $0x1e0] sm:$0xff]
  %v1228 = vld [vmem:[%s1 + $0x1e8] sm:$0xff]
  %v1229 = vld [vmem:[%s1 + $0x1f0] sm:$0xff]
  %v1230 = vld [vmem:[%s1 + $0x1f8] sm:$0xff]
  %v1231 = vld [vmem:[%s1 + $0x200] sm:$0xff]
  %v1232 = vld [vmem:[%s1 + $0x208] sm:$0xff]
  %v1233 = vld [vmem:[%s1 + $0x210] sm:$0xff]
  %v1234 = vld [vmem:[%s1 + $0x218] sm:$0xff]
  %v1235 = vld [vmem:[%s1 + $0x220] sm:$0xff]
  %v1236 = vld [vmem:[%s1 + $0x228] sm:$0xff]
  %v1237 = vld [vmem:[%s1 + $0x230] sm:$0xff]
  %v1238 = vld [vmem:[%s1 + $0x238] sm:$0xff]
  %v1239 = vld [vmem:[%s2] ss:$2 sm:$0x3f]
  %v1241 = vlaneseq
  %v1242 = vshrl.u32 %v1241, 7
  %v1243 = vsub.s32 0, %v1242
  %v1244 = vrot.slane %v1239, %v1243
  %v1245 = vlaneseq
  %v1246 = vshrl.u32 %v1245, 7
  %v1247 = vsub.s32 1, %v1246
  %v1248 = vrot.slane %v1239, %v1247
  %v1249 = vlaneseq
  %v1250 = vshrl.u32 %v1249, 7
  %v1251 = vsub.s32 2, %v1250
  %v1252 = vrot.slane %v1239, %v1251
  %v1253 = vlaneseq
  %v1254 = vshrl.u32 %v1253, 7
  %v1255 = vsub.s32 3, %v1254
  %v1256 = vrot.slane %v1239, %v1255
  %v1257 = vlaneseq
  %v1258 = vshrl.u32 %v1257, 7
  %v1259 = vsub.s32 4, %v1258
  %v1260 = vrot.slane %v1239, %v1259
  %v1261 = vlaneseq
  %v1262 = vshrl.u32 %v1261, 7
  %v1263 = vsub.s32 5, %v1262
  %v1264 = vrot.slane %v1239, %v1263
  %v1295 = vunpack.c.l.b16 %v1167
  %v1296 = vunpack.c.h.b16 %v1167
  %v1297 = vunpack.c.l.b16 %v1170
  %v1298 = vunpack.c.h.b16 %v1170
  %v1299 = vunpack.c.l.b16 %v1173
  %v1300 = vunpack.c.h.b16 %v1173
  %v1301 = vunpack.c.l.b16 %v1176
  %v1302 = vunpack.c.h.b16 %v1176
  %v1303 = vunpack.c.l.b16 %v1179
  %v1304 = vunpack.c.h.b16 %v1179
  %v1305 = vunpack.c.l.b16 %v1182
  %v1306 = vunpack.c.h.b16 %v1182
  %v1307 = vunpack.c.l.b16 %v1185
  %v1308 = vunpack.c.h.b16 %v1185
  %v1309 = vunpack.c.l.b16 %v1188
  %v1310 = vunpack.c.h.b16 %v1188
  %v1311 = vunpack.c.l.b16 %v1191
  %v1312 = vunpack.c.h.b16 %v1191
  %v1313 = vunpack.c.l.b16 %v1194
  %v1314 = vunpack.c.h.b16 %v1194
  %v1315 = vunpack.c.l.b16 %v1197
  %v1316 = vunpack.c.h.b16 %v1197
  %v1317 = vunpack.c.l.b16 %v1200
  %v1318 = vunpack.c.h.b16 %v1200
  %v1319 = vunpack.c.l.b16 %v1203
  %v1320 = vunpack.c.h.b16 %v1203
  %v1321 = vunpack.c.l.b16 %v1206
  %v1322 = vunpack.c.h.b16 %v1206
  %v1323 = vunpack.c.l.b16 %v1209
  %v1324 = vunpack.c.h.b16 %v1209
  %v1325 = vunpack.c.l.b16 %v1212
  %v1326 = vunpack.c.h.b16 %v1212
  %v1327 = vunpack.c.l.b16 %v1215
  %v1328 = vunpack.c.h.b16 %v1215
  %v1329 = vunpack.c.l.b16 %v1218
  %v1330 = vunpack.c.h.b16 %v1218
  %v1331 = vunpack.c.l.b16 %v1221
  %v1332 = vunpack.c.h.b16 %v1221
  %v1333 = vunpack.c.l.b16 %v1224
  %v1334 = vunpack.c.h.b16 %v1224
  %v1335 = vunpack.c.l.b16 %v1227
  %v1336 = vunpack.c.h.b16 %v1227
  %v1337 = vunpack.c.l.b16 %v1230
  %v1338 = vunpack.c.h.b16 %v1230
  %v1339 = vunpack.c.l.b16 %v1233
  %v1340 = vunpack.c.h.b16 %v1233
  %v1341 = vunpack.c.l.b16 %v1236
  %v1342 = vunpack.c.h.b16 %v1236
  %v1343 = vpack.c.b16 %v1297, %v1295
  %v1344 = vpack.c.b16 %v1298, %v1296
  %v1345 = vpack.c.b16 %v1301, %v1299
  %v1346 = vpack.c.b16 %v1302, %v1300
  %v1347 = vpack.c.b16 %v1305, %v1303
  %v1348 = vpack.c.b16 %v1306, %v1304
  %v1349 = vpack.c.b16 %v1309, %v1307
  %v1350 = vpack.c.b16 %v1310, %v1308
  %v1351 = vpack.c.b16 %v1313, %v1311
  %v1352 = vpack.c.b16 %v1314, %v1312
  %v1353 = vpack.c.b16 %v1317, %v1315
  %v1354 = vpack.c.b16 %v1318, %v1316
  %v1355 = vpack.c.b16 %v1321, %v1319
  %v1356 = vpack.c.b16 %v1322, %v1320
  %v1357 = vpack.c.b16 %v1325, %v1323
  %v1358 = vpack.c.b16 %v1326, %v1324
  %v1359 = vpack.c.b16 %v1329, %v1327
  %v1360 = vpack.c.b16 %v1330, %v1328
  %v1361 = vpack.c.b16 %v1333, %v1331
  %v1362 = vpack.c.b16 %v1334, %v1332
  %v1363 = vpack.c.b16 %v1337, %v1335
  %v1364 = vpack.c.b16 %v1338, %v1336
  %v1365 = vpack.c.b16 %v1341, %v1339
  %v1366 = vpack.c.b16 %v1342, %v1340
  %vm1391 = vcmask 523264
  %v1393 = vsel %vm1391, %v1166, 0
  %1395 = vmatprep.subr.bf16.mxu0 %v1344
  %1396 = vmatpush1.bf16.msra.mxu0 %v1343
  %1397 = vmatprep.subr.bf16.mxu0 %v1346
  %1398 = vmatpush1.bf16.msra.mxu0 %v1345
  %1399 = vmatprep.subr.bf16.mxu0 %v1348
  %1400 = vmatpush1.bf16.msra.mxu0 %v1347
  %1401 = vmatprep.subr.bf16.mxu0 %v1350
  %1402 = vmatpush1.bf16.msra.mxu0 %v1349
  %1403 = vmatprep.subr.bf16.mxu0 %v1352
  %1404 = vmatpush1.bf16.msra.mxu0 %v1351
  %1405 = vmatprep.subr.bf16.mxu0 %v1354
  %1406 = vmatpush1.bf16.msra.mxu0 %v1353
  %1407 = vmatprep.subr.bf16.mxu0 %v1356
  %1408 = vmatpush1.bf16.msra.mxu0 %v1355
  %1409 = vmatprep.subr.bf16.mxu0 %v1358
  %1410 = vmatpush1.bf16.msra.mxu0 %v1357
  %1411 = vmatprep.subr.bf16.mxu0 %v1360
  %1412 = vmatpush1.bf16.msra.mxu0 %v1359
  %1413 = vmatprep.subr.bf16.mxu0 %v1362
  %1414 = vmatpush1.bf16.msra.mxu0 %v1361
  %1415 = vmatprep.subr.bf16.mxu0 %v1364
  %1416 = vmatpush1.bf16.msra.mxu0 %v1363
  %1417 = vmatprep.subr.bf16.mxu0 %v1366
  %1418 = vmatpush1.bf16.msra.mxu0 %v1365
  %1419 = vmatprep.subr.bf16.mxu0 0
  %1420 = vmatpush1.bf16.msra.mxu0 0
  %1421 = vmatprep.subr.bf16.mxu0 0
  %1422 = vmatpush1.bf16.msra.mxu0 0
  %1423 = vmatprep.subr.bf16.mxu0 0
  %1424 = vmatpush1.bf16.msra.mxu0 0
  %1425 = vmatprep.subr.bf16.mxu0 0
  %1426 = vmatpush1.bf16.msra.mxu0 0
  %1427 = vmatprep.mubr.bf16.mxu0 %v1393
  %1428 = vmatmul.mubr.bf16.gmra.mrb[0].mxu0 %v1166
  %v1429 = vpop.f32.mrb[0].mxu0
  %v1430 = vadd.f32 %v1244, %v1429
  %v1431 = vpop.f32.mrb[0].mxu0
  %v1432 = vadd.f32 %v1248, %v1431
  %v1433 = vpop.f32.mrb[0].mxu0
  %v1434 = vpop.f32.mrb[0].mxu0
  %1435 = vdwg.mxu0
  %v1436 = vadd.f32 %v1430, %v1158
  %v1437 = vadd.f32 %v1432, %v1160
  %v1438 = vxor.u32 %v1436, 2147483648
  %v1439 = vxor.u32 %v1437, 2147483648
  %v1440 = vmul.f32 %v1438, 1.442695
  %v1441 = vpow.pop %v1440
  %v1442 = vmul.f32 %v1439, 1.442695
  %v1443 = vpow.pop %v1442
  %v1444 = vadd.f32 %v1441, 1.0
  %v1445 = vadd.f32 %v1443, 1.0
  %v1446 = vrcp.pop %v1444
  %v1447 = vmul.f32 1.0, %v1446
  %v1448 = vrcp.pop %v1445
  %v1449 = vmul.f32 1.0, %v1448
  %v1450 = vtanh.pop %v1437
  %v1451 = vmul.f32 %v1447, 0.0
  %1453 = vrot.lane.b32.xlu0 %v1450, 64
  %v1454 = vpop.permute.xlu0 %1453
  %v1456 = vmul.f32 %v1447, %v1454
  %1458 = vrot.lane.b32.xlu0 %v1456, 64
  %v1459 = vpop.permute.xlu0 %1458
  %v1461 = vadd.f32 %v1451, %v1459
  %v1462 = vtanh.pop %v1461
  %1464 = vrot.lane.b32.xlu0 %v1462, 64
  %v1465 = vpop.permute.xlu0 %1464
  %v1467 = vmul.f32 %v1449, %v1465
  %v1468 = vsel %vm1391, %v1467, 0.0
  %v1469 = vpack.c.bf16 %v1468, %v1468
  %v1494 = vunpack.c.l.b16 %v1168
  %v1495 = vunpack.c.h.b16 %v1168
  %v1496 = vunpack.c.l.b16 %v1171
  %v1497 = vunpack.c.h.b16 %v1171
  %v1498 = vunpack.c.l.b16 %v1174
  %v1499 = vunpack.c.h.b16 %v1174
  %v1500 = vunpack.c.l.b16 %v1177
  %v1501 = vunpack.c.h.b16 %v1177
  %v1502 = vunpack.c.l.b16 %v1180
  %v1503 = vunpack.c.h.b16 %v1180
  %v1504 = vunpack.c.l.b16 %v1183
  %v1505 = vunpack.c.h.b16 %v1183
  %v1506 = vunpack.c.l.b16 %v1186
  %v1507 = vunpack.c.h.b16 %v1186
  %v1508 = vunpack.c.l.b16 %v1189
  %v1509 = vunpack.c.h.b16 %v1189
  %v1510 = vunpack.c.l.b16 %v1192
  %v1511 = vunpack.c.h.b16 %v1192
  %v1512 = vunpack.c.l.b16 %v1195
  %v1513 = vunpack.c.h.b16 %v1195
  %v1514 = vunpack.c.l.b16 %v1198
  %v1515 = vunpack.c.h.b16 %v1198
  %v1516 = vunpack.c.l.b16 %v1201
  %v1517 = vunpack.c.h.b16 %v1201
  %v1518 = vunpack.c.l.b16 %v1204
  %v1519 = vunpack.c.h.b16 %v1204
  %v1520 = vunpack.c.l.b16 %v1207
  %v1521 = vunpack.c.h.b16 %v1207
  %v1522 = vunpack.c.l.b16 %v1210
  %v1523 = vunpack.c.h.b16 %v1210
  %v1524 = vunpack.c.l.b16 %v1213
  %v1525 = vunpack.c.h.b16 %v1213
  %v1526 = vunpack.c.l.b16 %v1216
  %v1527 = vunpack.c.h.b16 %v1216
  %v1528 = vunpack.c.l.b16 %v1219
  %v1529 = vunpack.c.h.b16 %v1219
  %v1530 = vunpack.c.l.b16 %v1222
  %v1531 = vunpack.c.h.b16 %v1222
  %v1532 = vunpack.c.l.b16 %v1225
  %v1533 = vunpack.c.h.b16 %v1225
  %v1534 = vunpack.c.l.b16 %v1228
  %v1535 = vunpack.c.h.b16 %v1228
  %v1536 = vunpack.c.l.b16 %v1231
  %v1537 = vunpack.c.h.b16 %v1231
  %v1538 = vunpack.c.l.b16 %v1234
  %v1539 = vunpack.c.h.b16 %v1234
  %v1540 = vunpack.c.l.b16 %v1237
  %v1541 = vunpack.c.h.b16 %v1237
  %v1542 = vpack.c.b16 %v1496, %v1494
  %v1543 = vpack.c.b16 %v1497, %v1495
  %v1544 = vpack.c.b16 %v1500, %v1498
  %v1545 = vpack.c.b16 %v1501, %v1499
  %v1546 = vpack.c.b16 %v1504, %v1502
  %v1547 = vpack.c.b16 %v1505, %v1503
  %v1548 = vpack.c.b16 %v1508, %v1506
  %v1549 = vpack.c.b16 %v1509, %v1507
  %v1550 = vpack.c.b16 %v1512, %v1510
  %v1551 = vpack.c.b16 %v1513, %v1511
  %v1552 = vpack.c.b16 %v1516, %v1514
  %v1553 = vpack.c.b16 %v1517, %v1515
  %v1554 = vpack.c.b16 %v1520, %v1518
  %v1555 = vpack.c.b16 %v1521, %v1519
  %v1556 = vpack.c.b16 %v1524, %v1522
  %v1557 = vpack.c.b16 %v1525, %v1523
  %v1558 = vpack.c.b16 %v1528, %v1526
  %v1559 = vpack.c.b16 %v1529, %v1527
  %v1560 = vpack.c.b16 %v1532, %v1530
  %v1561 = vpack.c.b16 %v1533, %v1531
  %v1562 = vpack.c.b16 %v1536, %v1534
  %v1563 = vpack.c.b16 %v1537, %v1535
  %v1564 = vpack.c.b16 %v1540, %v1538
  %v1565 = vpack.c.b16 %v1541, %v1539
  %1590 = vmatprep.subr.bf16.mxu0 %v1344
  %1591 = vmatpush1.bf16.msra.mxu0 %v1343
  %1592 = vmatprep.subr.bf16.mxu0 %v1346
  %1593 = vmatpush1.bf16.msra.mxu0 %v1345
  %1594 = vmatprep.subr.bf16.mxu0 %v1348
  %1595 = vmatpush1.bf16.msra.mxu0 %v1347
  %1596 = vmatprep.subr.bf16.mxu0 %v1350
  %1597 = vmatpush1.bf16.msra.mxu0 %v1349
  %1598 = vmatprep.subr.bf16.mxu0 %v1352
  %1599 = vmatpush1.bf16.msra.mxu0 %v1351
  %1600 = vmatprep.subr.bf16.mxu0 %v1354
  %1601 = vmatpush1.bf16.msra.mxu0 %v1353
  %1602 = vmatprep.subr.bf16.mxu0 %v1356
  %1603 = vmatpush1.bf16.msra.mxu0 %v1355
  %1604 = vmatprep.subr.bf16.mxu0 %v1358
  %1605 = vmatpush1.bf16.msra.mxu0 %v1357
  %1606 = vmatprep.subr.bf16.mxu0 %v1360
  %1607 = vmatpush1.bf16.msra.mxu0 %v1359
  %1608 = vmatprep.subr.bf16.mxu0 %v1362
  %1609 = vmatpush1.bf16.msra.mxu0 %v1361
  %1610 = vmatprep.subr.bf16.mxu0 %v1364
  %1611 = vmatpush1.bf16.msra.mxu0 %v1363
  %1612 = vmatprep.subr.bf16.mxu0 %v1366
  %1613 = vmatpush1.bf16.msra.mxu0 %v1365
  %1614 = vmatprep.subr.bf16.mxu0 0
  %1615 = vmatpush1.bf16.msra.mxu0 0
  %1616 = vmatprep.subr.bf16.mxu0 0
  %1617 = vmatpush1.bf16.msra.mxu0 0
  %1618 = vmatprep.subr.bf16.mxu0 0
  %1619 = vmatpush1.bf16.msra.mxu0 0
  %1620 = vmatprep.subr.bf16.mxu0 0
  %1621 = vmatpush1.bf16.msra.mxu0 0
  %1622 = vmatprep.mubr.bf16.mxu0 %v1393
  %1623 = vmatmul.mubr.bf16.gmra.mrb[0].mxu0 %v1469
  %v1624 = vpop.f32.mrb[0].mxu0
  %v1625 = vadd.f32 %v1244, %v1624
  %v1626 = vpop.f32.mrb[0].mxu0
  %v1627 = vadd.f32 %v1248, %v1626
  %v1628 = vpop.f32.mrb[0].mxu0
  %v1629 = vpop.f32.mrb[0].mxu0
  %1630 = vdwg.mxu0
  %1631 = vmatprep.subr.bf16.mxu0 %v1543
  %1632 = vmatpush1.bf16.msra.mxu0 %v1542
  %1633 = vmatprep.subr.bf16.mxu0 %v1545
  %1634 = vmatpush1.bf16.msra.mxu0 %v1544
  %1635 = vmatprep.subr.bf16.mxu0 %v1547
  %1636 = vmatpush1.bf16.msra.mxu0 %v1546
  %1637 = vmatprep.subr.bf16.mxu0 %v1549
  %1638 = vmatpush1.bf16.msra.mxu0 %v1548
  %1639 = vmatprep.subr.bf16.mxu0 %v1551
  %1640 = vmatpush1.bf16.msra.mxu0 %v1550
  %1641 = vmatprep.subr.bf16.mxu0 %v1553
  %1642 = vmatpush1.bf16.msra.mxu0 %v1552
  %1643 = vmatprep.subr.bf16.mxu0 %v1555
  %1644 = vmatpush1.bf16.msra.mxu0 %v1554
  %1645 = vmatprep.subr.bf16.mxu0 %v1557
  %1646 = vmatpush1.bf16.msra.mxu0 %v1556
  %1647 = vmatprep.subr.bf16.mxu0 %v1559
  %1648 = vmatpush1.bf16.msra.mxu0 %v1558
  %1649 = vmatprep.subr.bf16.mxu0 %v1561
  %1650 = vmatpush1.bf16.msra.mxu0 %v1560
  %1651 = vmatprep.subr.bf16.mxu0 %v1563
  %1652 = vmatpush1.bf16.msra.mxu0 %v1562
  %1653 = vmatprep.subr.bf16.mxu0 %v1565
  %1654 = vmatpush1.bf16.msra.mxu0 %v1564
  %1655 = vmatprep.subr.bf16.mxu0 0
  %1656 = vmatpush1.bf16.msra.mxu0 0
  %1657 = vmatprep.subr.bf16.mxu0 0
  %1658 = vmatpush1.bf16.msra.mxu0 0
  %1659 = vmatprep.subr.bf16.mxu0 0
  %1660 = vmatpush1.bf16.msra.mxu0 0
  %1661 = vmatprep.subr.bf16.mxu0 0
  %1662 = vmatpush1.bf16.msra.mxu0 0
  %1663 = vmatprep.mubr.bf16.mxu0 %v1393
  %1664 = vmatmul.mubr.bf16.gmra.mrb[0].mxu0 %v1469
  %v1665 = vpop.f32.mrb[0].mxu0
  %v1666 = vadd.f32 %v1252, %v1665
  %v1667 = vpop.f32.mrb[0].mxu0
  %v1668 = vadd.f32 %v1256, %v1667
  %v1669 = vpop.f32.mrb[0].mxu0
  %v1670 = vpop.f32.mrb[0].mxu0
  %1671 = vdwg.mxu0
  %v1674 = vrot.slane %v1158, 2
  %v1675 = vrot.slane %v1160, 2
  %v1678 = vadd.f32 %v1625, %v1674
  %v1679 = vadd.f32 %v1627, %v1675
  %v1680 = vxor.u32 %v1678, 2147483648
  %v1681 = vxor.u32 %v1679, 2147483648
  %v1682 = vmul.f32 %v1680, 1.442695
  %v1683 = vpow.pop %v1682
  %v1684 = vmul.f32 %v1681, 1.442695
  %v1685 = vpow.pop %v1684
  %v1686 = vadd.f32 %v1683, 1.0
  %v1687 = vadd.f32 %v1685, 1.0
  %v1688 = vrcp.pop %v1686
  %v1689 = vmul.f32 1.0, %v1688
  %v1690 = vrcp.pop %v1687
  %v1691 = vmul.f32 1.0, %v1690
  %v1692 = vtanh.pop %v1679
  %v1693 = vmul.f32 %v1689, %v1461
  %1695 = vrot.lane.b32.xlu0 %v1692, 64
  %v1696 = vpop.permute.xlu0 %1695
  %v1698 = vmul.f32 %v1689, %v1696
  %1700 = vrot.lane.b32.xlu0 %v1698, 64
  %v1701 = vpop.permute.xlu0 %1700
  %v1703 = vadd.f32 %v1693, %v1701
  %v1704 = vtanh.pop %v1703
  %1706 = vrot.lane.b32.xlu0 %v1704, 64
  %v1707 = vpop.permute.xlu0 %1706
  %v1709 = vmul.f32 %v1691, %v1707
  %v1710 = vxor.u32 %v1666, 2147483648
  %v1711 = vxor.u32 %v1668, 2147483648
  %v1712 = vmul.f32 %v1710, 1.442695
  %v1713 = vpow.pop %v1712
  %v1714 = vmul.f32 %v1711, 1.442695
  %v1715 = vpow.pop %v1714
  %v1716 = vadd.f32 %v1713, 1.0
  %v1717 = vadd.f32 %v1715, 1.0
  %v1718 = vrcp.pop %v1716
  %v1719 = vmul.f32 1.0, %v1718
  %v1720 = vrcp.pop %v1717
  %v1721 = vmul.f32 1.0, %v1720
  %v1722 = vtanh.pop %v1668
  %v1723 = vmul.f32 %v1719, 0.0
  %1725 = vrot.lane.b32.xlu0 %v1722, 64
  %v1726 = vpop.permute.xlu0 %1725
  %v1728 = vmul.f32 %v1719, %v1726
  %1730 = vrot.lane.b32.xlu0 %v1728, 64
  %v1731 = vpop.permute.xlu0 %1730
  %v1733 = vadd.f32 %v1723, %v1731
  %v1734 = vtanh.pop %v1733
  %1736 = vrot.lane.b32.xlu0 %v1734, 64
  %v1737 = vpop.permute.xlu0 %1736
  %v1739 = vmul.f32 %v1721, %v1737
  %1741 = vrot.lane.b32.xlu0 %v1739, 64
  %v1742 = vpop.permute.xlu0 %1741
  %v1744 = vsel %vm1391, %v1709, %v1742
  %v1745 = vpack.c.bf16 %v1744, %v1744
  %v1770 = vunpack.c.l.b16 %v1169
  %v1771 = vunpack.c.h.b16 %v1169
  %v1772 = vunpack.c.l.b16 %v1172
  %v1773 = vunpack.c.h.b16 %v1172
  %v1774 = vunpack.c.l.b16 %v1175
  %v1775 = vunpack.c.h.b16 %v1175
  %v1776 = vunpack.c.l.b16 %v1178
  %v1777 = vunpack.c.h.b16 %v1178
  %v1778 = vunpack.c.l.b16 %v1181
  %v1779 = vunpack.c.h.b16 %v1181
  %v1780 = vunpack.c.l.b16 %v1184
  %v1781 = vunpack.c.h.b16 %v1184
  %v1782 = vunpack.c.l.b16 %v1187
  %v1783 = vunpack.c.h.b16 %v1187
  %v1784 = vunpack.c.l.b16 %v1190
  %v1785 = vunpack.c.h.b16 %v1190
  %v1786 = vunpack.c.l.b16 %v1193
  %v1787 = vunpack.c.h.b16 %v1193
  %v1788 = vunpack.c.l.b16 %v1196
  %v1789 = vunpack.c.h.b16 %v1196
  %v1790 = vunpack.c.l.b16 %v1199
  %v1791 = vunpack.c.h.b16 %v1199
  %v1792 = vunpack.c.l.b16 %v1202
  %v1793 = vunpack.c.h.b16 %v1202
  %v1794 = vunpack.c.l.b16 %v1205
  %v1795 = vunpack.c.h.b16 %v1205
  %v1796 = vunpack.c.l.b16 %v1208
  %v1797 = vunpack.c.h.b16 %v1208
  %v1798 = vunpack.c.l.b16 %v1211
  %v1799 = vunpack.c.h.b16 %v1211
  %v1800 = vunpack.c.l.b16 %v1214
  %v1801 = vunpack.c.h.b16 %v1214
  %v1802 = vunpack.c.l.b16 %v1217
  %v1803 = vunpack.c.h.b16 %v1217
  %v1804 = vunpack.c.l.b16 %v1220
  %v1805 = vunpack.c.h.b16 %v1220
  %v1806 = vunpack.c.l.b16 %v1223
  %v1807 = vunpack.c.h.b16 %v1223
  %v1808 = vunpack.c.l.b16 %v1226
  %v1809 = vunpack.c.h.b16 %v1226
  %v1810 = vunpack.c.l.b16 %v1229
  %v1811 = vunpack.c.h.b16 %v1229
  %v1812 = vunpack.c.l.b16 %v1232
  %v1813 = vunpack.c.h.b16 %v1232
  %v1814 = vunpack.c.l.b16 %v1235
  %v1815 = vunpack.c.h.b16 %v1235
  %v1816 = vunpack.c.l.b16 %v1238
  %v1817 = vunpack.c.h.b16 %v1238
  %v1818 = vpack.c.b16 %v1772, %v1770
  %v1819 = vpack.c.b16 %v1773, %v1771
  %v1820 = vpack.c.b16 %v1776, %v1774
  %v1821 = vpack.c.b16 %v1777, %v1775
  %v1822 = vpack.c.b16 %v1780, %v1778
  %v1823 = vpack.c.b16 %v1781, %v1779
  %v1824 = vpack.c.b16 %v1784, %v1782
  %v1825 = vpack.c.b16 %v1785, %v1783
  %v1826 = vpack.c.b16 %v1788, %v1786
  %v1827 = vpack.c.b16 %v1789, %v1787
  %v1828 = vpack.c.b16 %v1792, %v1790
  %v1829 = vpack.c.b16 %v1793, %v1791
  %v1830 = vpack.c.b16 %v1796, %v1794
  %v1831 = vpack.c.b16 %v1797, %v1795
  %v1832 = vpack.c.b16 %v1800, %v1798
  %v1833 = vpack.c.b16 %v1801, %v1799
  %v1834 = vpack.c.b16 %v1804, %v1802
  %v1835 = vpack.c.b16 %v1805, %v1803
  %v1836 = vpack.c.b16 %v1808, %v1806
  %v1837 = vpack.c.b16 %v1809, %v1807
  %v1838 = vpack.c.b16 %v1812, %v1810
  %v1839 = vpack.c.b16 %v1813, %v1811
  %v1840 = vpack.c.b16 %v1816, %v1814
  %v1841 = vpack.c.b16 %v1817, %v1815
  %1866 = vmatprep.subr.bf16.mxu0 %v1344
  %1867 = vmatpush1.bf16.msra.mxu0 %v1343
  %1868 = vmatprep.subr.bf16.mxu0 %v1346
  %1869 = vmatpush1.bf16.msra.mxu0 %v1345
  %1870 = vmatprep.subr.bf16.mxu0 %v1348
  %1871 = vmatpush1.bf16.msra.mxu0 %v1347
  %1872 = vmatprep.subr.bf16.mxu0 %v1350
  %1873 = vmatpush1.bf16.msra.mxu0 %v1349
  %1874 = vmatprep.subr.bf16.mxu0 %v1352
  %1875 = vmatpush1.bf16.msra.mxu0 %v1351
  %1876 = vmatprep.subr.bf16.mxu0 %v1354
  %1877 = vmatpush1.bf16.msra.mxu0 %v1353
  %1878 = vmatprep.subr.bf16.mxu0 %v1356
  %1879 = vmatpush1.bf16.msra.mxu0 %v1355
  %1880 = vmatprep.subr.bf16.mxu0 %v1358
  %1881 = vmatpush1.bf16.msra.mxu0 %v1357
  %1882 = vmatprep.subr.bf16.mxu0 %v1360
  %1883 = vmatpush1.bf16.msra.mxu0 %v1359
  %1884 = vmatprep.subr.bf16.mxu0 %v1362
  %1885 = vmatpush1.bf16.msra.mxu0 %v1361
  %1886 = vmatprep.subr.bf16.mxu0 %v1364
  %1887 = vmatpush1.bf16.msra.mxu0 %v1363
  %1888 = vmatprep.subr.bf16.mxu0 %v1366
  %1889 = vmatpush1.bf16.msra.mxu0 %v1365
  %1890 = vmatprep.subr.bf16.mxu0 0
  %1891 = vmatpush1.bf16.msra.mxu0 0
  %1892 = vmatprep.subr.bf16.mxu0 0
  %1893 = vmatpush1.bf16.msra.mxu0 0
  %1894 = vmatprep.subr.bf16.mxu0 0
  %1895 = vmatpush1.bf16.msra.mxu0 0
  %1896 = vmatprep.subr.bf16.mxu0 0
  %1897 = vmatpush1.bf16.msra.mxu0 0
  %1898 = vmatprep.mubr.bf16.mxu0 %v1393
  %1899 = vmatmul.mubr.bf16.gmra.mrb[0].mxu0 %v1745
  %v1900 = vpop.f32.mrb[0].mxu0
  %v1901 = vadd.f32 %v1244, %v1900
  %v1902 = vpop.f32.mrb[0].mxu0
  %v1903 = vadd.f32 %v1248, %v1902
  %v1904 = vpop.f32.mrb[0].mxu0
  %v1905 = vpop.f32.mrb[0].mxu0
  %1906 = vdwg.mxu0
  %1907 = vmatprep.subr.bf16.mxu0 %v1543
  %1908 = vmatpush1.bf16.msra.mxu0 %v1542
  %1909 = vmatprep.subr.bf16.mxu0 %v1545
  %1910 = vmatpush1.bf16.msra.mxu0 %v1544
  %1911 = vmatprep.subr.bf16.mxu0 %v1547
  %1912 = vmatpush1.bf16.msra.mxu0 %v1546
  %1913 = vmatprep.subr.bf16.mxu0 %v1549
  %1914 = vmatpush1.bf16.msra.mxu0 %v1548
  %1915 = vmatprep.subr.bf16.mxu0 %v1551
  %1916 = vmatpush1.bf16.msra.mxu0 %v1550
  %1917 = vmatprep.subr.bf16.mxu0 %v1553
  %1918 = vmatpush1.bf16.msra.mxu0 %v1552
  %1919 = vmatprep.subr.bf16.mxu0 %v1555
  %1920 = vmatpush1.bf16.msra.mxu0 %v1554
  %1921 = vmatprep.subr.bf16.mxu0 %v1557
  %1922 = vmatpush1.bf16.msra.mxu0 %v1556
  %1923 = vmatprep.subr.bf16.mxu0 %v1559
  %1924 = vmatpush1.bf16.msra.mxu0 %v1558
  %1925 = vmatprep.subr.bf16.mxu0 %v1561
  %1926 = vmatpush1.bf16.msra.mxu0 %v1560
  %1927 = vmatprep.subr.bf16.mxu0 %v1563
  %1928 = vmatpush1.bf16.msra.mxu0 %v1562
  %1929 = vmatprep.subr.bf16.mxu0 %v1565
  %1930 = vmatpush1.bf16.msra.mxu0 %v1564
  %1931 = vmatprep.subr.bf16.mxu0 0
  %1932 = vmatpush1.bf16.msra.mxu0 0
  %1933 = vmatprep.subr.bf16.mxu0 0
  %1934 = vmatpush1.bf16.msra.mxu0 0
  %1935 = vmatprep.subr.bf16.mxu0 0
  %1936 = vmatpush1.bf16.msra.mxu0 0
  %1937 = vmatprep.subr.bf16.mxu0 0
  %1938 = vmatpush1.bf16.msra.mxu0 0
  %1939 = vmatprep.mubr.bf16.mxu0 %v1393
  %1940 = vmatmul.mubr.bf16.gmra.mrb[0].mxu0 %v1745
  %v1941 = vpop.f32.mrb[0].mxu0
  %v1942 = vadd.f32 %v1252, %v1941
  %v1943 = vpop.f32.mrb[0].mxu0
  %v1944 = vadd.f32 %v1256, %v1943
  %v1945 = vpop.f32.mrb[0].mxu0
  %v1946 = vpop.f32.mrb[0].mxu0
  %1947 = vdwg.mxu0
  %1948 = vmatprep.subr.bf16.mxu0 %v1819
  %1949 = vmatpush1.bf16.msra.mxu0 %v1818
  %1950 = vmatprep.subr.bf16.mxu0 %v1821
  %1951 = vmatpush1.bf16.msra.mxu0 %v1820
  %1952 = vmatprep.subr.bf16.mxu0 %v1823
  %1953 = vmatpush1.bf16.msra.mxu0 %v1822
  %1954 = vmatprep.subr.bf16.mxu0 %v1825
  %1955 = vmatpush1.bf16.msra.mxu0 %v1824
  %1956 = vmatprep.subr.bf16.mxu0 %v1827
  %1957 = vmatpush1.bf16.msra.mxu0 %v1826
  %1958 = vmatprep.subr.bf16.mxu0 %v1829
  %1959 = vmatpush1.bf16.msra.mxu0 %v1828
  %1960 = vmatprep.subr.bf16.mxu0 %v1831
  %1961 = vmatpush1.bf16.msra.mxu0 %v1830
  %1962 = vmatprep.subr.bf16.mxu0 %v1833
  %1963 = vmatpush1.bf16.msra.mxu0 %v1832
  %1964 = vmatprep.subr.bf16.mxu0 %v1835
  %1965 = vmatpush1.bf16.msra.mxu0 %v1834
  %1966 = vmatprep.subr.bf16.mxu0 %v1837
  %1967 = vmatpush1.bf16.msra.mxu0 %v1836
  %1968 = vmatprep.subr.bf16.mxu0 %v1839
  %1969 = vmatpush1.bf16.msra.mxu0 %v1838
  %1970 = vmatprep.subr.bf16.mxu0 %v1841
  %1971 = vmatpush1.bf16.msra.mxu0 %v1840
  %1972 = vmatprep.subr.bf16.mxu0 0
  %1973 = vmatpush1.bf16.msra.mxu0 0
  %1974 = vmatprep.subr.bf16.mxu0 0
  %1975 = vmatpush1.bf16.msra.mxu0 0
  %1976 = vmatprep.subr.bf16.mxu0 0
  %1977 = vmatpush1.bf16.msra.mxu0 0
  %1978 = vmatprep.subr.bf16.mxu0 0
  %1979 = vmatpush1.bf16.msra.mxu0 0
  %1980 = vmatprep.mubr.bf16.mxu0 %v1393
  %1981 = vmatmul.mubr.bf16.gmra.mrb[0].mxu0 %v1745
  %v1982 = vpop.f32.mrb[0].mxu0
  %v1983 = vadd.f32 %v1260, %v1982
  %v1984 = vpop.f32.mrb[0].mxu0
  %v1985 = vadd.f32 %v1264, %v1984
  %v1986 = vpop.f32.mrb[0].mxu0
  %v1987 = vpop.f32.mrb[0].mxu0
  %1988 = vdwg.mxu0
  %v1989 = vrot.slane %v1158, 4
  %v1990 = vrot.slane %v1160, 4
  %v1993 = vadd.f32 %v1901, %v1989
  %v1994 = vadd.f32 %v1903, %v1990
  %v1995 = vxor.u32 %v1993, 2147483648
  %v1996 = vxor.u32 %v1994, 2147483648
  %v1997 = vmul.f32 %v1995, 1.442695
  %v1998 = vpow.pop %v1997
  %v1999 = vmul.f32 %v1996, 1.442695
  %v2000 = vpow.pop %v1999
  %v2001 = vadd.f32 %v1998, 1.0
  %v2002 = vadd.f32 %v2000, 1.0
  %v2003 = vrcp.pop %v2001
  %v2004 = vmul.f32 1.0, %v2003
  %v2005 = vrcp.pop %v2002
  %v2006 = vmul.f32 1.0, %v2005
  %v2007 = vtanh.pop %v1994
  %v2008 = vmul.f32 %v2004, %v1703
  %2010 = vrot.lane.b32.xlu0 %v2007, 64
  %v2011 = vpop.permute.xlu0 %2010
  %v2013 = vmul.f32 %v2004, %v2011
  %2015 = vrot.lane.b32.xlu0 %v2013, 64
  %v2016 = vpop.permute.xlu0 %2015
  %v2018 = vadd.f32 %v2008, %v2016
  %v2019 = vtanh.pop %v2018
  %2021 = vrot.lane.b32.xlu0 %v2019, 64
  %v2022 = vpop.permute.xlu0 %2021
  %v2024 = vmul.f32 %v2006, %v2022
  %v2025 = vxor.u32 %v1942, 2147483648
  %v2026 = vxor.u32 %v1944, 2147483648
  %v2027 = vmul.f32 %v2025, 1.442695
  %v2028 = vpow.pop %v2027
  %v2029 = vmul.f32 %v2026, 1.442695
  %v2030 = vpow.pop %v2029
  %v2031 = vadd.f32 %v2028, 1.0
  %v2032 = vadd.f32 %v2030, 1.0
  %v2033 = vrcp.pop %v2031
  %v2034 = vmul.f32 1.0, %v2033
  %v2035 = vrcp.pop %v2032
  %v2036 = vmul.f32 1.0, %v2035
  %v2037 = vtanh.pop %v1944
  %v2038 = vmul.f32 %v2034, %v1733
  %2040 = vrot.lane.b32.xlu0 %v2037, 64
  %v2041 = vpop.permute.xlu0 %2040
  %v2043 = vmul.f32 %v2034, %v2041
  %2045 = vrot.lane.b32.xlu0 %v2043, 64
  %v2046 = vpop.permute.xlu0 %2045
  %v2048 = vadd.f32 %v2038, %v2046
  %v2049 = vtanh.pop %v2048
  %2051 = vrot.lane.b32.xlu0 %v2049, 64
  %v2052 = vpop.permute.xlu0 %2051
  %v2054 = vmul.f32 %v2036, %v2052
  %v2055 = vxor.u32 %v1983, 2147483648
  %v2056 = vxor.u32 %v1985, 2147483648
  %v2057 = vmul.f32 %v2055, 1.442695
  %v2058 = vpow.pop %v2057
  %v2059 = vmul.f32 %v2056, 1.442695
  %v2060 = vpow.pop %v2059
  %v2061 = vadd.f32 %v2058, 1.0
  %v2062 = vadd.f32 %v2060, 1.0
  %v2063 = vrcp.pop %v2061
  %v2064 = vmul.f32 1.0, %v2063
  %v2065 = vrcp.pop %v2062
  %v2066 = vmul.f32 1.0, %v2065
  %v2067 = vtanh.pop %v1985
  %v2068 = vmul.f32 %v2064, 0.0
  %2070 = vrot.lane.b32.xlu0 %v2067, 64
  %v2071 = vpop.permute.xlu0 %2070
  %v2073 = vmul.f32 %v2064, %v2071
  %2075 = vrot.lane.b32.xlu0 %v2073, 64
  %v2076 = vpop.permute.xlu0 %2075
  %v2078 = vadd.f32 %v2068, %v2076
  %v2079 = vtanh.pop %v2078
  %2081 = vrot.lane.b32.xlu0 %v2079, 64
  %v2082 = vpop.permute.xlu0 %2081
  %v2084 = vmul.f32 %v2066, %v2082
  %2086 = vrot.lane.b32.xlu0 %v2054, 64
  %v2087 = vpop.permute.xlu0 %2086
  %v2089 = vsel %vm1391, %v2024, %v2087
  %v2090 = vpack.c.bf16 %v2089, %v2089
  %v2091 = vpack.c.bf16 %v2084, %v2084
  %v2093 = vsel %vm1391, %v2091, 0
  %2095 = vmatprep.subr.bf16.mxu0 %v1344
  %2096 = vmatpush1.bf16.msra.mxu0 %v1343
  %2097 = vmatprep.subr.bf16.mxu0 %v1346
  %2098 = vmatpush1.bf16.msra.mxu0 %v1345
  %2099 = vmatprep.subr.bf16.mxu0 %v1348
  %2100 = vmatpush1.bf16.msra.mxu0 %v1347
  %2101 = vmatprep.subr.bf16.mxu0 %v1350
  %2102 = vmatpush1.bf16.msra.mxu0 %v1349
  %2103 = vmatprep.subr.bf16.mxu0 %v1352
  %2104 = vmatpush1.bf16.msra.mxu0 %v1351
  %2105 = vmatprep.subr.bf16.mxu0 %v1354
  %2106 = vmatpush1.bf16.msra.mxu0 %v1353
  %2107 = vmatprep.subr.bf16.mxu0 %v1356
  %2108 = vmatpush1.bf16.msra.mxu0 %v1355
  %2109 = vmatprep.subr.bf16.mxu0 %v1358
  %2110 = vmatpush1.bf16.msra.mxu0 %v1357
  %2111 = vmatprep.subr.bf16.mxu0 %v1360
  %2112 = vmatpush1.bf16.msra.mxu0 %v1359
  %2113 = vmatprep.subr.bf16.mxu0 %v1362
  %2114 = vmatpush1.bf16.msra.mxu0 %v1361
  %2115 = vmatprep.subr.bf16.mxu0 %v1364
  %2116 = vmatpush1.bf16.msra.mxu0 %v1363
  %2117 = vmatprep.subr.bf16.mxu0 %v1366
  %2118 = vmatpush1.bf16.msra.mxu0 %v1365
  %2119 = vmatprep.subr.bf16.mxu0 0
  %2120 = vmatpush1.bf16.msra.mxu0 0
  %2121 = vmatprep.subr.bf16.mxu0 0
  %2122 = vmatpush1.bf16.msra.mxu0 0
  %2123 = vmatprep.subr.bf16.mxu0 0
  %2124 = vmatpush1.bf16.msra.mxu0 0
  %2125 = vmatprep.subr.bf16.mxu0 0
  %2126 = vmatpush1.bf16.msra.mxu0 0
  %2127 = vmatprep.mubr.bf16.mxu0 %v2093
  %2128 = vmatmul.mubr.bf16.gmra.mrb[0].mxu0 %v2090
  %v2129 = vpop.f32.mrb[0].mxu0
  %v2130 = vadd.f32 %v1244, %v2129
  %v2131 = vpop.f32.mrb[0].mxu0
  %v2132 = vadd.f32 %v1248, %v2131
  %v2133 = vpop.f32.mrb[0].mxu0
  %v2134 = vpop.f32.mrb[0].mxu0
  %2135 = vdwg.mxu0
  %2136 = vmatprep.subr.bf16.mxu0 %v1543
  %2137 = vmatpush1.bf16.msra.mxu0 %v1542
  %2138 = vmatprep.subr.bf16.mxu0 %v1545
  %2139 = vmatpush1.bf16.msra.mxu0 %v1544
  %2140 = vmatprep.subr.bf16.mxu0 %v1547
  %2141 = vmatpush1.bf16.msra.mxu0 %v1546
  %2142 = vmatprep.subr.bf16.mxu0 %v1549
  %2143 = vmatpush1.bf16.msra.mxu0 %v1548
  %2144 = vmatprep.subr.bf16.mxu0 %v1551
  %2145 = vmatpush1.bf16.msra.mxu0 %v1550
  %2146 = vmatprep.subr.bf16.mxu0 %v1553
  %2147 = vmatpush1.bf16.msra.mxu0 %v1552
  %2148 = vmatprep.subr.bf16.mxu0 %v1555
  %2149 = vmatpush1.bf16.msra.mxu0 %v1554
  %2150 = vmatprep.subr.bf16.mxu0 %v1557
  %2151 = vmatpush1.bf16.msra.mxu0 %v1556
  %2152 = vmatprep.subr.bf16.mxu0 %v1559
  %2153 = vmatpush1.bf16.msra.mxu0 %v1558
  %2154 = vmatprep.subr.bf16.mxu0 %v1561
  %2155 = vmatpush1.bf16.msra.mxu0 %v1560
  %2156 = vmatprep.subr.bf16.mxu0 %v1563
  %2157 = vmatpush1.bf16.msra.mxu0 %v1562
  %2158 = vmatprep.subr.bf16.mxu0 %v1565
  %2159 = vmatpush1.bf16.msra.mxu0 %v1564
  %2160 = vmatprep.subr.bf16.mxu0 0
  %2161 = vmatpush1.bf16.msra.mxu0 0
  %2162 = vmatprep.subr.bf16.mxu0 0
  %2163 = vmatpush1.bf16.msra.mxu0 0
  %2164 = vmatprep.subr.bf16.mxu0 0
  %2165 = vmatpush1.bf16.msra.mxu0 0
  %2166 = vmatprep.subr.bf16.mxu0 0
  %2167 = vmatpush1.bf16.msra.mxu0 0
  %2168 = vmatprep.mubr.bf16.mxu0 %v2093
  %2169 = vmatmul.mubr.bf16.gmra.mrb[0].mxu0 %v2090
  %v2170 = vpop.f32.mrb[0].mxu0
  %v2171 = vadd.f32 %v1252, %v2170
  %v2172 = vpop.f32.mrb[0].mxu0
  %v2173 = vadd.f32 %v1256, %v2172
  %v2174 = vpop.f32.mrb[0].mxu0
  %v2175 = vpop.f32.mrb[0].mxu0
  %2176 = vdwg.mxu0
  %2177 = vmatprep.subr.bf16.mxu0 %v1819
  %2178 = vmatpush1.bf16.msra.mxu0 %v1818
  %2179 = vmatprep.subr.bf16.mxu0 %v1821
  %2180 = vmatpush1.bf16.msra.mxu0 %v1820
  %2181 = vmatprep.subr.bf16.mxu0 %v1823
  %2182 = vmatpush1.bf16.msra.mxu0 %v1822
  %2183 = vmatprep.subr.bf16.mxu0 %v1825
  %2184 = vmatpush1.bf16.msra.mxu0 %v1824
  %2185 = vmatprep.subr.bf16.mxu0 %v1827
  %2186 = vmatpush1.bf16.msra.mxu0 %v1826
  %2187 = vmatprep.subr.bf16.mxu0 %v1829
  %2188 = vmatpush1.bf16.msra.mxu0 %v1828
  %2189 = vmatprep.subr.bf16.mxu0 %v1831
  %2190 = vmatpush1.bf16.msra.mxu0 %v1830
  %2191 = vmatprep.subr.bf16.mxu0 %v1833
  %2192 = vmatpush1.bf16.msra.mxu0 %v1832
  %2193 = vmatprep.subr.bf16.mxu0 %v1835
  %2194 = vmatpush1.bf16.msra.mxu0 %v1834
  %2195 = vmatprep.subr.bf16.mxu0 %v1837
  %2196 = vmatpush1.bf16.msra.mxu0 %v1836
  %2197 = vmatprep.subr.bf16.mxu0 %v1839
  %2198 = vmatpush1.bf16.msra.mxu0 %v1838
  %2199 = vmatprep.subr.bf16.mxu0 %v1841
  %2200 = vmatpush1.bf16.msra.mxu0 %v1840
  %2201 = vmatprep.subr.bf16.mxu0 0
  %2202 = vmatpush1.bf16.msra.mxu0 0
  %2203 = vmatprep.subr.bf16.mxu0 0
  %2204 = vmatpush1.bf16.msra.mxu0 0
  %2205 = vmatprep.subr.bf16.mxu0 0
  %2206 = vmatpush1.bf16.msra.mxu0 0
  %2207 = vmatprep.subr.bf16.mxu0 0
  %2208 = vmatpush1.bf16.msra.mxu0 0
  %2209 = vmatprep.mubr.bf16.mxu0 %v2093
  %2210 = vmatmul.mubr.bf16.gmra.mrb[0].mxu0 %v2090
  %v2211 = vpop.f32.mrb[0].mxu0
  %v2212 = vadd.f32 %v1260, %v2211
  %v2213 = vpop.f32.mrb[0].mxu0
  %v2214 = vadd.f32 %v1264, %v2213
  %v2215 = vpop.f32.mrb[0].mxu0
  %v2216 = vpop.f32.mrb[0].mxu0
  %2217 = vdwg.mxu0
  %v2218 = vrot.slane %v1158, 6
  %v2219 = vrot.slane %v1160, 6
  %v2222 = vadd.f32 %v2130, %v2218
  %v2223 = vadd.f32 %v2132, %v2219
  %v2224 = vxor.u32 %v2222, 2147483648
  %v2225 = vxor.u32 %v2223, 2147483648
  %v2226 = vmul.f32 %v2224, 1.442695
  %v2227 = vpow.pop %v2226
  %v2228 = vmul.f32 %v2225, 1.442695
  %v2229 = vpow.pop %v2228
  %v2230 = vadd.f32 %v2227, 1.0
  %v2231 = vadd.f32 %v2229, 1.0
  %v2232 = vrcp.pop %v2230
  %v2233 = vmul.f32 1.0, %v2232
  %v2234 = vrcp.pop %v2231
  %v2235 = vmul.f32 1.0, %v2234
  %v2236 = vtanh.pop %v2223
  %v2237 = vmul.f32 %v2233, %v2018
  %2239 = vrot.lane.b32.xlu0 %v2236, 64
  %v2240 = vpop.permute.xlu0 %2239
  %v2242 = vmul.f32 %v2233, %v2240
  %2244 = vrot.lane.b32.xlu0 %v2242, 64
  %v2245 = vpop.permute.xlu0 %2244
  %v2247 = vadd.f32 %v2237, %v2245
  %v2248 = vtanh.pop %v2247
  %2250 = vrot.lane.b32.xlu0 %v2248, 64
  %v2251 = vpop.permute.xlu0 %2250
  %v2253 = vmul.f32 %v2235, %v2251
  %v2254 = vxor.u32 %v2171, 2147483648
  %v2255 = vxor.u32 %v2173, 2147483648
  %v2256 = vmul.f32 %v2254, 1.442695
  %v2257 = vpow.pop %v2256
  %v2258 = vmul.f32 %v2255, 1.442695
  %v2259 = vpow.pop %v2258
  %v2260 = vadd.f32 %v2257, 1.0
  %v2261 = vadd.f32 %v2259, 1.0
  %v2262 = vrcp.pop %v2260
  %v2263 = vmul.f32 1.0, %v2262
  %v2264 = vrcp.pop %v2261
  %v2265 = vmul.f32 1.0, %v2264
  %v2266 = vtanh.pop %v2173
  %v2267 = vmul.f32 %v2263, %v2048
  %2269 = vrot.lane.b32.xlu0 %v2266, 64
  %v2270 = vpop.permute.xlu0 %2269
  %v2272 = vmul.f32 %v2263, %v2270
  %2274 = vrot.lane.b32.xlu0 %v2272, 64
  %v2275 = vpop.permute.xlu0 %2274
  %v2277 = vadd.f32 %v2267, %v2275
  %v2278 = vtanh.pop %v2277
  %2280 = vrot.lane.b32.xlu0 %v2278, 64
  %v2281 = vpop.permute.xlu0 %2280
  %v2283 = vmul.f32 %v2265, %v2281
  %v2284 = vxor.u32 %v2212, 2147483648
  %v2285 = vxor.u32 %v2214, 2147483648
  %v2286 = vmul.f32 %v2284, 1.442695
  %v2287 = vpow.pop %v2286
  %v2288 = vmul.f32 %v2285, 1.442695
  %v2289 = vpow.pop %v2288
  %v2290 = vadd.f32 %v2287, 1.0
  %v2291 = vadd.f32 %v2289, 1.0
  %v2292 = vrcp.pop %v2290
  %v2293 = vmul.f32 1.0, %v2292
  %v2294 = vrcp.pop %v2291
  %v2295 = vmul.f32 1.0, %v2294
  %v2296 = vtanh.pop %v2214
  %v2297 = vmul.f32 %v2293, %v2078
  %2299 = vrot.lane.b32.xlu0 %v2296, 64
  %v2300 = vpop.permute.xlu0 %2299
  %v2302 = vmul.f32 %v2293, %v2300
  %2304 = vrot.lane.b32.xlu0 %v2302, 64
  %v2305 = vpop.permute.xlu0 %2304
  %v2307 = vadd.f32 %v2297, %v2305
  %v2308 = vtanh.pop %v2307
  %2310 = vrot.lane.b32.xlu0 %v2308, 64
  %v2311 = vpop.permute.xlu0 %2310
  %v2313 = vmul.f32 %v2295, %v2311
  %2315 = vrot.lane.b32.xlu0 %v2283, 64
  %v2316 = vpop.permute.xlu0 %2315
  %v2318 = vsel %vm1391, %v2253, %v2316
  %v2319 = vpack.c.bf16 %v2318, %v2318
  %v2320 = vpack.c.bf16 %v2313, %v2313
  %v2322 = vsel %vm1391, %v2320, 0
  %2324 = vmatprep.subr.bf16.mxu0 %v1344
  %2325 = vmatpush1.bf16.msra.mxu0 %v1343
  %2326 = vmatprep.subr.bf16.mxu0 %v1346
  %2327 = vmatpush1.bf16.msra.mxu0 %v1345
  %2328 = vmatprep.subr.bf16.mxu0 %v1348
  %2329 = vmatpush1.bf16.msra.mxu0 %v1347
  %2330 = vmatprep.subr.bf16.mxu0 %v1350
  %2331 = vmatpush1.bf16.msra.mxu0 %v1349
  %2332 = vmatprep.subr.bf16.mxu0 %v1352
  %2333 = vmatpush1.bf16.msra.mxu0 %v1351
  %2334 = vmatprep.subr.bf16.mxu0 %v1354
  %2335 = vmatpush1.bf16.msra.mxu0 %v1353
  %2336 = vmatprep.subr.bf16.mxu0 %v1356
  %2337 = vmatpush1.bf16.msra.mxu0 %v1355
  %2338 = vmatprep.subr.bf16.mxu0 %v1358
  %2339 = vmatpush1.bf16.msra.mxu0 %v1357
  %2340 = vmatprep.subr.bf16.mxu0 %v1360
  %2341 = vmatpush1.bf16.msra.mxu0 %v1359
  %2342 = vmatprep.subr.bf16.mxu0 %v1362
  %2343 = vmatpush1.bf16.msra.mxu0 %v1361
  %2344 = vmatprep.subr.bf16.mxu0 %v1364
  %2345 = vmatpush1.bf16.msra.mxu0 %v1363
  %2346 = vmatprep.subr.bf16.mxu0 %v1366
  %2347 = vmatpush1.bf16.msra.mxu0 %v1365
  %2348 = vmatprep.subr.bf16.mxu0 0
  %2349 = vmatpush1.bf16.msra.mxu0 0
  %2350 = vmatprep.subr.bf16.mxu0 0
  %2351 = vmatpush1.bf16.msra.mxu0 0
  %2352 = vmatprep.subr.bf16.mxu0 0
  %2353 = vmatpush1.bf16.msra.mxu0 0
  %2354 = vmatprep.subr.bf16.mxu0 0
  %2355 = vmatpush1.bf16.msra.mxu0 0
  %2356 = vmatprep.mubr.bf16.mxu0 %v2322
  %2357 = vmatmul.mubr.bf16.gmra.mrb[0].mxu0 %v2319
  %v2358 = vpop.f32.mrb[0].mxu0
  %v2359 = vadd.f32 %v1244, %v2358
  %v2360 = vpop.f32.mrb[0].mxu0
  %v2361 = vadd.f32 %v1248, %v2360
  %v2362 = vpop.f32.mrb[0].mxu0
  %v2363 = vpop.f32.mrb[0].mxu0
  %2364 = vdwg.mxu0
  %2365 = vmatprep.subr.bf16.mxu0 %v1543
  %2366 = vmatpush1.bf16.msra.mxu0 %v1542
  %2367 = vmatprep.subr.bf16.mxu0 %v1545
  %2368 = vmatpush1.bf16.msra.mxu0 %v1544
  %2369 = vmatprep.subr.bf16.mxu0 %v1547
  %2370 = vmatpush1.bf16.msra.mxu0 %v1546
  %2371 = vmatprep.subr.bf16.mxu0 %v1549
  %2372 = vmatpush1.bf16.msra.mxu0 %v1548
  %2373 = vmatprep.subr.bf16.mxu0 %v1551
  %2374 = vmatpush1.bf16.msra.mxu0 %v1550
  %2375 = vmatprep.subr.bf16.mxu0 %v1553
  %2376 = vmatpush1.bf16.msra.mxu0 %v1552
  %2377 = vmatprep.subr.bf16.mxu0 %v1555
  %2378 = vmatpush1.bf16.msra.mxu0 %v1554
  %2379 = vmatprep.subr.bf16.mxu0 %v1557
  %2380 = vmatpush1.bf16.msra.mxu0 %v1556
  %2381 = vmatprep.subr.bf16.mxu0 %v1559
  %2382 = vmatpush1.bf16.msra.mxu0 %v1558
  %2383 = vmatprep.subr.bf16.mxu0 %v1561
  %2384 = vmatpush1.bf16.msra.mxu0 %v1560
  %2385 = vmatprep.subr.bf16.mxu0 %v1563
  %2386 = vmatpush1.bf16.msra.mxu0 %v1562
  %2387 = vmatprep.subr.bf16.mxu0 %v1565
  %2388 = vmatpush1.bf16.msra.mxu0 %v1564
  %2389 = vmatprep.subr.bf16.mxu0 0
  %2390 = vmatpush1.bf16.msra.mxu0 0
  %2391 = vmatprep.subr.bf16.mxu0 0
  %2392 = vmatpush1.bf16.msra.mxu0 0
  %2393 = vmatprep.subr.bf16.mxu0 0
  %2394 = vmatpush1.bf16.msra.mxu0 0
  %2395 = vmatprep.subr.bf16.mxu0 0
  %2396 = vmatpush1.bf16.msra.mxu0 0
  %2397 = vmatprep.mubr.bf16.mxu0 %v2322
  %2398 = vmatmul.mubr.bf16.gmra.mrb[0].mxu0 %v2319
  %v2399 = vpop.f32.mrb[0].mxu0
  %v2400 = vadd.f32 %v1252, %v2399
  %v2401 = vpop.f32.mrb[0].mxu0
  %v2402 = vadd.f32 %v1256, %v2401
  %v2403 = vpop.f32.mrb[0].mxu0
  %v2404 = vpop.f32.mrb[0].mxu0
  %2405 = vdwg.mxu0
  %2406 = vmatprep.subr.bf16.mxu0 %v1819
  %2407 = vmatpush1.bf16.msra.mxu0 %v1818
  %2408 = vmatprep.subr.bf16.mxu0 %v1821
  %2409 = vmatpush1.bf16.msra.mxu0 %v1820
  %2410 = vmatprep.subr.bf16.mxu0 %v1823
  %2411 = vmatpush1.bf16.msra.mxu0 %v1822
  %2412 = vmatprep.subr.bf16.mxu0 %v1825
  %2413 = vmatpush1.bf16.msra.mxu0 %v1824
  %2414 = vmatprep.subr.bf16.mxu0 %v1827
  %2415 = vmatpush1.bf16.msra.mxu0 %v1826
  %2416 = vmatprep.subr.bf16.mxu0 %v1829
  %2417 = vmatpush1.bf16.msra.mxu0 %v1828
  %2418 = vmatprep.subr.bf16.mxu0 %v1831
  %2419 = vmatpush1.bf16.msra.mxu0 %v1830
  %2420 = vmatprep.subr.bf16.mxu0 %v1833
  %2421 = vmatpush1.bf16.msra.mxu0 %v1832
  %2422 = vmatprep.subr.bf16.mxu0 %v1835
  %2423 = vmatpush1.bf16.msra.mxu0 %v1834
  %2424 = vmatprep.subr.bf16.mxu0 %v1837
  %2425 = vmatpush1.bf16.msra.mxu0 %v1836
  %2426 = vmatprep.subr.bf16.mxu0 %v1839
  %2427 = vmatpush1.bf16.msra.mxu0 %v1838
  %2428 = vmatprep.subr.bf16.mxu0 %v1841
  %2429 = vmatpush1.bf16.msra.mxu0 %v1840
  %2430 = vmatprep.subr.bf16.mxu0 0
  %2431 = vmatpush1.bf16.msra.mxu0 0
  %2432 = vmatprep.subr.bf16.mxu0 0
  %2433 = vmatpush1.bf16.msra.mxu0 0
  %2434 = vmatprep.subr.bf16.mxu0 0
  %2435 = vmatpush1.bf16.msra.mxu0 0
  %2436 = vmatprep.subr.bf16.mxu0 0
  %2437 = vmatpush1.bf16.msra.mxu0 0
  %2438 = vmatprep.mubr.bf16.mxu0 %v2322
  %2439 = vmatmul.mubr.bf16.gmra.mrb[0].mxu0 %v2319
  %v2440 = vpop.f32.mrb[0].mxu0
  %v2441 = vadd.f32 %v1260, %v2440
  %v2442 = vpop.f32.mrb[0].mxu0
  %v2443 = vadd.f32 %v1264, %v2442
  %v2444 = vpop.f32.mrb[0].mxu0
  %v2445 = vpop.f32.mrb[0].mxu0
  %2446 = vdwg.mxu0
  %v2447 = vadd.f32 %v2359, %v1162
  %v2448 = vadd.f32 %v2361, %v1164
  %v2449 = vxor.u32 %v2447, 2147483648
  %v2450 = vxor.u32 %v2448, 2147483648
  %v2451 = vmul.f32 %v2449, 1.442695
  %v2452 = vpow.pop %v2451
  %v2453 = vmul.f32 %v2450, 1.442695
  %v2454 = vpow.pop %v2453
  %v2455 = vadd.f32 %v2452, 1.0
  %v2456 = vadd.f32 %v2454, 1.0
  %v2457 = vrcp.pop %v2455
  %v2458 = vmul.f32 1.0, %v2457
  %v2459 = vrcp.pop %v2456
  %v2460 = vmul.f32 1.0, %v2459
  %v2461 = vtanh.pop %v2448
  %v2462 = vmul.f32 %v2458, %v2247
  %2464 = vrot.lane.b32.xlu0 %v2461, 64
  %v2465 = vpop.permute.xlu0 %2464
  %v2467 = vmul.f32 %v2458, %v2465
  %2469 = vrot.lane.b32.xlu0 %v2467, 64
  %v2470 = vpop.permute.xlu0 %2469
  %v2472 = vadd.f32 %v2462, %v2470
  %v2473 = vtanh.pop %v2472
  %2475 = vrot.lane.b32.xlu0 %v2473, 64
  %v2476 = vpop.permute.xlu0 %2475
  %v2478 = vmul.f32 %v2460, %v2476
  %v2479 = vxor.u32 %v2400, 2147483648
  %v2480 = vxor.u32 %v2402, 2147483648
  %v2481 = vmul.f32 %v2479, 1.442695
  %v2482 = vpow.pop %v2481
  %v2483 = vmul.f32 %v2480, 1.442695
  %v2484 = vpow.pop %v2483
  %v2485 = vadd.f32 %v2482, 1.0
  %v2486 = vadd.f32 %v2484, 1.0
  %v2487 = vrcp.pop %v2485
  %v2488 = vmul.f32 1.0, %v2487
  %v2489 = vrcp.pop %v2486
  %v2490 = vmul.f32 1.0, %v2489
  %v2491 = vtanh.pop %v2402
  %v2492 = vmul.f32 %v2488, %v2277
  %2494 = vrot.lane.b32.xlu0 %v2491, 64
  %v2495 = vpop.permute.xlu0 %2494
  %v2497 = vmul.f32 %v2488, %v2495
  %2499 = vrot.lane.b32.xlu0 %v2497, 64
  %v2500 = vpop.permute.xlu0 %2499
  %v2502 = vadd.f32 %v2492, %v2500
  %v2503 = vtanh.pop %v2502
  %2505 = vrot.lane.b32.xlu0 %v2503, 64
  %v2506 = vpop.permute.xlu0 %2505
  %v2508 = vmul.f32 %v2490, %v2506
  %v2509 = vxor.u32 %v2441, 2147483648
  %v2510 = vxor.u32 %v2443, 2147483648
  %v2511 = vmul.f32 %v2509, 1.442695
  %v2512 = vpow.pop %v2511
  %v2513 = vmul.f32 %v2510, 1.442695
  %v2514 = vpow.pop %v2513
  %v2515 = vadd.f32 %v2512, 1.0
  %v2516 = vadd.f32 %v2514, 1.0
  %v2517 = vrcp.pop %v2515
  %v2518 = vmul.f32 1.0, %v2517
  %v2519 = vrcp.pop %v2516
  %v2520 = vmul.f32 1.0, %v2519
  %v2521 = vtanh.pop %v2443
  %v2522 = vmul.f32 %v2518, %v2307
  %2524 = vrot.lane.b32.xlu0 %v2521, 64
  %v2525 = vpop.permute.xlu0 %2524
  %v2527 = vmul.f32 %v2518, %v2525
  %2529 = vrot.lane.b32.xlu0 %v2527, 64
  %v2530 = vpop.permute.xlu0 %2529
  %v2532 = vadd.f32 %v2522, %v2530
  %v2533 = vtanh.pop %v2532
  %2535 = vrot.lane.b32.xlu0 %v2533, 64
  %v2536 = vpop.permute.xlu0 %2535
  %v2538 = vmul.f32 %v2520, %v2536
  %2540 = vrot.lane.b32.xlu0 %v2508, 64
  %v2541 = vpop.permute.xlu0 %2540
  %v2543 = vsel %vm1391, %v2478, %v2541
  %v2544 = vpack.c.bf16 %v2543, %v2543
  %v2545 = vpack.c.bf16 %v2538, %v2538
  %v2547 = vsel %vm1391, %v2545, 0
  %2549 = vmatprep.subr.bf16.mxu0 %v1344
  %2550 = vmatpush1.bf16.msra.mxu0 %v1343
  %2551 = vmatprep.subr.bf16.mxu0 %v1346
  %2552 = vmatpush1.bf16.msra.mxu0 %v1345
  %2553 = vmatprep.subr.bf16.mxu0 %v1348
  %2554 = vmatpush1.bf16.msra.mxu0 %v1347
  %2555 = vmatprep.subr.bf16.mxu0 %v1350
  %2556 = vmatpush1.bf16.msra.mxu0 %v1349
  %2557 = vmatprep.subr.bf16.mxu0 %v1352
  %2558 = vmatpush1.bf16.msra.mxu0 %v1351
  %2559 = vmatprep.subr.bf16.mxu0 %v1354
  %2560 = vmatpush1.bf16.msra.mxu0 %v1353
  %2561 = vmatprep.subr.bf16.mxu0 %v1356
  %2562 = vmatpush1.bf16.msra.mxu0 %v1355
  %2563 = vmatprep.subr.bf16.mxu0 %v1358
  %2564 = vmatpush1.bf16.msra.mxu0 %v1357
  %2565 = vmatprep.subr.bf16.mxu0 %v1360
  %2566 = vmatpush1.bf16.msra.mxu0 %v1359
  %2567 = vmatprep.subr.bf16.mxu0 %v1362
  %2568 = vmatpush1.bf16.msra.mxu0 %v1361
  %2569 = vmatprep.subr.bf16.mxu0 %v1364
  %2570 = vmatpush1.bf16.msra.mxu0 %v1363
  %2571 = vmatprep.subr.bf16.mxu0 %v1366
  %2572 = vmatpush1.bf16.msra.mxu0 %v1365
  %2573 = vmatprep.subr.bf16.mxu0 0
  %2574 = vmatpush1.bf16.msra.mxu0 0
  %2575 = vmatprep.subr.bf16.mxu0 0
  %2576 = vmatpush1.bf16.msra.mxu0 0
  %2577 = vmatprep.subr.bf16.mxu0 0
  %2578 = vmatpush1.bf16.msra.mxu0 0
  %2579 = vmatprep.subr.bf16.mxu0 0
  %2580 = vmatpush1.bf16.msra.mxu0 0
  %2581 = vmatprep.mubr.bf16.mxu0 %v2547
  %2582 = vmatmul.mubr.bf16.gmra.mrb[0].mxu0 %v2544
  %v2583 = vpop.f32.mrb[0].mxu0
  %v2584 = vadd.f32 %v1244, %v2583
  %v2585 = vpop.f32.mrb[0].mxu0
  %v2586 = vadd.f32 %v1248, %v2585
  %v2587 = vpop.f32.mrb[0].mxu0
  %v2588 = vpop.f32.mrb[0].mxu0
  %2589 = vdwg.mxu0
  %2590 = vmatprep.subr.bf16.mxu0 %v1543
  %2591 = vmatpush1.bf16.msra.mxu0 %v1542
  %2592 = vmatprep.subr.bf16.mxu0 %v1545
  %2593 = vmatpush1.bf16.msra.mxu0 %v1544
  %2594 = vmatprep.subr.bf16.mxu0 %v1547
  %2595 = vmatpush1.bf16.msra.mxu0 %v1546
  %2596 = vmatprep.subr.bf16.mxu0 %v1549
  %2597 = vmatpush1.bf16.msra.mxu0 %v1548
  %2598 = vmatprep.subr.bf16.mxu0 %v1551
  %2599 = vmatpush1.bf16.msra.mxu0 %v1550
  %2600 = vmatprep.subr.bf16.mxu0 %v1553
  %2601 = vmatpush1.bf16.msra.mxu0 %v1552
  %2602 = vmatprep.subr.bf16.mxu0 %v1555
  %2603 = vmatpush1.bf16.msra.mxu0 %v1554
  %2604 = vmatprep.subr.bf16.mxu0 %v1557
  %2605 = vmatpush1.bf16.msra.mxu0 %v1556
  %2606 = vmatprep.subr.bf16.mxu0 %v1559
  %2607 = vmatpush1.bf16.msra.mxu0 %v1558
  %2608 = vmatprep.subr.bf16.mxu0 %v1561
  %2609 = vmatpush1.bf16.msra.mxu0 %v1560
  %2610 = vmatprep.subr.bf16.mxu0 %v1563
  %2611 = vmatpush1.bf16.msra.mxu0 %v1562
  %2612 = vmatprep.subr.bf16.mxu0 %v1565
  %2613 = vmatpush1.bf16.msra.mxu0 %v1564
  %2614 = vmatprep.subr.bf16.mxu0 0
  %2615 = vmatpush1.bf16.msra.mxu0 0
  %2616 = vmatprep.subr.bf16.mxu0 0
  %2617 = vmatpush1.bf16.msra.mxu0 0
  %2618 = vmatprep.subr.bf16.mxu0 0
  %2619 = vmatpush1.bf16.msra.mxu0 0
  %2620 = vmatprep.subr.bf16.mxu0 0
  %2621 = vmatpush1.bf16.msra.mxu0 0
  %2622 = vmatprep.mubr.bf16.mxu0 %v2547
  %2623 = vmatmul.mubr.bf16.gmra.mrb[0].mxu0 %v2544
  %v2624 = vpop.f32.mrb[0].mxu0
  %v2625 = vadd.f32 %v1252, %v2624
  %v2626 = vpop.f32.mrb[0].mxu0
  %v2627 = vadd.f32 %v1256, %v2626
  %v2628 = vpop.f32.mrb[0].mxu0
  %v2629 = vpop.f32.mrb[0].mxu0
  %2630 = vdwg.mxu0
  %2631 = vmatprep.subr.bf16.mxu0 %v1819
  %2632 = vmatpush1.bf16.msra.mxu0 %v1818
  %2633 = vmatprep.subr.bf16.mxu0 %v1821
  %2634 = vmatpush1.bf16.msra.mxu0 %v1820
  %2635 = vmatprep.subr.bf16.mxu0 %v1823
  %2636 = vmatpush1.bf16.msra.mxu0 %v1822
  %2637 = vmatprep.subr.bf16.mxu0 %v1825
  %2638 = vmatpush1.bf16.msra.mxu0 %v1824
  %2639 = vmatprep.subr.bf16.mxu0 %v1827
  %2640 = vmatpush1.bf16.msra.mxu0 %v1826
  %2641 = vmatprep.subr.bf16.mxu0 %v1829
  %2642 = vmatpush1.bf16.msra.mxu0 %v1828
  %2643 = vmatprep.subr.bf16.mxu0 %v1831
  %2644 = vmatpush1.bf16.msra.mxu0 %v1830
  %2645 = vmatprep.subr.bf16.mxu0 %v1833
  %2646 = vmatpush1.bf16.msra.mxu0 %v1832
  %2647 = vmatprep.subr.bf16.mxu0 %v1835
  %2648 = vmatpush1.bf16.msra.mxu0 %v1834
  %2649 = vmatprep.subr.bf16.mxu0 %v1837
  %2650 = vmatpush1.bf16.msra.mxu0 %v1836
  %2651 = vmatprep.subr.bf16.mxu0 %v1839
  %2652 = vmatpush1.bf16.msra.mxu0 %v1838
  %2653 = vmatprep.subr.bf16.mxu0 %v1841
  %2654 = vmatpush1.bf16.msra.mxu0 %v1840
  %2655 = vmatprep.subr.bf16.mxu0 0
  %2656 = vmatpush1.bf16.msra.mxu0 0
  %2657 = vmatprep.subr.bf16.mxu0 0
  %2658 = vmatpush1.bf16.msra.mxu0 0
  %2659 = vmatprep.subr.bf16.mxu0 0
  %2660 = vmatpush1.bf16.msra.mxu0 0
  %2661 = vmatprep.subr.bf16.mxu0 0
  %2662 = vmatpush1.bf16.msra.mxu0 0
  %2663 = vmatprep.mubr.bf16.mxu0 %v2547
  %2664 = vmatmul.mubr.bf16.gmra.mrb[0].mxu0 %v2544
  %v2665 = vpop.f32.mrb[0].mxu0
  %v2666 = vadd.f32 %v1260, %v2665
  %v2667 = vpop.f32.mrb[0].mxu0
  %v2668 = vadd.f32 %v1264, %v2667
  %v2669 = vpop.f32.mrb[0].mxu0
  %v2670 = vpop.f32.mrb[0].mxu0
  %2671 = vdwg.mxu0
  %v2674 = vrot.slane %v1162, 2
  %v2675 = vrot.slane %v1164, 2
  %v2678 = vadd.f32 %v2584, %v2674
  %v2679 = vadd.f32 %v2586, %v2675
  %v2680 = vxor.u32 %v2678, 2147483648
  %v2681 = vxor.u32 %v2679, 2147483648
  %v2682 = vmul.f32 %v2680, 1.442695
  %v2683 = vpow.pop %v2682
  %v2684 = vmul.f32 %v2681, 1.442695
  %v2685 = vpow.pop %v2684
  %v2686 = vadd.f32 %v2683, 1.0
  %v2687 = vadd.f32 %v2685, 1.0
  %v2688 = vrcp.pop %v2686
  %v2689 = vmul.f32 1.0, %v2688
  %v2690 = vrcp.pop %v2687
  %v2691 = vmul.f32 1.0, %v2690
  %v2692 = vtanh.pop %v2679
  %v2693 = vmul.f32 %v2689, %v2472
  %2695 = vrot.lane.b32.xlu0 %v2692, 64
  %v2696 = vpop.permute.xlu0 %2695
  %v2698 = vmul.f32 %v2689, %v2696
  %2700 = vrot.lane.b32.xlu0 %v2698, 64
  %v2701 = vpop.permute.xlu0 %2700
  %v2703 = vadd.f32 %v2693, %v2701
  %v2704 = vtanh.pop %v2703
  %2706 = vrot.lane.b32.xlu0 %v2704, 64
  %v2707 = vpop.permute.xlu0 %2706
  %v2709 = vmul.f32 %v2691, %v2707
  %v2710 = vxor.u32 %v2625, 2147483648
  %v2711 = vxor.u32 %v2627, 2147483648
  %v2712 = vmul.f32 %v2710, 1.442695
  %v2713 = vpow.pop %v2712
  %v2714 = vmul.f32 %v2711, 1.442695
  %v2715 = vpow.pop %v2714
  %v2716 = vadd.f32 %v2713, 1.0
  %v2717 = vadd.f32 %v2715, 1.0
  %v2718 = vrcp.pop %v2716
  %v2719 = vmul.f32 1.0, %v2718
  %v2720 = vrcp.pop %v2717
  %v2721 = vmul.f32 1.0, %v2720
  %v2722 = vtanh.pop %v2627
  %v2723 = vmul.f32 %v2719, %v2502
  %2725 = vrot.lane.b32.xlu0 %v2722, 64
  %v2726 = vpop.permute.xlu0 %2725
  %v2728 = vmul.f32 %v2719, %v2726
  %2730 = vrot.lane.b32.xlu0 %v2728, 64
  %v2731 = vpop.permute.xlu0 %2730
  %v2733 = vadd.f32 %v2723, %v2731
  %v2734 = vtanh.pop %v2733
  %2736 = vrot.lane.b32.xlu0 %v2734, 64
  %v2737 = vpop.permute.xlu0 %2736
  %v2739 = vmul.f32 %v2721, %v2737
  %v2740 = vxor.u32 %v2666, 2147483648
  %v2741 = vxor.u32 %v2668, 2147483648
  %v2742 = vmul.f32 %v2740, 1.442695
  %v2743 = vpow.pop %v2742
  %v2744 = vmul.f32 %v2741, 1.442695
  %v2745 = vpow.pop %v2744
  %v2746 = vadd.f32 %v2743, 1.0
  %v2747 = vadd.f32 %v2745, 1.0
  %v2748 = vrcp.pop %v2746
  %v2749 = vmul.f32 1.0, %v2748
  %v2750 = vrcp.pop %v2747
  %v2751 = vmul.f32 1.0, %v2750
  %v2752 = vtanh.pop %v2668
  %v2753 = vmul.f32 %v2749, %v2532
  %2755 = vrot.lane.b32.xlu0 %v2752, 64
  %v2756 = vpop.permute.xlu0 %2755
  %v2758 = vmul.f32 %v2749, %v2756
  %2760 = vrot.lane.b32.xlu0 %v2758, 64
  %v2761 = vpop.permute.xlu0 %2760
  %v2763 = vadd.f32 %v2753, %v2761
  %v2764 = vtanh.pop %v2763
  %2766 = vrot.lane.b32.xlu0 %v2764, 64
  %v2767 = vpop.permute.xlu0 %2766
  %v2769 = vmul.f32 %v2751, %v2767
  %2771 = vrot.lane.b32.xlu0 %v2739, 64
  %v2772 = vpop.permute.xlu0 %2771
  %v2774 = vsel %vm1391, %v2709, %v2772
  %v2775 = vpack.c.bf16 %v2774, %v2774
  %v2776 = vpack.c.bf16 %v2769, %v2769
  %v2778 = vsel %vm1391, %v2776, 0
  %2780 = vmatprep.subr.bf16.mxu0 %v1344
  %2781 = vmatpush1.bf16.msra.mxu0 %v1343
  %2782 = vmatprep.subr.bf16.mxu0 %v1346
  %2783 = vmatpush1.bf16.msra.mxu0 %v1345
  %2784 = vmatprep.subr.bf16.mxu0 %v1348
  %2785 = vmatpush1.bf16.msra.mxu0 %v1347
  %2786 = vmatprep.subr.bf16.mxu0 %v1350
  %2787 = vmatpush1.bf16.msra.mxu0 %v1349
  %2788 = vmatprep.subr.bf16.mxu0 %v1352
  %2789 = vmatpush1.bf16.msra.mxu0 %v1351
  %2790 = vmatprep.subr.bf16.mxu0 %v1354
  %2791 = vmatpush1.bf16.msra.mxu0 %v1353
  %2792 = vmatprep.subr.bf16.mxu0 %v1356
  %2793 = vmatpush1.bf16.msra.mxu0 %v1355
  %2794 = vmatprep.subr.bf16.mxu0 %v1358
  %2795 = vmatpush1.bf16.msra.mxu0 %v1357
  %2796 = vmatprep.subr.bf16.mxu0 %v1360
  %2797 = vmatpush1.bf16.msra.mxu0 %v1359
  %2798 = vmatprep.subr.bf16.mxu0 %v1362
  %2799 = vmatpush1.bf16.msra.mxu0 %v1361
  %2800 = vmatprep.subr.bf16.mxu0 %v1364
  %2801 = vmatpush1.bf16.msra.mxu0 %v1363
  %2802 = vmatprep.subr.bf16.mxu0 %v1366
  %2803 = vmatpush1.bf16.msra.mxu0 %v1365
  %2804 = vmatprep.subr.bf16.mxu0 0
  %2805 = vmatpush1.bf16.msra.mxu0 0
  %2806 = vmatprep.subr.bf16.mxu0 0
  %2807 = vmatpush1.bf16.msra.mxu0 0
  %2808 = vmatprep.subr.bf16.mxu0 0
  %2809 = vmatpush1.bf16.msra.mxu0 0
  %2810 = vmatprep.subr.bf16.mxu0 0
  %2811 = vmatpush1.bf16.msra.mxu0 0
  %2812 = vmatprep.mubr.bf16.mxu0 %v2778
  %2813 = vmatmul.mubr.bf16.gmra.mrb[0].mxu0 %v2775
  %v2814 = vpop.f32.mrb[0].mxu0
  %v2815 = vadd.f32 %v1244, %v2814
  %v2816 = vpop.f32.mrb[0].mxu0
  %v2817 = vadd.f32 %v1248, %v2816
  %v2818 = vpop.f32.mrb[0].mxu0
  %v2819 = vpop.f32.mrb[0].mxu0
  %2820 = vdwg.mxu0
  %2821 = vmatprep.subr.bf16.mxu0 %v1543
  %2822 = vmatpush1.bf16.msra.mxu0 %v1542
  %2823 = vmatprep.subr.bf16.mxu0 %v1545
  %2824 = vmatpush1.bf16.msra.mxu0 %v1544
  %2825 = vmatprep.subr.bf16.mxu0 %v1547
  %2826 = vmatpush1.bf16.msra.mxu0 %v1546
  %2827 = vmatprep.subr.bf16.mxu0 %v1549
  %2828 = vmatpush1.bf16.msra.mxu0 %v1548
  %2829 = vmatprep.subr.bf16.mxu0 %v1551
  %2830 = vmatpush1.bf16.msra.mxu0 %v1550
  %2831 = vmatprep.subr.bf16.mxu0 %v1553
  %2832 = vmatpush1.bf16.msra.mxu0 %v1552
  %2833 = vmatprep.subr.bf16.mxu0 %v1555
  %2834 = vmatpush1.bf16.msra.mxu0 %v1554
  %2835 = vmatprep.subr.bf16.mxu0 %v1557
  %2836 = vmatpush1.bf16.msra.mxu0 %v1556
  %2837 = vmatprep.subr.bf16.mxu0 %v1559
  %2838 = vmatpush1.bf16.msra.mxu0 %v1558
  %2839 = vmatprep.subr.bf16.mxu0 %v1561
  %2840 = vmatpush1.bf16.msra.mxu0 %v1560
  %2841 = vmatprep.subr.bf16.mxu0 %v1563
  %2842 = vmatpush1.bf16.msra.mxu0 %v1562
  %2843 = vmatprep.subr.bf16.mxu0 %v1565
  %2844 = vmatpush1.bf16.msra.mxu0 %v1564
  %2845 = vmatprep.subr.bf16.mxu0 0
  %2846 = vmatpush1.bf16.msra.mxu0 0
  %2847 = vmatprep.subr.bf16.mxu0 0
  %2848 = vmatpush1.bf16.msra.mxu0 0
  %2849 = vmatprep.subr.bf16.mxu0 0
  %2850 = vmatpush1.bf16.msra.mxu0 0
  %2851 = vmatprep.subr.bf16.mxu0 0
  %2852 = vmatpush1.bf16.msra.mxu0 0
  %2853 = vmatprep.mubr.bf16.mxu0 %v2778
  %2854 = vmatmul.mubr.bf16.gmra.mrb[0].mxu0 %v2775
  %v2855 = vpop.f32.mrb[0].mxu0
  %v2856 = vadd.f32 %v1252, %v2855
  %v2857 = vpop.f32.mrb[0].mxu0
  %v2858 = vadd.f32 %v1256, %v2857
  %v2859 = vpop.f32.mrb[0].mxu0
  %v2860 = vpop.f32.mrb[0].mxu0
  %2861 = vdwg.mxu0
  %2862 = vmatprep.subr.bf16.mxu0 %v1819
  %2863 = vmatpush1.bf16.msra.mxu0 %v1818
  %2864 = vmatprep.subr.bf16.mxu0 %v1821
  %2865 = vmatpush1.bf16.msra.mxu0 %v1820
  %2866 = vmatprep.subr.bf16.mxu0 %v1823
  %2867 = vmatpush1.bf16.msra.mxu0 %v1822
  %2868 = vmatprep.subr.bf16.mxu0 %v1825
  %2869 = vmatpush1.bf16.msra.mxu0 %v1824
  %2870 = vmatprep.subr.bf16.mxu0 %v1827
  %2871 = vmatpush1.bf16.msra.mxu0 %v1826
  %2872 = vmatprep.subr.bf16.mxu0 %v1829
  %2873 = vmatpush1.bf16.msra.mxu0 %v1828
  %2874 = vmatprep.subr.bf16.mxu0 %v1831
  %2875 = vmatpush1.bf16.msra.mxu0 %v1830
  %2876 = vmatprep.subr.bf16.mxu0 %v1833
  %2877 = vmatpush1.bf16.msra.mxu0 %v1832
  %2878 = vmatprep.subr.bf16.mxu0 %v1835
  %2879 = vmatpush1.bf16.msra.mxu0 %v1834
  %2880 = vmatprep.subr.bf16.mxu0 %v1837
  %2881 = vmatpush1.bf16.msra.mxu0 %v1836
  %2882 = vmatprep.subr.bf16.mxu0 %v1839
  %2883 = vmatpush1.bf16.msra.mxu0 %v1838
  %2884 = vmatprep.subr.bf16.mxu0 %v1841
  %2885 = vmatpush1.bf16.msra.mxu0 %v1840
  %2886 = vmatprep.subr.bf16.mxu0 0
  %2887 = vmatpush1.bf16.msra.mxu0 0
  %2888 = vmatprep.subr.bf16.mxu0 0
  %2889 = vmatpush1.bf16.msra.mxu0 0
  %2890 = vmatprep.subr.bf16.mxu0 0
  %2891 = vmatpush1.bf16.msra.mxu0 0
  %2892 = vmatprep.subr.bf16.mxu0 0
  %2893 = vmatpush1.bf16.msra.mxu0 0
  %2894 = vmatprep.mubr.bf16.mxu0 %v2778
  %2895 = vmatmul.mubr.bf16.gmra.mrb[0].mxu0 %v2775
  %v2896 = vpop.f32.mrb[0].mxu0
  %v2897 = vadd.f32 %v1260, %v2896
  %v2898 = vpop.f32.mrb[0].mxu0
  %v2899 = vadd.f32 %v1264, %v2898
  %v2900 = vpop.f32.mrb[0].mxu0
  %v2901 = vpop.f32.mrb[0].mxu0
  %2902 = vdwg.mxu0
  %v2903 = vrot.slane %v1162, 4
  %v2904 = vrot.slane %v1164, 4
  %v2907 = vadd.f32 %v2815, %v2903
  %v2908 = vadd.f32 %v2817, %v2904
  %v2909 = vxor.u32 %v2907, 2147483648
  %v2910 = vxor.u32 %v2908, 2147483648
  %v2911 = vmul.f32 %v2909, 1.442695
  %v2912 = vpow.pop %v2911
  %v2913 = vmul.f32 %v2910, 1.442695
  %v2914 = vpow.pop %v2913
  %v2915 = vadd.f32 %v2912, 1.0
  %v2916 = vadd.f32 %v2914, 1.0
  %v2917 = vrcp.pop %v2915
  %v2918 = vmul.f32 1.0, %v2917
  %v2919 = vrcp.pop %v2916
  %v2920 = vmul.f32 1.0, %v2919
  %v2921 = vtanh.pop %v2908
  %v2922 = vmul.f32 %v2918, %v2703
  %2924 = vrot.lane.b32.xlu0 %v2921, 64
  %v2925 = vpop.permute.xlu0 %2924
  %v2927 = vmul.f32 %v2918, %v2925
  %2929 = vrot.lane.b32.xlu0 %v2927, 64
  %v2930 = vpop.permute.xlu0 %2929
  %v2932 = vadd.f32 %v2922, %v2930
  %v2933 = vtanh.pop %v2932
  %2935 = vrot.lane.b32.xlu0 %v2933, 64
  %v2936 = vpop.permute.xlu0 %2935
  %v2938 = vmul.f32 %v2920, %v2936
  %v2939 = vxor.u32 %v2856, 2147483648
  %v2940 = vxor.u32 %v2858, 2147483648
  %v2941 = vmul.f32 %v2939, 1.442695
  %v2942 = vpow.pop %v2941
  %v2943 = vmul.f32 %v2940, 1.442695
  %v2944 = vpow.pop %v2943
  %v2945 = vadd.f32 %v2942, 1.0
  %v2946 = vadd.f32 %v2944, 1.0
  %v2947 = vrcp.pop %v2945
  %v2948 = vmul.f32 1.0, %v2947
  %v2949 = vrcp.pop %v2946
  %v2950 = vmul.f32 1.0, %v2949
  %v2951 = vtanh.pop %v2858
  %v2952 = vmul.f32 %v2948, %v2733
  %2954 = vrot.lane.b32.xlu0 %v2951, 64
  %v2955 = vpop.permute.xlu0 %2954
  %v2957 = vmul.f32 %v2948, %v2955
  %2959 = vrot.lane.b32.xlu0 %v2957, 64
  %v2960 = vpop.permute.xlu0 %2959
  %v2962 = vadd.f32 %v2952, %v2960
  %v2963 = vtanh.pop %v2962
  %2965 = vrot.lane.b32.xlu0 %v2963, 64
  %v2966 = vpop.permute.xlu0 %2965
  %v2968 = vmul.f32 %v2950, %v2966
  %v2969 = vxor.u32 %v2897, 2147483648
  %v2970 = vxor.u32 %v2899, 2147483648
  %v2971 = vmul.f32 %v2969, 1.442695
  %v2972 = vpow.pop %v2971
  %v2973 = vmul.f32 %v2970, 1.442695
  %v2974 = vpow.pop %v2973
  %v2975 = vadd.f32 %v2972, 1.0
  %v2976 = vadd.f32 %v2974, 1.0
  %v2977 = vrcp.pop %v2975
  %v2978 = vmul.f32 1.0, %v2977
  %v2979 = vrcp.pop %v2976
  %v2980 = vmul.f32 1.0, %v2979
  %v2981 = vtanh.pop %v2899
  %v2982 = vmul.f32 %v2978, %v2763
  %2984 = vrot.lane.b32.xlu0 %v2981, 64
  %v2985 = vpop.permute.xlu0 %2984
  %v2987 = vmul.f32 %v2978, %v2985
  %2989 = vrot.lane.b32.xlu0 %v2987, 64
  %v2990 = vpop.permute.xlu0 %2989
  %v2992 = vadd.f32 %v2982, %v2990
  %v2993 = vtanh.pop %v2992
  %2995 = vrot.lane.b32.xlu0 %v2993, 64
  %v2996 = vpop.permute.xlu0 %2995
  %v2998 = vmul.f32 %v2980, %v2996
  %3000 = vrot.lane.b32.xlu0 %v2968, 64
  %v3001 = vpop.permute.xlu0 %3000
  %v3003 = vsel %vm1391, %v2938, %v3001
  %v3004 = vpack.c.bf16 %v3003, %v3003
  %v3005 = vpack.c.bf16 %v2998, %v2998
  %v3007 = vsel %vm1391, %v3005, 0
  %3009 = vmatprep.subr.bf16.mxu0 %v1344
  %3010 = vmatpush1.bf16.msra.mxu0 %v1343
  %3011 = vmatprep.subr.bf16.mxu0 %v1346
  %3012 = vmatpush1.bf16.msra.mxu0 %v1345
  %3013 = vmatprep.subr.bf16.mxu0 %v1348
  %3014 = vmatpush1.bf16.msra.mxu0 %v1347
  %3015 = vmatprep.subr.bf16.mxu0 %v1350
  %3016 = vmatpush1.bf16.msra.mxu0 %v1349
  %3017 = vmatprep.subr.bf16.mxu0 %v1352
  %3018 = vmatpush1.bf16.msra.mxu0 %v1351
  %3019 = vmatprep.subr.bf16.mxu0 %v1354
  %3020 = vmatpush1.bf16.msra.mxu0 %v1353
  %3021 = vmatprep.subr.bf16.mxu0 %v1356
  %3022 = vmatpush1.bf16.msra.mxu0 %v1355
  %3023 = vmatprep.subr.bf16.mxu0 %v1358
  %3024 = vmatpush1.bf16.msra.mxu0 %v1357
  %3025 = vmatprep.subr.bf16.mxu0 %v1360
  %3026 = vmatpush1.bf16.msra.mxu0 %v1359
  %3027 = vmatprep.subr.bf16.mxu0 %v1362
  %3028 = vmatpush1.bf16.msra.mxu0 %v1361
  %3029 = vmatprep.subr.bf16.mxu0 %v1364
  %3030 = vmatpush1.bf16.msra.mxu0 %v1363
  %3031 = vmatprep.subr.bf16.mxu0 %v1366
  %3032 = vmatpush1.bf16.msra.mxu0 %v1365
  %3033 = vmatprep.subr.bf16.mxu0 0
  %3034 = vmatpush1.bf16.msra.mxu0 0
  %3035 = vmatprep.subr.bf16.mxu0 0
  %3036 = vmatpush1.bf16.msra.mxu0 0
  %3037 = vmatprep.subr.bf16.mxu0 0
  %3038 = vmatpush1.bf16.msra.mxu0 0
  %3039 = vmatprep.subr.bf16.mxu0 0
  %3040 = vmatpush1.bf16.msra.mxu0 0
  %3041 = vmatprep.mubr.bf16.mxu0 %v3007
  %3042 = vmatmul.mubr.bf16.gmra.mrb[0].mxu0 %v3004
  %v3043 = vpop.f32.mrb[0].mxu0
  %v3044 = vadd.f32 %v1244, %v3043
  %v3045 = vpop.f32.mrb[0].mxu0
  %v3046 = vadd.f32 %v1248, %v3045
  %v3047 = vpop.f32.mrb[0].mxu0
  %v3048 = vpop.f32.mrb[0].mxu0
  %3049 = vdwg.mxu0
  %3050 = vmatprep.subr.bf16.mxu0 %v1543
  %3051 = vmatpush1.bf16.msra.mxu0 %v1542
  %3052 = vmatprep.subr.bf16.mxu0 %v1545
  %3053 = vmatpush1.bf16.msra.mxu0 %v1544
  %3054 = vmatprep.subr.bf16.mxu0 %v1547
  %3055 = vmatpush1.bf16.msra.mxu0 %v1546
  %3056 = vmatprep.subr.bf16.mxu0 %v1549
  %3057 = vmatpush1.bf16.msra.mxu0 %v1548
  %3058 = vmatprep.subr.bf16.mxu0 %v1551
  %3059 = vmatpush1.bf16.msra.mxu0 %v1550
  %3060 = vmatprep.subr.bf16.mxu0 %v1553
  %3061 = vmatpush1.bf16.msra.mxu0 %v1552
  %3062 = vmatprep.subr.bf16.mxu0 %v1555
  %3063 = vmatpush1.bf16.msra.mxu0 %v1554
  %3064 = vmatprep.subr.bf16.mxu0 %v1557
  %3065 = vmatpush1.bf16.msra.mxu0 %v1556
  %3066 = vmatprep.subr.bf16.mxu0 %v1559
  %3067 = vmatpush1.bf16.msra.mxu0 %v1558
  %3068 = vmatprep.subr.bf16.mxu0 %v1561
  %3069 = vmatpush1.bf16.msra.mxu0 %v1560
  %3070 = vmatprep.subr.bf16.mxu0 %v1563
  %3071 = vmatpush1.bf16.msra.mxu0 %v1562
  %3072 = vmatprep.subr.bf16.mxu0 %v1565
  %3073 = vmatpush1.bf16.msra.mxu0 %v1564
  %3074 = vmatprep.subr.bf16.mxu0 0
  %3075 = vmatpush1.bf16.msra.mxu0 0
  %3076 = vmatprep.subr.bf16.mxu0 0
  %3077 = vmatpush1.bf16.msra.mxu0 0
  %3078 = vmatprep.subr.bf16.mxu0 0
  %3079 = vmatpush1.bf16.msra.mxu0 0
  %3080 = vmatprep.subr.bf16.mxu0 0
  %3081 = vmatpush1.bf16.msra.mxu0 0
  %3082 = vmatprep.mubr.bf16.mxu0 %v3007
  %3083 = vmatmul.mubr.bf16.gmra.mrb[0].mxu0 %v3004
  %v3084 = vpop.f32.mrb[0].mxu0
  %v3085 = vadd.f32 %v1252, %v3084
  %v3086 = vpop.f32.mrb[0].mxu0
  %v3087 = vadd.f32 %v1256, %v3086
  %v3088 = vpop.f32.mrb[0].mxu0
  %v3089 = vpop.f32.mrb[0].mxu0
  %3090 = vdwg.mxu0
  %3091 = vmatprep.subr.bf16.mxu0 %v1819
  %3092 = vmatpush1.bf16.msra.mxu0 %v1818
  %3093 = vmatprep.subr.bf16.mxu0 %v1821
  %3094 = vmatpush1.bf16.msra.mxu0 %v1820
  %3095 = vmatprep.subr.bf16.mxu0 %v1823
  %3096 = vmatpush1.bf16.msra.mxu0 %v1822
  %3097 = vmatprep.subr.bf16.mxu0 %v1825
  %3098 = vmatpush1.bf16.msra.mxu0 %v1824
  %3099 = vmatprep.subr.bf16.mxu0 %v1827
  %3100 = vmatpush1.bf16.msra.mxu0 %v1826
  %3101 = vmatprep.subr.bf16.mxu0 %v1829
  %3102 = vmatpush1.bf16.msra.mxu0 %v1828
  %3103 = vmatprep.subr.bf16.mxu0 %v1831
  %3104 = vmatpush1.bf16.msra.mxu0 %v1830
  %3105 = vmatprep.subr.bf16.mxu0 %v1833
  %3106 = vmatpush1.bf16.msra.mxu0 %v1832
  %3107 = vmatprep.subr.bf16.mxu0 %v1835
  %3108 = vmatpush1.bf16.msra.mxu0 %v1834
  %3109 = vmatprep.subr.bf16.mxu0 %v1837
  %3110 = vmatpush1.bf16.msra.mxu0 %v1836
  %3111 = vmatprep.subr.bf16.mxu0 %v1839
  %3112 = vmatpush1.bf16.msra.mxu0 %v1838
  %3113 = vmatprep.subr.bf16.mxu0 %v1841
  %3114 = vmatpush1.bf16.msra.mxu0 %v1840
  %3115 = vmatprep.subr.bf16.mxu0 0
  %3116 = vmatpush1.bf16.msra.mxu0 0
  %3117 = vmatprep.subr.bf16.mxu0 0
  %3118 = vmatpush1.bf16.msra.mxu0 0
  %3119 = vmatprep.subr.bf16.mxu0 0
  %3120 = vmatpush1.bf16.msra.mxu0 0
  %3121 = vmatprep.subr.bf16.mxu0 0
  %3122 = vmatpush1.bf16.msra.mxu0 0
  %3123 = vmatprep.mubr.bf16.mxu0 %v3007
  %3124 = vmatmul.mubr.bf16.gmra.mrb[0].mxu0 %v3004
  %v3125 = vpop.f32.mrb[0].mxu0
  %v3126 = vadd.f32 %v1260, %v3125
  %v3127 = vpop.f32.mrb[0].mxu0
  %v3128 = vadd.f32 %v1264, %v3127
  %v3129 = vpop.f32.mrb[0].mxu0
  %v3130 = vpop.f32.mrb[0].mxu0
  %3131 = vdwg.mxu0
  %v3132 = vrot.slane %v1162, 6
  %v3133 = vrot.slane %v1164, 6
  %v3136 = vadd.f32 %v3044, %v3132
  %v3137 = vadd.f32 %v3046, %v3133
  %v3138 = vxor.u32 %v3136, 2147483648
  %v3139 = vxor.u32 %v3137, 2147483648
  %v3140 = vmul.f32 %v3138, 1.442695
  %v3141 = vpow.pop %v3140
  %v3142 = vmul.f32 %v3139, 1.442695
  %v3143 = vpow.pop %v3142
  %v3144 = vadd.f32 %v3141, 1.0
  %v3145 = vadd.f32 %v3143, 1.0
  %v3146 = vrcp.pop %v3144
  %v3147 = vmul.f32 1.0, %v3146
  %v3148 = vrcp.pop %v3145
  %v3149 = vmul.f32 1.0, %v3148
  %v3150 = vtanh.pop %v3137
  %v3151 = vmul.f32 %v3147, %v2932
  %3153 = vrot.lane.b32.xlu0 %v3150, 64
  %v3154 = vpop.permute.xlu0 %3153
  %v3156 = vmul.f32 %v3147, %v3154
  %3158 = vrot.lane.b32.xlu0 %v3156, 64
  %v3159 = vpop.permute.xlu0 %3158
  %v3161 = vadd.f32 %v3151, %v3159
  %v3162 = vtanh.pop %v3161
  %3164 = vrot.lane.b32.xlu0 %v3162, 64
  %v3165 = vpop.permute.xlu0 %3164
  %v3167 = vmul.f32 %v3149, %v3165
  %v3168 = vxor.u32 %v3085, 2147483648
  %v3169 = vxor.u32 %v3087, 2147483648
  %v3170 = vmul.f32 %v3168, 1.442695
  %v3171 = vpow.pop %v3170
  %v3172 = vmul.f32 %v3169, 1.442695
  %v3173 = vpow.pop %v3172
  %v3174 = vadd.f32 %v3171, 1.0
  %v3175 = vadd.f32 %v3173, 1.0
  %v3176 = vrcp.pop %v3174
  %v3177 = vmul.f32 1.0, %v3176
  %v3178 = vrcp.pop %v3175
  %v3179 = vmul.f32 1.0, %v3178
  %v3180 = vtanh.pop %v3087
  %v3181 = vmul.f32 %v3177, %v2962
  %3183 = vrot.lane.b32.xlu0 %v3180, 64
  %v3184 = vpop.permute.xlu0 %3183
  %v3186 = vmul.f32 %v3177, %v3184
  %3188 = vrot.lane.b32.xlu0 %v3186, 64
  %v3189 = vpop.permute.xlu0 %3188
  %v3191 = vadd.f32 %v3181, %v3189
  %v3192 = vtanh.pop %v3191
  %3194 = vrot.lane.b32.xlu0 %v3192, 64
  %v3195 = vpop.permute.xlu0 %3194
  %v3197 = vmul.f32 %v3179, %v3195
  %v3198 = vxor.u32 %v3126, 2147483648
  %v3199 = vxor.u32 %v3128, 2147483648
  %v3200 = vmul.f32 %v3198, 1.442695
  %v3201 = vpow.pop %v3200
  %v3202 = vmul.f32 %v3199, 1.442695
  %v3203 = vpow.pop %v3202
  %v3204 = vadd.f32 %v3201, 1.0
  %v3205 = vadd.f32 %v3203, 1.0
  %v3206 = vrcp.pop %v3204
  %v3207 = vmul.f32 1.0, %v3206
  %v3208 = vrcp.pop %v3205
  %v3209 = vmul.f32 1.0, %v3208
  %v3210 = vtanh.pop %v3128
  %v3211 = vmul.f32 %v3207, %v2992
  %3213 = vrot.lane.b32.xlu0 %v3210, 64
  %v3214 = vpop.permute.xlu0 %3213
  %v3216 = vmul.f32 %v3207, %v3214
  %3218 = vrot.lane.b32.xlu0 %v3216, 64
  %v3219 = vpop.permute.xlu0 %3218
  %v3221 = vadd.f32 %v3211, %v3219
  %v3222 = vtanh.pop %v3221
  %3224 = vrot.lane.b32.xlu0 %v3222, 64
  %v3225 = vpop.permute.xlu0 %3224
  %v3227 = vmul.f32 %v3209, %v3225
  %3229 = vrot.lane.b32.xlu0 %v3197, 64
  %v3230 = vpop.permute.xlu0 %3229
  %v3232 = vsel %vm1391, %v3167, %v3230
  %v3233 = vpack.c.bf16 %v3232, %v3232
  %v3234 = vpack.c.bf16 %v3227, %v3227
  %v3236 = vsel %vm1391, %v3234, 0
  %3238 = vmatprep.subr.bf16.mxu0 %v1543
  %3239 = vmatpush1.bf16.msra.mxu0 %v1542
  %3240 = vmatprep.subr.bf16.mxu0 %v1545
  %3241 = vmatpush1.bf16.msra.mxu0 %v1544
  %3242 = vmatprep.subr.bf16.mxu0 %v1547
  %3243 = vmatpush1.bf16.msra.mxu0 %v1546
  %3244 = vmatprep.subr.bf16.mxu0 %v1549
  %3245 = vmatpush1.bf16.msra.mxu0 %v1548
  %3246 = vmatprep.subr.bf16.mxu0 %v1551
  %3247 = vmatpush1.bf16.msra.mxu0 %v1550
  %3248 = vmatprep.subr.bf16.mxu0 %v1553
  %3249 = vmatpush1.bf16.msra.mxu0 %v1552
  %3250 = vmatprep.subr.bf16.mxu0 %v1555
  %3251 = vmatpush1.bf16.msra.mxu0 %v1554
  %3252 = vmatprep.subr.bf16.mxu0 %v1557
  %3253 = vmatpush1.bf16.msra.mxu0 %v1556
  %3254 = vmatprep.subr.bf16.mxu0 %v1559
  %3255 = vmatpush1.bf16.msra.mxu0 %v1558
  %3256 = vmatprep.subr.bf16.mxu0 %v1561
  %3257 = vmatpush1.bf16.msra.mxu0 %v1560
  %3258 = vmatprep.subr.bf16.mxu0 %v1563
  %3259 = vmatpush1.bf16.msra.mxu0 %v1562
  %3260 = vmatprep.subr.bf16.mxu0 %v1565
  %3261 = vmatpush1.bf16.msra.mxu0 %v1564
  %3262 = vmatprep.subr.bf16.mxu0 0
  %3263 = vmatpush1.bf16.msra.mxu0 0
  %3264 = vmatprep.subr.bf16.mxu0 0
  %3265 = vmatpush1.bf16.msra.mxu0 0
  %3266 = vmatprep.subr.bf16.mxu0 0
  %3267 = vmatpush1.bf16.msra.mxu0 0
  %3268 = vmatprep.subr.bf16.mxu0 0
  %3269 = vmatpush1.bf16.msra.mxu0 0
  %3270 = vmatprep.mubr.bf16.mxu0 %v3236
  %3271 = vmatmul.mubr.bf16.gmra.mrb[0].mxu0 %v3233
  %v3272 = vpop.f32.mrb[0].mxu0
  %v3273 = vadd.f32 %v1252, %v3272
  %v3274 = vpop.f32.mrb[0].mxu0
  %v3275 = vadd.f32 %v1256, %v3274
  %v3276 = vpop.f32.mrb[0].mxu0
  %v3277 = vpop.f32.mrb[0].mxu0
  %3278 = vdwg.mxu0
  %3279 = vmatprep.subr.bf16.mxu0 %v1819
  %3280 = vmatpush1.bf16.msra.mxu0 %v1818
  %3281 = vmatprep.subr.bf16.mxu0 %v1821
  %3282 = vmatpush1.bf16.msra.mxu0 %v1820
  %3283 = vmatprep.subr.bf16.mxu0 %v1823
  %3284 = vmatpush1.bf16.msra.mxu0 %v1822
  %3285 = vmatprep.subr.bf16.mxu0 %v1825
  %3286 = vmatpush1.bf16.msra.mxu0 %v1824
  %3287 = vmatprep.subr.bf16.mxu0 %v1827
  %3288 = vmatpush1.bf16.msra.mxu0 %v1826
  %3289 = vmatprep.subr.bf16.mxu0 %v1829
  %3290 = vmatpush1.bf16.msra.mxu0 %v1828
  %3291 = vmatprep.subr.bf16.mxu0 %v1831
  %3292 = vmatpush1.bf16.msra.mxu0 %v1830
  %3293 = vmatprep.subr.bf16.mxu0 %v1833
  %3294 = vmatpush1.bf16.msra.mxu0 %v1832
  %3295 = vmatprep.subr.bf16.mxu0 %v1835
  %3296 = vmatpush1.bf16.msra.mxu0 %v1834
  %3297 = vmatprep.subr.bf16.mxu0 %v1837
  %3298 = vmatpush1.bf16.msra.mxu0 %v1836
  %3299 = vmatprep.subr.bf16.mxu0 %v1839
  %3300 = vmatpush1.bf16.msra.mxu0 %v1838
  %3301 = vmatprep.subr.bf16.mxu0 %v1841
  %3302 = vmatpush1.bf16.msra.mxu0 %v1840
  %3303 = vmatprep.subr.bf16.mxu0 0
  %3304 = vmatpush1.bf16.msra.mxu0 0
  %3305 = vmatprep.subr.bf16.mxu0 0
  %3306 = vmatpush1.bf16.msra.mxu0 0
  %3307 = vmatprep.subr.bf16.mxu0 0
  %3308 = vmatpush1.bf16.msra.mxu0 0
  %3309 = vmatprep.subr.bf16.mxu0 0
  %3310 = vmatpush1.bf16.msra.mxu0 0
  %3311 = vmatprep.mubr.bf16.mxu0 %v3236
  %3312 = vmatmul.mubr.bf16.gmra.mrb[0].mxu0 %v3233
  %v3313 = vpop.f32.mrb[0].mxu0
  %v3314 = vadd.f32 %v1260, %v3313
  %v3315 = vpop.f32.mrb[0].mxu0
  %v3316 = vadd.f32 %v1264, %v3315
  %v3317 = vpop.f32.mrb[0].mxu0
  %v3318 = vpop.f32.mrb[0].mxu0
  %3319 = vdwg.mxu0
  %v3320 = vxor.u32 %v3273, 2147483648
  %v3321 = vxor.u32 %v3275, 2147483648
  %v3322 = vmul.f32 %v3320, 1.442695
  %v3323 = vpow.pop %v3322
  %v3324 = vmul.f32 %v3321, 1.442695
  %v3325 = vpow.pop %v3324
  %v3326 = vadd.f32 %v3323, 1.0
  %v3327 = vadd.f32 %v3325, 1.0
  %v3328 = vrcp.pop %v3326
  %v3329 = vmul.f32 1.0, %v3328
  %v3330 = vrcp.pop %v3327
  %v3331 = vmul.f32 1.0, %v3330
  %v3332 = vtanh.pop %v3275
  %v3333 = vmul.f32 %v3329, %v3191
  %3335 = vrot.lane.b32.xlu0 %v3332, 64
  %v3336 = vpop.permute.xlu0 %3335
  %v3338 = vmul.f32 %v3329, %v3336
  %3340 = vrot.lane.b32.xlu0 %v3338, 64
  %v3341 = vpop.permute.xlu0 %3340
  %v3343 = vadd.f32 %v3333, %v3341
  %v3344 = vtanh.pop %v3343
  %3346 = vrot.lane.b32.xlu0 %v3344, 64
  %v3347 = vpop.permute.xlu0 %3346
  %v3349 = vmul.f32 %v3331, %v3347
  %v3350 = vxor.u32 %v3314, 2147483648
  %v3351 = vxor.u32 %v3316, 2147483648
  %v3352 = vmul.f32 %v3350, 1.442695
  %v3353 = vpow.pop %v3352
  %v3354 = vmul.f32 %v3351, 1.442695
  %v3355 = vpow.pop %v3354
  %v3356 = vadd.f32 %v3353, 1.0
  %v3357 = vadd.f32 %v3355, 1.0
  %v3358 = vrcp.pop %v3356
  %v3359 = vmul.f32 1.0, %v3358
  %v3360 = vrcp.pop %v3357
  %v3361 = vmul.f32 1.0, %v3360
  %v3362 = vtanh.pop %v3316
  %v3363 = vmul.f32 %v3359, %v3221
  %3365 = vrot.lane.b32.xlu0 %v3362, 64
  %v3366 = vpop.permute.xlu0 %3365
  %v3368 = vmul.f32 %v3359, %v3366
  %3370 = vrot.lane.b32.xlu0 %v3368, 64
  %v3371 = vpop.permute.xlu0 %3370
  %v3373 = vadd.f32 %v3363, %v3371
  %v3374 = vtanh.pop %v3373
  %3376 = vrot.lane.b32.xlu0 %v3374, 64
  %v3377 = vpop.permute.xlu0 %3376
  %v3379 = vmul.f32 %v3361, %v3377
  %3381 = vrot.lane.b32.xlu0 %v3349, 64
  %v3382 = vpop.permute.xlu0 %3381
  %v3384 = vsel %vm1391, %v3167, %v3382
  %v3385 = vpack.c.bf16 %v3384, %v3384
  %v3386 = vpack.c.bf16 %v3379, %v3379
  %v3388 = vsel %vm1391, %v3386, 0
  %3390 = vmatprep.subr.bf16.mxu0 %v1819
  %3391 = vmatpush1.bf16.msra.mxu0 %v1818
  %3392 = vmatprep.subr.bf16.mxu0 %v1821
  %3393 = vmatpush1.bf16.msra.mxu0 %v1820
  %3394 = vmatprep.subr.bf16.mxu0 %v1823
  %3395 = vmatpush1.bf16.msra.mxu0 %v1822
  %3396 = vmatprep.subr.bf16.mxu0 %v1825
  %3397 = vmatpush1.bf16.msra.mxu0 %v1824
  %3398 = vmatprep.subr.bf16.mxu0 %v1827
  %3399 = vmatpush1.bf16.msra.mxu0 %v1826
  %3400 = vmatprep.subr.bf16.mxu0 %v1829
  %3401 = vmatpush1.bf16.msra.mxu0 %v1828
  %3402 = vmatprep.subr.bf16.mxu0 %v1831
  %3403 = vmatpush1.bf16.msra.mxu0 %v1830
  %3404 = vmatprep.subr.bf16.mxu0 %v1833
  %3405 = vmatpush1.bf16.msra.mxu0 %v1832
  %3406 = vmatprep.subr.bf16.mxu0 %v1835
  %3407 = vmatpush1.bf16.msra.mxu0 %v1834
  %3408 = vmatprep.subr.bf16.mxu0 %v1837
  %3409 = vmatpush1.bf16.msra.mxu0 %v1836
  %3410 = vmatprep.subr.bf16.mxu0 %v1839
  %3411 = vmatpush1.bf16.msra.mxu0 %v1838
  %3412 = vmatprep.subr.bf16.mxu0 %v1841
  %3413 = vmatpush1.bf16.msra.mxu0 %v1840
  %3414 = vmatprep.subr.bf16.mxu0 0
  %3415 = vmatpush1.bf16.msra.mxu0 0
  %3416 = vmatprep.subr.bf16.mxu0 0
  %3417 = vmatpush1.bf16.msra.mxu0 0
  %3418 = vmatprep.subr.bf16.mxu0 0
  %3419 = vmatpush1.bf16.msra.mxu0 0
  %3420 = vmatprep.subr.bf16.mxu0 0
  %3421 = vmatpush1.bf16.msra.mxu0 0
  %3422 = vmatprep.mubr.bf16.mxu0 %v3388
  %3423 = vmatmul.mubr.bf16.gmra.mrb[0].mxu0 %v3385
  %v3424 = vpop.f32.mrb[0].mxu0
  %v3425 = vadd.f32 %v1260, %v3424
  %v3426 = vpop.f32.mrb[0].mxu0
  %v3427 = vadd.f32 %v1264, %v3426
  %v3428 = vpop.f32.mrb[0].mxu0
  %v3429 = vpop.f32.mrb[0].mxu0
  %3430 = vdwg.mxu0
  %v3431 = vxor.u32 %v3425, 2147483648
  %v3432 = vmul.f32 %v3431, 1.442695
  %v3433 = vpow.pop %v3432
  %v3434 = vadd.f32 %v3433, 1.0
  %v3435 = vrcp.pop %v3434
  %v3436 = vmul.f32 1.0, %v3435
  %v3437 = vtanh.pop %v3427
  %v3438 = vmul.f32 %v3436, %v3373
  %3440 = vrot.lane.b32.xlu0 %v3437, 64
  %v3441 = vpop.permute.xlu0 %3440
  %v3443 = vmul.f32 %v3436, %v3441
  %3445 = vrot.lane.b32.xlu0 %v3443, 64
  %v3446 = vpop.permute.xlu0 %3445
  %v3448 = vadd.f32 %v3438, %v3446
  %s3449 = smul.u32 4, 8
  %s3450 = smul.u32 %s3449, 32
  %s3451 = sshll.u32 %s3450, 4
  %3452 = dma.done [#allocation3], %s3451
  %v3453 = vpack.c.bf16 %v3448, %v3448
  %v3454 = vld [vmem:[#allocation2] sm:$0xff]
  %v3455 = vld [vmem:[#allocation2 + $0x8] sm:$0xff]
  %v3456 = vld [vmem:[#allocation2 + $0x10] sm:$0xff]
  %v3457 = vld [vmem:[#allocation2 + $0x18] sm:$0xff]
  %v3458 = vld [vmem:[#allocation2 + $0x20] sm:$0xff]
  %v3459 = vld [vmem:[#allocation2 + $0x28] sm:$0xff]
  %v3460 = vld [vmem:[#allocation2 + $0x30] sm:$0xff]
  %v3461 = vld [vmem:[#allocation2 + $0x38] sm:$0xff]
  %v3462 = vld [vmem:[#allocation2 + $0x40] sm:$0xff]
  %v3463 = vld [vmem:[#allocation2 + $0x48] sm:$0xff]
  %v3464 = vld [vmem:[#allocation2 + $0x50] sm:$0xff]
  %v3465 = vld [vmem:[#allocation2 + $0x58] sm:$0xff]
  %v3466 = vld [vmem:[#allocation2 + $0x60] sm:$0xff]
  %v3467 = vld [vmem:[#allocation2 + $0x68] sm:$0xff]
  %v3468 = vld [vmem:[#allocation2 + $0x70] sm:$0xff]
  %v3469 = vld [vmem:[#allocation2 + $0x78] sm:$0xff]
  %v3470 = vld [vmem:[#allocation2 + $0x80] sm:$0xff]
  %v3471 = vld [vmem:[#allocation2 + $0x88] sm:$0xff]
  %v3472 = vld [vmem:[#allocation2 + $0x90] sm:$0xff]
  %v3473 = vld [vmem:[#allocation2 + $0x98] sm:$0xff]
  %v3474 = vld [vmem:[#allocation2 + $0xa0] sm:$0xff]
  %v3475 = vld [vmem:[#allocation2 + $0xa8] sm:$0xff]
  %v3476 = vld [vmem:[#allocation2 + $0xb0] sm:$0xff]
  %v3477 = vld [vmem:[#allocation2 + $0xb8] sm:$0xff]
  %v3478 = vld [vmem:[#allocation2 + $0xc0] sm:$0xff]
  %v3479 = vld [vmem:[#allocation2 + $0xc8] sm:$0xff]
  %v3480 = vld [vmem:[#allocation2 + $0xd0] sm:$0xff]
  %v3481 = vld [vmem:[#allocation2 + $0xd8] sm:$0xff]
  %v3482 = vld [vmem:[#allocation2 + $0xe0] sm:$0xff]
  %v3483 = vld [vmem:[#allocation2 + $0xe8] sm:$0xff]
  %v3484 = vld [vmem:[#allocation2 + $0xf0] sm:$0xff]
  %v3485 = vld [vmem:[#allocation2 + $0xf8] sm:$0xff]
  %v3486 = vld [vmem:[#allocation2 + $0x100] sm:$0xff]
  %v3487 = vld [vmem:[#allocation2 + $0x108] sm:$0xff]
  %v3488 = vld [vmem:[#allocation2 + $0x110] sm:$0xff]
  %v3489 = vld [vmem:[#allocation2 + $0x118] sm:$0xff]
  %v3490 = vld [vmem:[#allocation2 + $0x120] sm:$0xff]
  %v3491 = vld [vmem:[#allocation2 + $0x128] sm:$0xff]
  %v3492 = vld [vmem:[#allocation2 + $0x130] sm:$0xff]
  %v3493 = vld [vmem:[#allocation2 + $0x138] sm:$0xff]
  %v3494 = vld [vmem:[#allocation2 + $0x140] sm:$0xff]
  %v3495 = vld [vmem:[#allocation2 + $0x148] sm:$0xff]
  %v3496 = vld [vmem:[#allocation2 + $0x150] sm:$0xff]
  %v3497 = vld [vmem:[#allocation2 + $0x158] sm:$0xff]
  %v3498 = vld [vmem:[#allocation2 + $0x160] sm:$0xff]
  %v3499 = vld [vmem:[#allocation2 + $0x168] sm:$0xff]
  %v3500 = vld [vmem:[#allocation2 + $0x170] sm:$0xff]
  %v3501 = vld [vmem:[#allocation2 + $0x178] sm:$0xff]
  %v3502 = vld [vmem:[#allocation2 + $0x180] sm:$0xff]
  %v3503 = vld [vmem:[#allocation2 + $0x188] sm:$0xff]
  %v3504 = vld [vmem:[#allocation2 + $0x190] sm:$0xff]
  %v3505 = vld [vmem:[#allocation2 + $0x198] sm:$0xff]
  %v3506 = vld [vmem:[#allocation2 + $0x1a0] sm:$0xff]
  %v3507 = vld [vmem:[#allocation2 + $0x1a8] sm:$0xff]
  %v3508 = vld [vmem:[#allocation2 + $0x1b0] sm:$0xff]
  %v3509 = vld [vmem:[#allocation2 + $0x1b8] sm:$0xff]
  %v3510 = vld [vmem:[#allocation2 + $0x1c0] sm:$0xff]
  %v3511 = vld [vmem:[#allocation2 + $0x1c8] sm:$0xff]
  %v3512 = vld [vmem:[#allocation2 + $0x1d0] sm:$0xff]
  %v3513 = vld [vmem:[#allocation2 + $0x1d8] sm:$0xff]
  %v3514 = vld [vmem:[#allocation2 + $0x1e0] sm:$0xff]
  %v3515 = vld [vmem:[#allocation2 + $0x1e8] sm:$0xff]
  %v3516 = vld [vmem:[#allocation2 + $0x1f0] sm:$0xff]
  %v3517 = vld [vmem:[#allocation2 + $0x1f8] sm:$0xff]
  %v3518 = vld [vmem:[#allocation2 + $0x200] sm:$0xff]
  %v3519 = vld [vmem:[#allocation2 + $0x208] sm:$0xff]
  %v3520 = vld [vmem:[#allocation2 + $0x210] sm:$0xff]
  %v3521 = vld [vmem:[#allocation2 + $0x218] sm:$0xff]
  %v3522 = vld [vmem:[#allocation2 + $0x220] sm:$0xff]
  %v3523 = vld [vmem:[#allocation2 + $0x228] sm:$0xff]
  %v3524 = vld [vmem:[#allocation2 + $0x230] sm:$0xff]
  %v3525 = vld [vmem:[#allocation2 + $0x238] sm:$0xff]
  %v3526 = vld [vmem:[#allocation2 + $0x240] sm:$0xff]
  %v3527 = vld [vmem:[#allocation2 + $0x248] sm:$0xff]
  %v3528 = vld [vmem:[#allocation2 + $0x250] sm:$0xff]
  %v3529 = vld [vmem:[#allocation2 + $0x258] sm:$0xff]
  %v3530 = vld [vmem:[#allocation2 + $0x260] sm:$0xff]
  %v3531 = vld [vmem:[#allocation2 + $0x268] sm:$0xff]
  %v3532 = vld [vmem:[#allocation2 + $0x270] sm:$0xff]
  %v3533 = vld [vmem:[#allocation2 + $0x278] sm:$0xff]
  %v3534 = vld [vmem:[#allocation2 + $0x280] sm:$0xff]
  %v3535 = vld [vmem:[#allocation2 + $0x288] sm:$0xff]
  %v3536 = vld [vmem:[#allocation2 + $0x290] sm:$0xff]
  %v3537 = vld [vmem:[#allocation2 + $0x298] sm:$0xff]
  %v3538 = vld [vmem:[#allocation2 + $0x2a0] sm:$0xff]
  %v3539 = vld [vmem:[#allocation2 + $0x2a8] sm:$0xff]
  %v3540 = vld [vmem:[#allocation2 + $0x2b0] sm:$0xff]
  %v3541 = vld [vmem:[#allocation2 + $0x2b8] sm:$0xff]
  %v3542 = vld [vmem:[#allocation2 + $0x2c0] sm:$0xff]
  %v3543 = vld [vmem:[#allocation2 + $0x2c8] sm:$0xff]
  %v3544 = vld [vmem:[#allocation2 + $0x2d0] sm:$0xff]
  %v3545 = vld [vmem:[#allocation2 + $0x2d8] sm:$0xff]
  %v3546 = vld [vmem:[#allocation2 + $0x2e0] sm:$0xff]
  %v3547 = vld [vmem:[#allocation2 + $0x2e8] sm:$0xff]
  %v3548 = vld [vmem:[#allocation2 + $0x2f0] sm:$0xff]
  %v3549 = vld [vmem:[#allocation2 + $0x2f8] sm:$0xff]
  %v3550 = vld [vmem:[#allocation2 + $0x300] sm:$0xff]
  %v3551 = vld [vmem:[#allocation2 + $0x308] sm:$0xff]
  %v3552 = vld [vmem:[#allocation2 + $0x310] sm:$0xff]
  %v3553 = vld [vmem:[#allocation2 + $0x318] sm:$0xff]
  %v3554 = vld [vmem:[#allocation2 + $0x320] sm:$0xff]
  %v3555 = vld [vmem:[#allocation2 + $0x328] sm:$0xff]
  %v3556 = vld [vmem:[#allocation2 + $0x330] sm:$0xff]
  %v3557 = vld [vmem:[#allocation2 + $0x338] sm:$0xff]
  %v3558 = vld [vmem:[#allocation2 + $0x340] sm:$0xff]
  %v3559 = vld [vmem:[#allocation2 + $0x348] sm:$0xff]
  %v3560 = vld [vmem:[#allocation2 + $0x350] sm:$0xff]
  %v3561 = vld [vmem:[#allocation2 + $0x358] sm:$0xff]
  %v3562 = vld [vmem:[#allocation2 + $0x360] sm:$0xff]
  %v3563 = vld [vmem:[#allocation2 + $0x368] sm:$0xff]
  %v3564 = vld [vmem:[#allocation2 + $0x370] sm:$0xff]
  %v3565 = vld [vmem:[#allocation2 + $0x378] sm:$0xff]
  %v3566 = vld [vmem:[#allocation2 + $0x380] sm:$0xff]
  %v3567 = vld [vmem:[#allocation2 + $0x388] sm:$0xff]
  %v3568 = vld [vmem:[#allocation2 + $0x390] sm:$0xff]
  %v3569 = vld [vmem:[#allocation2 + $0x398] sm:$0xff]
  %v3570 = vld [vmem:[#allocation2 + $0x3a0] sm:$0xff]
  %v3571 = vld [vmem:[#allocation2 + $0x3a8] sm:$0xff]
  %v3572 = vld [vmem:[#allocation2 + $0x3b0] sm:$0xff]
  %v3573 = vld [vmem:[#allocation2 + $0x3b8] sm:$0xff]
  %v3574 = vld [vmem:[#allocation2 + $0x3c0] sm:$0xff]
  %v3575 = vld [vmem:[#allocation2 + $0x3c8] sm:$0xff]
  %v3576 = vld [vmem:[#allocation2 + $0x3d0] sm:$0xff]
  %v3577 = vld [vmem:[#allocation2 + $0x3d8] sm:$0xff]
  %v3578 = vld [vmem:[#allocation2 + $0x3e0] sm:$0xff]
  %v3579 = vld [vmem:[#allocation2 + $0x3e8] sm:$0xff]
  %v3580 = vld [vmem:[#allocation2 + $0x3f0] sm:$0xff]
  %v3581 = vld [vmem:[#allocation2 + $0x3f8] sm:$0xff]
  %3583 = vrot.lane.b32.xlu0 %v3453, 64
  %v3584 = vpop.permute.xlu0 %3583
  %v3586 = vsel %vm1391, %v3584, 0
  %3588 = vmatprep.subr.bf16.mxu0 %v3455
  %3589 = vmatpush1.bf16.msra.mxu0 %v3454
  %3590 = vmatprep.subr.bf16.mxu0 %v3487
  %3591 = vmatpush1.bf16.msra.mxu0 %v3486
  %3592 = vmatprep.subr.bf16.mxu0 %v3519
  %3593 = vmatpush1.bf16.msra.mxu0 %v3518
  %3594 = vmatprep.subr.bf16.mxu0 %v3551
  %3595 = vmatpush1.bf16.msra.mxu0 %v3550
  %3596 = vmatprep.subr.bf16.mxu0 0
  %3597 = vmatpush1.bf16.msra.mxu0 0
  %3598 = vmatprep.subr.bf16.mxu0 0
  %3599 = vmatpush1.bf16.msra.mxu0 0
  %3600 = vmatprep.subr.bf16.mxu0 0
  %3601 = vmatpush1.bf16.msra.mxu0 0
  %3602 = vmatprep.subr.bf16.mxu0 0
  %3603 = vmatpush1.bf16.msra.mxu0 0
  %3604 = vmatprep.subr.bf16.mxu0 0
  %3605 = vmatpush1.bf16.msra.mxu0 0
  %3606 = vmatprep.subr.bf16.mxu0 0
  %3607 = vmatpush1.bf16.msra.mxu0 0
  %3608 = vmatprep.subr.bf16.mxu0 0
  %3609 = vmatpush1.bf16.msra.mxu0 0
  %3610 = vmatprep.subr.bf16.mxu0 0
  %3611 = vmatpush1.bf16.msra.mxu0 0
  %3612 = vmatprep.subr.bf16.mxu0 0
  %3613 = vmatpush1.bf16.msra.mxu0 0
  %3614 = vmatprep.subr.bf16.mxu0 0
  %3615 = vmatpush1.bf16.msra.mxu0 0
  %3616 = vmatprep.subr.bf16.mxu0 0
  %3617 = vmatpush1.bf16.msra.mxu0 0
  %3618 = vmatprep.subr.bf16.mxu0 0
  %3619 = vmatpush1.bf16.msra.mxu0 0
  %3620 = vmatprep.mubr.bf16.mxu0 0
  %3621 = vmatmul.mubr.bf16.gmra.mrb[0].mxu0 %v3586
  %v3622 = vpop.f32.mrb[0].mxu0
  %v3623 = vadd.f32 0.0, %v3622
  %v3624 = vpop.f32.mrb[0].mxu0
  %v3625 = vadd.f32 0.0, %v3624
  %v3626 = vpop.f32.mrb[0].mxu0
  %v3627 = vpop.f32.mrb[0].mxu0
  %3628 = vdwg.mxu0
  %3629 = vmatprep.subr.bf16.mxu0 %v3457
  %3630 = vmatpush1.bf16.msra.mxu0 %v3456
  %3631 = vmatprep.subr.bf16.mxu0 %v3489
  %3632 = vmatpush1.bf16.msra.mxu0 %v3488
  %3633 = vmatprep.subr.bf16.mxu0 %v3521
  %3634 = vmatpush1.bf16.msra.mxu0 %v3520
  %3635 = vmatprep.subr.bf16.mxu0 %v3553
  %3636 = vmatpush1.bf16.msra.mxu0 %v3552
  %3637 = vmatprep.subr.bf16.mxu0 0
  %3638 = vmatpush1.bf16.msra.mxu0 0
  %3639 = vmatprep.subr.bf16.mxu0 0
  %3640 = vmatpush1.bf16.msra.mxu0 0
  %3641 = vmatprep.subr.bf16.mxu0 0
  %3642 = vmatpush1.bf16.msra.mxu0 0
  %3643 = vmatprep.subr.bf16.mxu0 0
  %3644 = vmatpush1.bf16.msra.mxu0 0
  %3645 = vmatprep.subr.bf16.mxu0 0
  %3646 = vmatpush1.bf16.msra.mxu0 0
  %3647 = vmatprep.subr.bf16.mxu0 0
  %3648 = vmatpush1.bf16.msra.mxu0 0
  %3649 = vmatprep.subr.bf16.mxu0 0
  %3650 = vmatpush1.bf16.msra.mxu0 0
  %3651 = vmatprep.subr.bf16.mxu0 0
  %3652 = vmatpush1.bf16.msra.mxu0 0
  %3653 = vmatprep.subr.bf16.mxu0 0
  %3654 = vmatpush1.bf16.msra.mxu0 0
  %3655 = vmatprep.subr.bf16.mxu0 0
  %3656 = vmatpush1.bf16.msra.mxu0 0
  %3657 = vmatprep.subr.bf16.mxu0 0
  %3658 = vmatpush1.bf16.msra.mxu0 0
  %3659 = vmatprep.subr.bf16.mxu0 0
  %3660 = vmatpush1.bf16.msra.mxu0 0
  %3661 = vmatprep.mubr.bf16.mxu0 0
  %3662 = vmatmul.mubr.bf16.gmra.mrb[0].mxu0 %v3586
  %v3663 = vpop.f32.mrb[0].mxu0
  %v3664 = vadd.f32 0.0, %v3663
  %v3665 = vpop.f32.mrb[0].mxu0
  %v3666 = vadd.f32 0.0, %v3665
  %v3667 = vpop.f32.mrb[0].mxu0
  %v3668 = vpop.f32.mrb[0].mxu0
  %3669 = vdwg.mxu0
  %3670 = vmatprep.subr.bf16.mxu0 %v3459
  %3671 = vmatpush1.bf16.msra.mxu0 %v3458
  %3672 = vmatprep.subr.bf16.mxu0 %v3491
  %3673 = vmatpush1.bf16.msra.mxu0 %v3490
  %3674 = vmatprep.subr.bf16.mxu0 %v3523
  %3675 = vmatpush1.bf16.msra.mxu0 %v3522
  %3676 = vmatprep.subr.bf16.mxu0 %v3555
  %3677 = vmatpush1.bf16.msra.mxu0 %v3554
  %3678 = vmatprep.subr.bf16.mxu0 0
  %3679 = vmatpush1.bf16.msra.mxu0 0
  %3680 = vmatprep.subr.bf16.mxu0 0
  %3681 = vmatpush1.bf16.msra.mxu0 0
  %3682 = vmatprep.subr.bf16.mxu0 0
  %3683 = vmatpush1.bf16.msra.mxu0 0
  %3684 = vmatprep.subr.bf16.mxu0 0
  %3685 = vmatpush1.bf16.msra.mxu0 0
  %3686 = vmatprep.subr.bf16.mxu0 0
  %3687 = vmatpush1.bf16.msra.mxu0 0
  %3688 = vmatprep.subr.bf16.mxu0 0
  %3689 = vmatpush1.bf16.msra.mxu0 0
  %3690 = vmatprep.subr.bf16.mxu0 0
  %3691 = vmatpush1.bf16.msra.mxu0 0
  %3692 = vmatprep.subr.bf16.mxu0 0
  %3693 = vmatpush1.bf16.msra.mxu0 0
  %3694 = vmatprep.subr.bf16.mxu0 0
  %3695 = vmatpush1.bf16.msra.mxu0 0
  %3696 = vmatprep.subr.bf16.mxu0 0
  %3697 = vmatpush1.bf16.msra.mxu0 0
  %3698 = vmatprep.subr.bf16.mxu0 0
  %3699 = vmatpush1.bf16.msra.mxu0 0
  %3700 = vmatprep.subr.bf16.mxu0 0
  %3701 = vmatpush1.bf16.msra.mxu0 0
  %3702 = vmatprep.mubr.bf16.mxu0 0
  %3703 = vmatmul.mubr.bf16.gmra.mrb[0].mxu0 %v3586
  %v3704 = vpop.f32.mrb[0].mxu0
  %v3705 = vadd.f32 0.0, %v3704
  %v3706 = vpop.f32.mrb[0].mxu0
  %v3707 = vadd.f32 0.0, %v3706
  %v3708 = vpop.f32.mrb[0].mxu0
  %v3709 = vpop.f32.mrb[0].mxu0
  %3710 = vdwg.mxu0
  %3711 = vmatprep.subr.bf16.mxu0 %v3461
  %3712 = vmatpush1.bf16.msra.mxu0 %v3460
  %3713 = vmatprep.subr.bf16.mxu0 %v3493
  %3714 = vmatpush1.bf16.msra.mxu0 %v3492
  %3715 = vmatprep.subr.bf16.mxu0 %v3525
  %3716 = vmatpush1.bf16.msra.mxu0 %v3524
  %3717 = vmatprep.subr.bf16.mxu0 %v3557
  %3718 = vmatpush1.bf16.msra.mxu0 %v3556
  %3719 = vmatprep.subr.bf16.mxu0 0
  %3720 = vmatpush1.bf16.msra.mxu0 0
  %3721 = vmatprep.subr.bf16.mxu0 0
  %3722 = vmatpush1.bf16.msra.mxu0 0
  %3723 = vmatprep.subr.bf16.mxu0 0
  %3724 = vmatpush1.bf16.msra.mxu0 0
  %3725 = vmatprep.subr.bf16.mxu0 0
  %3726 = vmatpush1.bf16.msra.mxu0 0
  %3727 = vmatprep.subr.bf16.mxu0 0
  %3728 = vmatpush1.bf16.msra.mxu0 0
  %3729 = vmatprep.subr.bf16.mxu0 0
  %3730 = vmatpush1.bf16.msra.mxu0 0
  %3731 = vmatprep.subr.bf16.mxu0 0
  %3732 = vmatpush1.bf16.msra.mxu0 0
  %3733 = vmatprep.subr.bf16.mxu0 0
  %3734 = vmatpush1.bf16.msra.mxu0 0
  %3735 = vmatprep.subr.bf16.mxu0 0
  %3736 = vmatpush1.bf16.msra.mxu0 0
  %3737 = vmatprep.subr.bf16.mxu0 0
  %3738 = vmatpush1.bf16.msra.mxu0 0
  %3739 = vmatprep.subr.bf16.mxu0 0
  %3740 = vmatpush1.bf16.msra.mxu0 0
  %3741 = vmatprep.subr.bf16.mxu0 0
  %3742 = vmatpush1.bf16.msra.mxu0 0
  %3743 = vmatprep.mubr.bf16.mxu0 0
  %3744 = vmatmul.mubr.bf16.gmra.mrb[0].mxu0 %v3586
  %v3745 = vpop.f32.mrb[0].mxu0
  %v3746 = vadd.f32 0.0, %v3745
  %v3747 = vpop.f32.mrb[0].mxu0
  %v3748 = vadd.f32 0.0, %v3747
  %v3749 = vpop.f32.mrb[0].mxu0
  %v3750 = vpop.f32.mrb[0].mxu0
  %3751 = vdwg.mxu0
  %3752 = vmatprep.subr.bf16.mxu0 %v3463
  %3753 = vmatpush1.bf16.msra.mxu0 %v3462
  %3754 = vmatprep.subr.bf16.mxu0 %v3495
  %3755 = vmatpush1.bf16.msra.mxu0 %v3494
  %3756 = vmatprep.subr.bf16.mxu0 %v3527
  %3757 = vmatpush1.bf16.msra.mxu0 %v3526
  %3758 = vmatprep.subr.bf16.mxu0 %v3559
  %3759 = vmatpush1.bf16.msra.mxu0 %v3558
  %3760 = vmatprep.subr.bf16.mxu0 0
  %3761 = vmatpush1.bf16.msra.mxu0 0
  %3762 = vmatprep.subr.bf16.mxu0 0
  %3763 = vmatpush1.bf16.msra.mxu0 0
  %3764 = vmatprep.subr.bf16.mxu0 0
  %3765 = vmatpush1.bf16.msra.mxu0 0
  %3766 = vmatprep.subr.bf16.mxu0 0
  %3767 = vmatpush1.bf16.msra.mxu0 0
  %3768 = vmatprep.subr.bf16.mxu0 0
  %3769 = vmatpush1.bf16.msra.mxu0 0
  %3770 = vmatprep.subr.bf16.mxu0 0
  %3771 = vmatpush1.bf16.msra.mxu0 0
  %3772 = vmatprep.subr.bf16.mxu0 0
  %3773 = vmatpush1.bf16.msra.mxu0 0
  %3774 = vmatprep.subr.bf16.mxu0 0
  %3775 = vmatpush1.bf16.msra.mxu0 0
  %3776 = vmatprep.subr.bf16.mxu0 0
  %3777 = vmatpush1.bf16.msra.mxu0 0
  %3778 = vmatprep.subr.bf16.mxu0 0
  %3779 = vmatpush1.bf16.msra.mxu0 0
  %3780 = vmatprep.subr.bf16.mxu0 0
  %3781 = vmatpush1.bf16.msra.mxu0 0
  %3782 = vmatprep.subr.bf16.mxu0 0
  %3783 = vmatpush1.bf16.msra.mxu0 0
  %3784 = vmatprep.mubr.bf16.mxu0 0
  %3785 = vmatmul.mubr.bf16.gmra.mrb[0].mxu0 %v3586
  %v3786 = vpop.f32.mrb[0].mxu0
  %v3787 = vadd.f32 0.0, %v3786
  %v3788 = vpop.f32.mrb[0].mxu0
  %v3789 = vadd.f32 0.0, %v3788
  %v3790 = vpop.f32.mrb[0].mxu0
  %v3791 = vpop.f32.mrb[0].mxu0
  %3792 = vdwg.mxu0
  %3793 = vmatprep.subr.bf16.mxu0 %v3465
  %3794 = vmatpush1.bf16.msra.mxu0 %v3464
  %3795 = vmatprep.subr.bf16.mxu0 %v3497
  %3796 = vmatpush1.bf16.msra.mxu0 %v3496
  %3797 = vmatprep.subr.bf16.mxu0 %v3529
  %3798 = vmatpush1.bf16.msra.mxu0 %v3528
  %3799 = vmatprep.subr.bf16.mxu0 %v3561
  %3800 = vmatpush1.bf16.msra.mxu0 %v3560
  %3801 = vmatprep.subr.bf16.mxu0 0
  %3802 = vmatpush1.bf16.msra.mxu0 0
  %3803 = vmatprep.subr.bf16.mxu0 0
  %3804 = vmatpush1.bf16.msra.mxu0 0
  %3805 = vmatprep.subr.bf16.mxu0 0
  %3806 = vmatpush1.bf16.msra.mxu0 0
  %3807 = vmatprep.subr.bf16.mxu0 0
  %3808 = vmatpush1.bf16.msra.mxu0 0
  %3809 = vmatprep.subr.bf16.mxu0 0
  %3810 = vmatpush1.bf16.msra.mxu0 0
  %3811 = vmatprep.subr.bf16.mxu0 0
  %3812 = vmatpush1.bf16.msra.mxu0 0
  %3813 = vmatprep.subr.bf16.mxu0 0
  %3814 = vmatpush1.bf16.msra.mxu0 0
  %3815 = vmatprep.subr.bf16.mxu0 0
  %3816 = vmatpush1.bf16.msra.mxu0 0
  %3817 = vmatprep.subr.bf16.mxu0 0
  %3818 = vmatpush1.bf16.msra.mxu0 0
  %3819 = vmatprep.subr.bf16.mxu0 0
  %3820 = vmatpush1.bf16.msra.mxu0 0
  %3821 = vmatprep.subr.bf16.mxu0 0
  %3822 = vmatpush1.bf16.msra.mxu0 0
  %3823 = vmatprep.subr.bf16.mxu0 0
  %3824 = vmatpush1.bf16.msra.mxu0 0
  %3825 = vmatprep.mubr.bf16.mxu0 0
  %3826 = vmatmul.mubr.bf16.gmra.mrb[0].mxu0 %v3586
  %v3827 = vpop.f32.mrb[0].mxu0
  %v3828 = vadd.f32 0.0, %v3827
  %v3829 = vpop.f32.mrb[0].mxu0
  %v3830 = vadd.f32 0.0, %v3829
  %v3831 = vpop.f32.mrb[0].mxu0
  %v3832 = vpop.f32.mrb[0].mxu0
  %3833 = vdwg.mxu0
  %3834 = vmatprep.subr.bf16.mxu0 %v3467
  %3835 = vmatpush1.bf16.msra.mxu0 %v3466
  %3836 = vmatprep.subr.bf16.mxu0 %v3499
  %3837 = vmatpush1.bf16.msra.mxu0 %v3498
  %3838 = vmatprep.subr.bf16.mxu0 %v3531
  %3839 = vmatpush1.bf16.msra.mxu0 %v3530
  %3840 = vmatprep.subr.bf16.mxu0 %v3563
  %3841 = vmatpush1.bf16.msra.mxu0 %v3562
  %3842 = vmatprep.subr.bf16.mxu0 0
  %3843 = vmatpush1.bf16.msra.mxu0 0
  %3844 = vmatprep.subr.bf16.mxu0 0
  %3845 = vmatpush1.bf16.msra.mxu0 0
  %3846 = vmatprep.subr.bf16.mxu0 0
  %3847 = vmatpush1.bf16.msra.mxu0 0
  %3848 = vmatprep.subr.bf16.mxu0 0
  %3849 = vmatpush1.bf16.msra.mxu0 0
  %3850 = vmatprep.subr.bf16.mxu0 0
  %3851 = vmatpush1.bf16.msra.mxu0 0
  %3852 = vmatprep.subr.bf16.mxu0 0
  %3853 = vmatpush1.bf16.msra.mxu0 0
  %3854 = vmatprep.subr.bf16.mxu0 0
  %3855 = vmatpush1.bf16.msra.mxu0 0
  %3856 = vmatprep.subr.bf16.mxu0 0
  %3857 = vmatpush1.bf16.msra.mxu0 0
  %3858 = vmatprep.subr.bf16.mxu0 0
  %3859 = vmatpush1.bf16.msra.mxu0 0
  %3860 = vmatprep.subr.bf16.mxu0 0
  %3861 = vmatpush1.bf16.msra.mxu0 0
  %3862 = vmatprep.subr.bf16.mxu0 0
  %3863 = vmatpush1.bf16.msra.mxu0 0
  %3864 = vmatprep.subr.bf16.mxu0 0
  %3865 = vmatpush1.bf16.msra.mxu0 0
  %3866 = vmatprep.mubr.bf16.mxu0 0
  %3867 = vmatmul.mubr.bf16.gmra.mrb[0].mxu0 %v3586
  %v3868 = vpop.f32.mrb[0].mxu0
  %v3869 = vadd.f32 0.0, %v3868
  %v3870 = vpop.f32.mrb[0].mxu0
  %v3871 = vadd.f32 0.0, %v3870
  %v3872 = vpop.f32.mrb[0].mxu0
  %v3873 = vpop.f32.mrb[0].mxu0
  %3874 = vdwg.mxu0
  %3875 = vmatprep.subr.bf16.mxu0 %v3469
  %3876 = vmatpush1.bf16.msra.mxu0 %v3468
  %3877 = vmatprep.subr.bf16.mxu0 %v3501
  %3878 = vmatpush1.bf16.msra.mxu0 %v3500
  %3879 = vmatprep.subr.bf16.mxu0 %v3533
  %3880 = vmatpush1.bf16.msra.mxu0 %v3532
  %3881 = vmatprep.subr.bf16.mxu0 %v3565
  %3882 = vmatpush1.bf16.msra.mxu0 %v3564
  %3883 = vmatprep.subr.bf16.mxu0 0
  %3884 = vmatpush1.bf16.msra.mxu0 0
  %3885 = vmatprep.subr.bf16.mxu0 0
  %3886 = vmatpush1.bf16.msra.mxu0 0
  %3887 = vmatprep.subr.bf16.mxu0 0
  %3888 = vmatpush1.bf16.msra.mxu0 0
  %3889 = vmatprep.subr.bf16.mxu0 0
  %3890 = vmatpush1.bf16.msra.mxu0 0
  %3891 = vmatprep.subr.bf16.mxu0 0
  %3892 = vmatpush1.bf16.msra.mxu0 0
  %3893 = vmatprep.subr.bf16.mxu0 0
  %3894 = vmatpush1.bf16.msra.mxu0 0
  %3895 = vmatprep.subr.bf16.mxu0 0
  %3896 = vmatpush1.bf16.msra.mxu0 0
  %3897 = vmatprep.subr.bf16.mxu0 0
  %3898 = vmatpush1.bf16.msra.mxu0 0
  %3899 = vmatprep.subr.bf16.mxu0 0
  %3900 = vmatpush1.bf16.msra.mxu0 0
  %3901 = vmatprep.subr.bf16.mxu0 0
  %3902 = vmatpush1.bf16.msra.mxu0 0
  %3903 = vmatprep.subr.bf16.mxu0 0
  %3904 = vmatpush1.bf16.msra.mxu0 0
  %3905 = vmatprep.subr.bf16.mxu0 0
  %3906 = vmatpush1.bf16.msra.mxu0 0
  %3907 = vmatprep.mubr.bf16.mxu0 0
  %3908 = vmatmul.mubr.bf16.gmra.mrb[0].mxu0 %v3586
  %v3909 = vpop.f32.mrb[0].mxu0
  %v3910 = vadd.f32 0.0, %v3909
  %v3911 = vpop.f32.mrb[0].mxu0
  %v3912 = vadd.f32 0.0, %v3911
  %v3913 = vpop.f32.mrb[0].mxu0
  %v3914 = vpop.f32.mrb[0].mxu0
  %3915 = vdwg.mxu0
  %3916 = vmatprep.subr.bf16.mxu0 %v3471
  %3917 = vmatpush1.bf16.msra.mxu0 %v3470
  %3918 = vmatprep.subr.bf16.mxu0 %v3503
  %3919 = vmatpush1.bf16.msra.mxu0 %v3502
  %3920 = vmatprep.subr.bf16.mxu0 %v3535
  %3921 = vmatpush1.bf16.msra.mxu0 %v3534
  %3922 = vmatprep.subr.bf16.mxu0 %v3567
  %3923 = vmatpush1.bf16.msra.mxu0 %v3566
  %3924 = vmatprep.subr.bf16.mxu0 0
  %3925 = vmatpush1.bf16.msra.mxu0 0
  %3926 = vmatprep.subr.bf16.mxu0 0
  %3927 = vmatpush1.bf16.msra.mxu0 0
  %3928 = vmatprep.subr.bf16.mxu0 0
  %3929 = vmatpush1.bf16.msra.mxu0 0
  %3930 = vmatprep.subr.bf16.mxu0 0
  %3931 = vmatpush1.bf16.msra.mxu0 0
  %3932 = vmatprep.subr.bf16.mxu0 0
  %3933 = vmatpush1.bf16.msra.mxu0 0
  %3934 = vmatprep.subr.bf16.mxu0 0
  %3935 = vmatpush1.bf16.msra.mxu0 0
  %3936 = vmatprep.subr.bf16.mxu0 0
  %3937 = vmatpush1.bf16.msra.mxu0 0
  %3938 = vmatprep.subr.bf16.mxu0 0
  %3939 = vmatpush1.bf16.msra.mxu0 0
  %3940 = vmatprep.subr.bf16.mxu0 0
  %3941 = vmatpush1.bf16.msra.mxu0 0
  %3942 = vmatprep.subr.bf16.mxu0 0
  %3943 = vmatpush1.bf16.msra.mxu0 0
  %3944 = vmatprep.subr.bf16.mxu0 0
  %3945 = vmatpush1.bf16.msra.mxu0 0
  %3946 = vmatprep.subr.bf16.mxu0 0
  %3947 = vmatpush1.bf16.msra.mxu0 0
  %3948 = vmatprep.mubr.bf16.mxu0 0
  %3949 = vmatmul.mubr.bf16.gmra.mrb[0].mxu0 %v3586
  %v3950 = vpop.f32.mrb[0].mxu0
  %v3951 = vadd.f32 0.0, %v3950
  %v3952 = vpop.f32.mrb[0].mxu0
  %v3953 = vadd.f32 0.0, %v3952
  %v3954 = vpop.f32.mrb[0].mxu0
  %v3955 = vpop.f32.mrb[0].mxu0
  %3956 = vdwg.mxu0
  %3957 = vmatprep.subr.bf16.mxu0 %v3473
  %3958 = vmatpush1.bf16.msra.mxu0 %v3472
  %3959 = vmatprep.subr.bf16.mxu0 %v3505
  %3960 = vmatpush1.bf16.msra.mxu0 %v3504
  %3961 = vmatprep.subr.bf16.mxu0 %v3537
  %3962 = vmatpush1.bf16.msra.mxu0 %v3536
  %3963 = vmatprep.subr.bf16.mxu0 %v3569
  %3964 = vmatpush1.bf16.msra.mxu0 %v3568
  %3965 = vmatprep.subr.bf16.mxu0 0
  %3966 = vmatpush1.bf16.msra.mxu0 0
  %3967 = vmatprep.subr.bf16.mxu0 0
  %3968 = vmatpush1.bf16.msra.mxu0 0
  %3969 = vmatprep.subr.bf16.mxu0 0
  %3970 = vmatpush1.bf16.msra.mxu0 0
  %3971 = vmatprep.subr.bf16.mxu0 0
  %3972 = vmatpush1.bf16.msra.mxu0 0
  %3973 = vmatprep.subr.bf16.mxu0 0
  %3974 = vmatpush1.bf16.msra.mxu0 0
  %3975 = vmatprep.subr.bf16.mxu0 0
  %3976 = vmatpush1.bf16.msra.mxu0 0
  %3977 = vmatprep.subr.bf16.mxu0 0
  %3978 = vmatpush1.bf16.msra.mxu0 0
  %3979 = vmatprep.subr.bf16.mxu0 0
  %3980 = vmatpush1.bf16.msra.mxu0 0
  %3981 = vmatprep.subr.bf16.mxu0 0
  %3982 = vmatpush1.bf16.msra.mxu0 0
  %3983 = vmatprep.subr.bf16.mxu0 0
  %3984 = vmatpush1.bf16.msra.mxu0 0
  %3985 = vmatprep.subr.bf16.mxu0 0
  %3986 = vmatpush1.bf16.msra.mxu0 0
  %3987 = vmatprep.subr.bf16.mxu0 0
  %3988 = vmatpush1.bf16.msra.mxu0 0
  %3989 = vmatprep.mubr.bf16.mxu0 0
  %3990 = vmatmul.mubr.bf16.gmra.mrb[0].mxu0 %v3586
  %v3991 = vpop.f32.mrb[0].mxu0
  %v3992 = vadd.f32 0.0, %v3991
  %v3993 = vpop.f32.mrb[0].mxu0
  %v3994 = vadd.f32 0.0, %v3993
  %v3995 = vpop.f32.mrb[0].mxu0
  %v3996 = vpop.f32.mrb[0].mxu0
  %3997 = vdwg.mxu0
  %3998 = vmatprep.subr.bf16.mxu0 %v3475
  %3999 = vmatpush1.bf16.msra.mxu0 %v3474
  %4000 = vmatprep.subr.bf16.mxu0 %v3507
  %4001 = vmatpush1.bf16.msra.mxu0 %v3506
  %4002 = vmatprep.subr.bf16.mxu0 %v3539
  %4003 = vmatpush1.bf16.msra.mxu0 %v3538
  %4004 = vmatprep.subr.bf16.mxu0 %v3571
  %4005 = vmatpush1.bf16.msra.mxu0 %v3570
  %4006 = vmatprep.subr.bf16.mxu0 0
  %4007 = vmatpush1.bf16.msra.mxu0 0
  %4008 = vmatprep.subr.bf16.mxu0 0
  %4009 = vmatpush1.bf16.msra.mxu0 0
  %4010 = vmatprep.subr.bf16.mxu0 0
  %4011 = vmatpush1.bf16.msra.mxu0 0
  %4012 = vmatprep.subr.bf16.mxu0 0
  %4013 = vmatpush1.bf16.msra.mxu0 0
  %4014 = vmatprep.subr.bf16.mxu0 0
  %4015 = vmatpush1.bf16.msra.mxu0 0
  %4016 = vmatprep.subr.bf16.mxu0 0
  %4017 = vmatpush1.bf16.msra.mxu0 0
  %4018 = vmatprep.subr.bf16.mxu0 0
  %4019 = vmatpush1.bf16.msra.mxu0 0
  %4020 = vmatprep.subr.bf16.mxu0 0
  %4021 = vmatpush1.bf16.msra.mxu0 0
  %4022 = vmatprep.subr.bf16.mxu0 0
  %4023 = vmatpush1.bf16.msra.mxu0 0
  %4024 = vmatprep.subr.bf16.mxu0 0
  %4025 = vmatpush1.bf16.msra.mxu0 0
  %4026 = vmatprep.subr.bf16.mxu0 0
  %4027 = vmatpush1.bf16.msra.mxu0 0
  %4028 = vmatprep.subr.bf16.mxu0 0
  %4029 = vmatpush1.bf16.msra.mxu0 0
  %4030 = vmatprep.mubr.bf16.mxu0 0
  %4031 = vmatmul.mubr.bf16.gmra.mrb[0].mxu0 %v3586
  %v4032 = vpop.f32.mrb[0].mxu0
  %v4033 = vadd.f32 0.0, %v4032
  %v4034 = vpop.f32.mrb[0].mxu0
  %v4035 = vadd.f32 0.0, %v4034
  %v4036 = vpop.f32.mrb[0].mxu0
  %v4037 = vpop.f32.mrb[0].mxu0
  %4038 = vdwg.mxu0
  %4039 = vmatprep.subr.bf16.mxu0 %v3477
  %4040 = vmatpush1.bf16.msra.mxu0 %v3476
  %4041 = vmatprep.subr.bf16.mxu0 %v3509
  %4042 = vmatpush1.bf16.msra.mxu0 %v3508
  %4043 = vmatprep.subr.bf16.mxu0 %v3541
  %4044 = vmatpush1.bf16.msra.mxu0 %v3540
  %4045 = vmatprep.subr.bf16.mxu0 %v3573
  %4046 = vmatpush1.bf16.msra.mxu0 %v3572
  %4047 = vmatprep.subr.bf16.mxu0 0
  %4048 = vmatpush1.bf16.msra.mxu0 0
  %4049 = vmatprep.subr.bf16.mxu0 0
  %4050 = vmatpush1.bf16.msra.mxu0 0
  %4051 = vmatprep.subr.bf16.mxu0 0
  %4052 = vmatpush1.bf16.msra.mxu0 0
  %4053 = vmatprep.subr.bf16.mxu0 0
  %4054 = vmatpush1.bf16.msra.mxu0 0
  %4055 = vmatprep.subr.bf16.mxu0 0
  %4056 = vmatpush1.bf16.msra.mxu0 0
  %4057 = vmatprep.subr.bf16.mxu0 0
  %4058 = vmatpush1.bf16.msra.mxu0 0
  %4059 = vmatprep.subr.bf16.mxu0 0
  %4060 = vmatpush1.bf16.msra.mxu0 0
  %4061 = vmatprep.subr.bf16.mxu0 0
  %4062 = vmatpush1.bf16.msra.mxu0 0
  %4063 = vmatprep.subr.bf16.mxu0 0
  %4064 = vmatpush1.bf16.msra.mxu0 0
  %4065 = vmatprep.subr.bf16.mxu0 0
  %4066 = vmatpush1.bf16.msra.mxu0 0
  %4067 = vmatprep.subr.bf16.mxu0 0
  %4068 = vmatpush1.bf16.msra.mxu0 0
  %4069 = vmatprep.subr.bf16.mxu0 0
  %4070 = vmatpush1.bf16.msra.mxu0 0
  %4071 = vmatprep.mubr.bf16.mxu0 0
  %4072 = vmatmul.mubr.bf16.gmra.mrb[0].mxu0 %v3586
  %v4073 = vpop.f32.mrb[0].mxu0
  %v4074 = vadd.f32 0.0, %v4073
  %v4075 = vpop.f32.mrb[0].mxu0
  %v4076 = vadd.f32 0.0, %v4075
  %v4077 = vpop.f32.mrb[0].mxu0
  %v4078 = vpop.f32.mrb[0].mxu0
  %4079 = vdwg.mxu0
  %4080 = vmatprep.subr.bf16.mxu0 %v3479
  %4081 = vmatpush1.bf16.msra.mxu0 %v3478
  %4082 = vmatprep.subr.bf16.mxu0 %v3511
  %4083 = vmatpush1.bf16.msra.mxu0 %v3510
  %4084 = vmatprep.subr.bf16.mxu0 %v3543
  %4085 = vmatpush1.bf16.msra.mxu0 %v3542
  %4086 = vmatprep.subr.bf16.mxu0 %v3575
  %4087 = vmatpush1.bf16.msra.mxu0 %v3574
  %4088 = vmatprep.subr.bf16.mxu0 0
  %4089 = vmatpush1.bf16.msra.mxu0 0
  %4090 = vmatprep.subr.bf16.mxu0 0
  %4091 = vmatpush1.bf16.msra.mxu0 0
  %4092 = vmatprep.subr.bf16.mxu0 0
  %4093 = vmatpush1.bf16.msra.mxu0 0
  %4094 = vmatprep.subr.bf16.mxu0 0
  %4095 = vmatpush1.bf16.msra.mxu0 0
  %4096 = vmatprep.subr.bf16.mxu0 0
  %4097 = vmatpush1.bf16.msra.mxu0 0
  %4098 = vmatprep.subr.bf16.mxu0 0
  %4099 = vmatpush1.bf16.msra.mxu0 0
  %4100 = vmatprep.subr.bf16.mxu0 0
  %4101 = vmatpush1.bf16.msra.mxu0 0
  %4102 = vmatprep.subr.bf16.mxu0 0
  %4103 = vmatpush1.bf16.msra.mxu0 0
  %4104 = vmatprep.subr.bf16.mxu0 0
  %4105 = vmatpush1.bf16.msra.mxu0 0
  %4106 = vmatprep.subr.bf16.mxu0 0
  %4107 = vmatpush1.bf16.msra.mxu0 0
  %4108 = vmatprep.subr.bf16.mxu0 0
  %4109 = vmatpush1.bf16.msra.mxu0 0
  %4110 = vmatprep.subr.bf16.mxu0 0
  %4111 = vmatpush1.bf16.msra.mxu0 0
  %4112 = vmatprep.mubr.bf16.mxu0 0
  %4113 = vmatmul.mubr.bf16.gmra.mrb[0].mxu0 %v3586
  %v4114 = vpop.f32.mrb[0].mxu0
  %v4115 = vadd.f32 0.0, %v4114
  %v4116 = vpop.f32.mrb[0].mxu0
  %v4117 = vadd.f32 0.0, %v4116
  %v4118 = vpop.f32.mrb[0].mxu0
  %v4119 = vpop.f32.mrb[0].mxu0
  %4120 = vdwg.mxu0
  %4121 = vmatprep.subr.bf16.mxu0 %v3481
  %4122 = vmatpush1.bf16.msra.mxu0 %v3480
  %4123 = vmatprep.subr.bf16.mxu0 %v3513
  %4124 = vmatpush1.bf16.msra.mxu0 %v3512
  %4125 = vmatprep.subr.bf16.mxu0 %v3545
  %4126 = vmatpush1.bf16.msra.mxu0 %v3544
  %4127 = vmatprep.subr.bf16.mxu0 %v3577
  %4128 = vmatpush1.bf16.msra.mxu0 %v3576
  %4129 = vmatprep.subr.bf16.mxu0 0
  %4130 = vmatpush1.bf16.msra.mxu0 0
  %4131 = vmatprep.subr.bf16.mxu0 0
  %4132 = vmatpush1.bf16.msra.mxu0 0
  %4133 = vmatprep.subr.bf16.mxu0 0
  %4134 = vmatpush1.bf16.msra.mxu0 0
  %4135 = vmatprep.subr.bf16.mxu0 0
  %4136 = vmatpush1.bf16.msra.mxu0 0
  %4137 = vmatprep.subr.bf16.mxu0 0
  %4138 = vmatpush1.bf16.msra.mxu0 0
  %4139 = vmatprep.subr.bf16.mxu0 0
  %4140 = vmatpush1.bf16.msra.mxu0 0
  %4141 = vmatprep.subr.bf16.mxu0 0
  %4142 = vmatpush1.bf16.msra.mxu0 0
  %4143 = vmatprep.subr.bf16.mxu0 0
  %4144 = vmatpush1.bf16.msra.mxu0 0
  %4145 = vmatprep.subr.bf16.mxu0 0
  %4146 = vmatpush1.bf16.msra.mxu0 0
  %4147 = vmatprep.subr.bf16.mxu0 0
  %4148 = vmatpush1.bf16.msra.mxu0 0
  %4149 = vmatprep.subr.bf16.mxu0 0
  %4150 = vmatpush1.bf16.msra.mxu0 0
  %4151 = vmatprep.subr.bf16.mxu0 0
  %4152 = vmatpush1.bf16.msra.mxu0 0
  %4153 = vmatprep.mubr.bf16.mxu0 0
  %4154 = vmatmul.mubr.bf16.gmra.mrb[0].mxu0 %v3586
  %v4155 = vpop.f32.mrb[0].mxu0
  %v4156 = vadd.f32 0.0, %v4155
  %v4157 = vpop.f32.mrb[0].mxu0
  %v4158 = vadd.f32 0.0, %v4157
  %v4159 = vpop.f32.mrb[0].mxu0
  %v4160 = vpop.f32.mrb[0].mxu0
  %4161 = vdwg.mxu0
  %4162 = vmatprep.subr.bf16.mxu0 %v3483
  %4163 = vmatpush1.bf16.msra.mxu0 %v3482
  %4164 = vmatprep.subr.bf16.mxu0 %v3515
  %4165 = vmatpush1.bf16.msra.mxu0 %v3514
  %4166 = vmatprep.subr.bf16.mxu0 %v3547
  %4167 = vmatpush1.bf16.msra.mxu0 %v3546
  %4168 = vmatprep.subr.bf16.mxu0 %v3579
  %4169 = vmatpush1.bf16.msra.mxu0 %v3578
  %4170 = vmatprep.subr.bf16.mxu0 0
  %4171 = vmatpush1.bf16.msra.mxu0 0
  %4172 = vmatprep.subr.bf16.mxu0 0
  %4173 = vmatpush1.bf16.msra.mxu0 0
  %4174 = vmatprep.subr.bf16.mxu0 0
  %4175 = vmatpush1.bf16.msra.mxu0 0
  %4176 = vmatprep.subr.bf16.mxu0 0
  %4177 = vmatpush1.bf16.msra.mxu0 0
  %4178 = vmatprep.subr.bf16.mxu0 0
  %4179 = vmatpush1.bf16.msra.mxu0 0
  %4180 = vmatprep.subr.bf16.mxu0 0
  %4181 = vmatpush1.bf16.msra.mxu0 0
  %4182 = vmatprep.subr.bf16.mxu0 0
  %4183 = vmatpush1.bf16.msra.mxu0 0
  %4184 = vmatprep.subr.bf16.mxu0 0
  %4185 = vmatpush1.bf16.msra.mxu0 0
  %4186 = vmatprep.subr.bf16.mxu0 0
  %4187 = vmatpush1.bf16.msra.mxu0 0
  %4188 = vmatprep.subr.bf16.mxu0 0
  %4189 = vmatpush1.bf16.msra.mxu0 0
  %4190 = vmatprep.subr.bf16.mxu0 0
  %4191 = vmatpush1.bf16.msra.mxu0 0
  %4192 = vmatprep.subr.bf16.mxu0 0
  %4193 = vmatpush1.bf16.msra.mxu0 0
  %4194 = vmatprep.mubr.bf16.mxu0 0
  %4195 = vmatmul.mubr.bf16.gmra.mrb[0].mxu0 %v3586
  %v4196 = vpop.f32.mrb[0].mxu0
  %v4197 = vadd.f32 0.0, %v4196
  %v4198 = vpop.f32.mrb[0].mxu0
  %v4199 = vadd.f32 0.0, %v4198
  %v4200 = vpop.f32.mrb[0].mxu0
  %v4201 = vpop.f32.mrb[0].mxu0
  %4202 = vdwg.mxu0
  %4203 = vmatprep.subr.bf16.mxu0 %v3485
  %4204 = vmatpush1.bf16.msra.mxu0 %v3484
  %4205 = vmatprep.subr.bf16.mxu0 %v3517
  %4206 = vmatpush1.bf16.msra.mxu0 %v3516
  %4207 = vmatprep.subr.bf16.mxu0 %v3549
  %4208 = vmatpush1.bf16.msra.mxu0 %v3548
  %4209 = vmatprep.subr.bf16.mxu0 %v3581
  %4210 = vmatpush1.bf16.msra.mxu0 %v3580
  %4211 = vmatprep.subr.bf16.mxu0 0
  %4212 = vmatpush1.bf16.msra.mxu0 0
  %4213 = vmatprep.subr.bf16.mxu0 0
  %4214 = vmatpush1.bf16.msra.mxu0 0
  %4215 = vmatprep.subr.bf16.mxu0 0
  %4216 = vmatpush1.bf16.msra.mxu0 0
  %4217 = vmatprep.subr.bf16.mxu0 0
  %4218 = vmatpush1.bf16.msra.mxu0 0
  %4219 = vmatprep.subr.bf16.mxu0 0
  %4220 = vmatpush1.bf16.msra.mxu0 0
  %4221 = vmatprep.subr.bf16.mxu0 0
  %4222 = vmatpush1.bf16.msra.mxu0 0
  %4223 = vmatprep.subr.bf16.mxu0 0
  %4224 = vmatpush1.bf16.msra.mxu0 0
  %4225 = vmatprep.subr.bf16.mxu0 0
  %4226 = vmatpush1.bf16.msra.mxu0 0
  %4227 = vmatprep.subr.bf16.mxu0 0
  %4228 = vmatpush1.bf16.msra.mxu0 0
  %4229 = vmatprep.subr.bf16.mxu0 0
  %4230 = vmatpush1.bf16.msra.mxu0 0
  %4231 = vmatprep.subr.bf16.mxu0 0
  %4232 = vmatpush1.bf16.msra.mxu0 0
  %4233 = vmatprep.subr.bf16.mxu0 0
  %4234 = vmatpush1.bf16.msra.mxu0 0
  %4235 = vmatprep.mubr.bf16.mxu0 0
  %4236 = vmatmul.mubr.bf16.gmra.mrb[0].mxu0 %v3586
  %v4237 = vpop.f32.mrb[0].mxu0
  %v4238 = vadd.f32 0.0, %v4237
  %v4239 = vpop.f32.mrb[0].mxu0
  %v4240 = vadd.f32 0.0, %v4239
  %v4241 = vpop.f32.mrb[0].mxu0
  %v4242 = vpop.f32.mrb[0].mxu0
  %4243 = vdwg.mxu0
  %v4244 = vlaneseq
  %v4245 = vshrl.u32 %v4244, 7
  %v4246 = vsub.s32 0, %v4245
  %v4247 = vrot.slane %v3623, %v4246
  %v4248 = vlaneseq
  %v4249 = vshrl.u32 %v4248, 7
  %v4250 = vsub.s32 0, %v4249
  %v4251 = vrot.slane %v3625, %v4250
  %v4252 = vlaneseq
  %v4253 = vshrl.u32 %v4252, 7
  %v4254 = vsub.s32 0, %v4253
  %v4255 = vrot.slane %v3664, %v4254
  %v4256 = vlaneseq
  %v4257 = vshrl.u32 %v4256, 7
  %v4258 = vsub.s32 0, %v4257
  %v4259 = vrot.slane %v3666, %v4258
  %v4260 = vlaneseq
  %v4261 = vshrl.u32 %v4260, 7
  %v4262 = vsub.s32 0, %v4261
  %v4263 = vrot.slane %v3705, %v4262
  %v4264 = vlaneseq
  %v4265 = vshrl.u32 %v4264, 7
  %v4266 = vsub.s32 0, %v4265
  %v4267 = vrot.slane %v3707, %v4266
  %v4268 = vlaneseq
  %v4269 = vshrl.u32 %v4268, 7
  %v4270 = vsub.s32 0, %v4269
  %v4271 = vrot.slane %v3746, %v4270
  %v4272 = vlaneseq
  %v4273 = vshrl.u32 %v4272, 7
  %v4274 = vsub.s32 0, %v4273
  %v4275 = vrot.slane %v3748, %v4274
  %v4276 = vlaneseq
  %v4277 = vshrl.u32 %v4276, 7
  %v4278 = vsub.s32 0, %v4277
  %v4279 = vrot.slane %v3787, %v4278
  %v4280 = vlaneseq
  %v4281 = vshrl.u32 %v4280, 7
  %v4282 = vsub.s32 0, %v4281
  %v4283 = vrot.slane %v3789, %v4282
  %v4284 = vlaneseq
  %v4285 = vshrl.u32 %v4284, 7
  %v4286 = vsub.s32 0, %v4285
  %v4287 = vrot.slane %v3828, %v4286
  %v4288 = vlaneseq
  %v4289 = vshrl.u32 %v4288, 7
  %v4290 = vsub.s32 0, %v4289
  %v4291 = vrot.slane %v3830, %v4290
  %v4292 = vlaneseq
  %v4293 = vshrl.u32 %v4292, 7
  %v4294 = vsub.s32 0, %v4293
  %v4295 = vrot.slane %v3869, %v4294
  %v4296 = vlaneseq
  %v4297 = vshrl.u32 %v4296, 7
  %v4298 = vsub.s32 0, %v4297
  %v4299 = vrot.slane %v3871, %v4298
  %v4300 = vlaneseq
  %v4301 = vshrl.u32 %v4300, 7
  %v4302 = vsub.s32 0, %v4301
  %v4303 = vrot.slane %v3910, %v4302
  %v4304 = vlaneseq
  %v4305 = vshrl.u32 %v4304, 7
  %v4306 = vsub.s32 0, %v4305
  %v4307 = vrot.slane %v3912, %v4306
  %v4308 = vlaneseq
  %v4309 = vshrl.u32 %v4308, 7
  %v4310 = vsub.s32 0, %v4309
  %v4311 = vrot.slane %v3951, %v4310
  %v4312 = vlaneseq
  %v4313 = vshrl.u32 %v4312, 7
  %v4314 = vsub.s32 0, %v4313
  %v4315 = vrot.slane %v3953, %v4314
  %v4316 = vlaneseq
  %v4317 = vshrl.u32 %v4316, 7
  %v4318 = vsub.s32 0, %v4317
  %v4319 = vrot.slane %v3992, %v4318
  %v4320 = vlaneseq
  %v4321 = vshrl.u32 %v4320, 7
  %v4322 = vsub.s32 0, %v4321
  %v4323 = vrot.slane %v3994, %v4322
  %v4324 = vlaneseq
  %v4325 = vshrl.u32 %v4324, 7
  %v4326 = vsub.s32 0, %v4325
  %v4327 = vrot.slane %v4033, %v4326
  %v4328 = vlaneseq
  %v4329 = vshrl.u32 %v4328, 7
  %v4330 = vsub.s32 0, %v4329
  %v4331 = vrot.slane %v4035, %v4330
  %v4332 = vlaneseq
  %v4333 = vshrl.u32 %v4332, 7
  %v4334 = vsub.s32 0, %v4333
  %v4335 = vrot.slane %v4074, %v4334
  %v4336 = vlaneseq
  %v4337 = vshrl.u32 %v4336, 7
  %v4338 = vsub.s32 0, %v4337
  %v4339 = vrot.slane %v4076, %v4338
  %v4340 = vlaneseq
  %v4341 = vshrl.u32 %v4340, 7
  %v4342 = vsub.s32 0, %v4341
  %v4343 = vrot.slane %v4115, %v4342
  %v4344 = vlaneseq
  %v4345 = vshrl.u32 %v4344, 7
  %v4346 = vsub.s32 0, %v4345
  %v4347 = vrot.slane %v4117, %v4346
  %v4348 = vlaneseq
  %v4349 = vshrl.u32 %v4348, 7
  %v4350 = vsub.s32 0, %v4349
  %v4351 = vrot.slane %v4156, %v4350
  %v4352 = vlaneseq
  %v4353 = vshrl.u32 %v4352, 7
  %v4354 = vsub.s32 0, %v4353
  %v4355 = vrot.slane %v4158, %v4354
  %v4356 = vlaneseq
  %v4357 = vshrl.u32 %v4356, 7
  %v4358 = vsub.s32 0, %v4357
  %v4359 = vrot.slane %v4197, %v4358
  %v4360 = vlaneseq
  %v4361 = vshrl.u32 %v4360, 7
  %v4362 = vsub.s32 0, %v4361
  %v4363 = vrot.slane %v4199, %v4362
  %v4364 = vlaneseq
  %v4365 = vshrl.u32 %v4364, 7
  %v4366 = vsub.s32 0, %v4365
  %v4367 = vrot.slane %v4238, %v4366
  %v4368 = vlaneseq
  %v4369 = vshrl.u32 %v4368, 7
  %v4370 = vsub.s32 0, %v4369
  %v4371 = vrot.slane %v4240, %v4370
  %v4372 = vsub.f32 %v3623, %v4247
  %v4373 = vsub.f32 %v3625, %v4251
  %v4374 = vsub.f32 %v3664, %v4255
  %v4375 = vsub.f32 %v3666, %v4259
  %v4376 = vsub.f32 %v3705, %v4263
  %v4377 = vsub.f32 %v3707, %v4267
  %v4378 = vsub.f32 %v3746, %v4271
  %v4379 = vsub.f32 %v3748, %v4275
  %v4380 = vsub.f32 %v3787, %v4279
  %v4381 = vsub.f32 %v3789, %v4283
  %v4382 = vsub.f32 %v3828, %v4287
  %v4383 = vsub.f32 %v3830, %v4291
  %v4384 = vsub.f32 %v3869, %v4295
  %v4385 = vsub.f32 %v3871, %v4299
  %v4386 = vsub.f32 %v3910, %v4303
  %v4387 = vsub.f32 %v3912, %v4307
  %v4388 = vsub.f32 %v3951, %v4311
  %v4389 = vsub.f32 %v3953, %v4315
  %v4390 = vsub.f32 %v3992, %v4319
  %v4391 = vsub.f32 %v3994, %v4323
  %v4392 = vsub.f32 %v4033, %v4327
  %v4393 = vsub.f32 %v4035, %v4331
  %v4394 = vsub.f32 %v4074, %v4335
  %v4395 = vsub.f32 %v4076, %v4339
  %v4396 = vsub.f32 %v4115, %v4343
  %v4397 = vsub.f32 %v4117, %v4347
  %v4398 = vsub.f32 %v4156, %v4351
  %v4399 = vsub.f32 %v4158, %v4355
  %v4400 = vsub.f32 %v4197, %v4359
  %v4401 = vsub.f32 %v4199, %v4363
  %v4402 = vsub.f32 %v4238, %v4367
  %v4403 = vsub.f32 %v4240, %v4371
  %v4404 = vand.u32 2147483647, %v4372
  %v4405 = vand.u32 2147483647, %v4373
  %v4406 = vand.u32 2147483647, %v4374
  %v4407 = vand.u32 2147483647, %v4375
  %v4408 = vand.u32 2147483647, %v4376
  %v4409 = vand.u32 2147483647, %v4377
  %v4410 = vand.u32 2147483647, %v4378
  %v4411 = vand.u32 2147483647, %v4379
  %v4412 = vand.u32 2147483647, %v4380
  %v4413 = vand.u32 2147483647, %v4381
  %v4414 = vand.u32 2147483647, %v4382
  %v4415 = vand.u32 2147483647, %v4383
  %v4416 = vand.u32 2147483647, %v4384
  %v4417 = vand.u32 2147483647, %v4385
  %v4418 = vand.u32 2147483647, %v4386
  %v4419 = vand.u32 2147483647, %v4387
  %v4420 = vand.u32 2147483647, %v4388
  %v4421 = vand.u32 2147483647, %v4389
  %v4422 = vand.u32 2147483647, %v4390
  %v4423 = vand.u32 2147483647, %v4391
  %v4424 = vand.u32 2147483647, %v4392
  %v4425 = vand.u32 2147483647, %v4393
  %v4426 = vand.u32 2147483647, %v4394
  %v4427 = vand.u32 2147483647, %v4395
  %v4428 = vand.u32 2147483647, %v4396
  %v4429 = vand.u32 2147483647, %v4397
  %v4430 = vand.u32 2147483647, %v4398
  %v4431 = vand.u32 2147483647, %v4399
  %v4432 = vand.u32 2147483647, %v4400
  %v4433 = vand.u32 2147483647, %v4401
  %v4434 = vand.u32 2147483647, %v4402
  %v4435 = vand.u32 2147483647, %v4403
  %v4436 = vadd.f32 %v4404, %v4420
  %v4437 = vadd.f32 %v4405, %v4421
  %v4438 = vadd.f32 %v4406, %v4422
  %v4439 = vadd.f32 %v4407, %v4423
  %v4440 = vadd.f32 %v4408, %v4424
  %v4441 = vadd.f32 %v4409, %v4425
  %v4442 = vadd.f32 %v4410, %v4426
  %v4443 = vadd.f32 %v4411, %v4427
  %v4444 = vadd.f32 %v4412, %v4428
  %v4445 = vadd.f32 %v4413, %v4429
  %v4446 = vadd.f32 %v4414, %v4430
  %v4447 = vadd.f32 %v4415, %v4431
  %v4448 = vadd.f32 %v4416, %v4432
  %v4449 = vadd.f32 %v4417, %v4433
  %v4450 = vadd.f32 %v4418, %v4434
  %v4451 = vadd.f32 %v4419, %v4435
  %v4452 = vadd.f32 %v4436, %v4444
  %v4453 = vadd.f32 %v4437, %v4445
  %v4454 = vadd.f32 %v4438, %v4446
  %v4455 = vadd.f32 %v4439, %v4447
  %v4456 = vadd.f32 %v4440, %v4448
  %v4457 = vadd.f32 %v4441, %v4449
  %v4458 = vadd.f32 %v4442, %v4450
  %v4459 = vadd.f32 %v4443, %v4451
  %v4460 = vadd.f32 %v4452, %v4456
  %v4461 = vadd.f32 %v4453, %v4457
  %v4462 = vadd.f32 %v4454, %v4458
  %v4463 = vadd.f32 %v4455, %v4459
  %v4464 = vadd.f32 %v4460, %v4462
  %v4465 = vadd.f32 %v4461, %v4463
  %v4466 = vadd.f32 %v4464, %v4465
  %4468 = vrot.lane.b32.xlu0 %v4466, 64
  %v4469 = vpop.permute.xlu0 %4468
  %v4471 = vadd.f32 %v4466, %v4469
  %v4472 = vsub.f32 0.0, %v4471
  %v4473 = vmul.f32 %v4472, 1.442695
  %v4474 = vpow.pop %v4473
  %v4475 = vadd.f32 %v4474, 0.0
  %v4476 = vlaneseq
  %v4477 = vshrl.u32 %v4476, 7
  %v4478 = vsub.s32 1, %v4477
  %v4479 = vrot.slane %v3623, %v4478
  %v4480 = vlaneseq
  %v4481 = vshrl.u32 %v4480, 7
  %v4482 = vsub.s32 1, %v4481
  %v4483 = vrot.slane %v3625, %v4482
  %v4484 = vlaneseq
  %v4485 = vshrl.u32 %v4484, 7
  %v4486 = vsub.s32 1, %v4485
  %v4487 = vrot.slane %v3664, %v4486
  %v4488 = vlaneseq
  %v4489 = vshrl.u32 %v4488, 7
  %v4490 = vsub.s32 1, %v4489
  %v4491 = vrot.slane %v3666, %v4490
  %v4492 = vlaneseq
  %v4493 = vshrl.u32 %v4492, 7
  %v4494 = vsub.s32 1, %v4493
  %v4495 = vrot.slane %v3705, %v4494
  %v4496 = vlaneseq
  %v4497 = vshrl.u32 %v4496, 7
  %v4498 = vsub.s32 1, %v4497
  %v4499 = vrot.slane %v3707, %v4498
  %v4500 = vlaneseq
  %v4501 = vshrl.u32 %v4500, 7
  %v4502 = vsub.s32 1, %v4501
  %v4503 = vrot.slane %v3746, %v4502
  %v4504 = vlaneseq
  %v4505 = vshrl.u32 %v4504, 7
  %v4506 = vsub.s32 1, %v4505
  %v4507 = vrot.slane %v3748, %v4506
  %v4508 = vlaneseq
  %v4509 = vshrl.u32 %v4508, 7
  %v4510 = vsub.s32 1, %v4509
  %v4511 = vrot.slane %v3787, %v4510
  %v4512 = vlaneseq
  %v4513 = vshrl.u32 %v4512, 7
  %v4514 = vsub.s32 1, %v4513
  %v4515 = vrot.slane %v3789, %v4514
  %v4516 = vlaneseq
  %v4517 = vshrl.u32 %v4516, 7
  %v4518 = vsub.s32 1, %v4517
  %v4519 = vrot.slane %v3828, %v4518
  %v4520 = vlaneseq
  %v4521 = vshrl.u32 %v4520, 7
  %v4522 = vsub.s32 1, %v4521
  %v4523 = vrot.slane %v3830, %v4522
  %v4524 = vlaneseq
  %v4525 = vshrl.u32 %v4524, 7
  %v4526 = vsub.s32 1, %v4525
  %v4527 = vrot.slane %v3869, %v4526
  %v4528 = vlaneseq
  %v4529 = vshrl.u32 %v4528, 7
  %v4530 = vsub.s32 1, %v4529
  %v4531 = vrot.slane %v3871, %v4530
  %v4532 = vlaneseq
  %v4533 = vshrl.u32 %v4532, 7
  %v4534 = vsub.s32 1, %v4533
  %v4535 = vrot.slane %v3910, %v4534
  %v4536 = vlaneseq
  %v4537 = vshrl.u32 %v4536, 7
  %v4538 = vsub.s32 1, %v4537
  %v4539 = vrot.slane %v3912, %v4538
  %v4540 = vlaneseq
  %v4541 = vshrl.u32 %v4540, 7
  %v4542 = vsub.s32 1, %v4541
  %v4543 = vrot.slane %v3951, %v4542
  %v4544 = vlaneseq
  %v4545 = vshrl.u32 %v4544, 7
  %v4546 = vsub.s32 1, %v4545
  %v4547 = vrot.slane %v3953, %v4546
  %v4548 = vlaneseq
  %v4549 = vshrl.u32 %v4548, 7
  %v4550 = vsub.s32 1, %v4549
  %v4551 = vrot.slane %v3992, %v4550
  %v4552 = vlaneseq
  %v4553 = vshrl.u32 %v4552, 7
  %v4554 = vsub.s32 1, %v4553
  %v4555 = vrot.slane %v3994, %v4554
  %v4556 = vlaneseq
  %v4557 = vshrl.u32 %v4556, 7
  %v4558 = vsub.s32 1, %v4557
  %v4559 = vrot.slane %v4033, %v4558
  %v4560 = vlaneseq
  %v4561 = vshrl.u32 %v4560, 7
  %v4562 = vsub.s32 1, %v4561
  %v4563 = vrot.slane %v4035, %v4562
  %v4564 = vlaneseq
  %v4565 = vshrl.u32 %v4564, 7
  %v4566 = vsub.s32 1, %v4565
  %v4567 = vrot.slane %v4074, %v4566
  %v4568 = vlaneseq
  %v4569 = vshrl.u32 %v4568, 7
  %v4570 = vsub.s32 1, %v4569
  %v4571 = vrot.slane %v4076, %v4570
  %v4572 = vlaneseq
  %v4573 = vshrl.u32 %v4572, 7
  %v4574 = vsub.s32 1, %v4573
  %v4575 = vrot.slane %v4115, %v4574
  %v4576 = vlaneseq
  %v4577 = vshrl.u32 %v4576, 7
  %v4578 = vsub.s32 1, %v4577
  %v4579 = vrot.slane %v4117, %v4578
  %v4580 = vlaneseq
  %v4581 = vshrl.u32 %v4580, 7
  %v4582 = vsub.s32 1, %v4581
  %v4583 = vrot.slane %v4156, %v4582
  %v4584 = vlaneseq
  %v4585 = vshrl.u32 %v4584, 7
  %v4586 = vsub.s32 1, %v4585
  %v4587 = vrot.slane %v4158, %v4586
  %v4588 = vlaneseq
  %v4589 = vshrl.u32 %v4588, 7
  %v4590 = vsub.s32 1, %v4589
  %v4591 = vrot.slane %v4197, %v4590
  %v4592 = vlaneseq
  %v4593 = vshrl.u32 %v4592, 7
  %v4594 = vsub.s32 1, %v4593
  %v4595 = vrot.slane %v4199, %v4594
  %v4596 = vlaneseq
  %v4597 = vshrl.u32 %v4596, 7
  %v4598 = vsub.s32 1, %v4597
  %v4599 = vrot.slane %v4238, %v4598
  %v4600 = vlaneseq
  %v4601 = vshrl.u32 %v4600, 7
  %v4602 = vsub.s32 1, %v4601
  %v4603 = vrot.slane %v4240, %v4602
  %v4604 = vsub.f32 %v3623, %v4479
  %v4605 = vsub.f32 %v3625, %v4483
  %v4606 = vsub.f32 %v3664, %v4487
  %v4607 = vsub.f32 %v3666, %v4491
  %v4608 = vsub.f32 %v3705, %v4495
  %v4609 = vsub.f32 %v3707, %v4499
  %v4610 = vsub.f32 %v3746, %v4503
  %v4611 = vsub.f32 %v3748, %v4507
  %v4612 = vsub.f32 %v3787, %v4511
  %v4613 = vsub.f32 %v3789, %v4515
  %v4614 = vsub.f32 %v3828, %v4519
  %v4615 = vsub.f32 %v3830, %v4523
  %v4616 = vsub.f32 %v3869, %v4527
  %v4617 = vsub.f32 %v3871, %v4531
  %v4618 = vsub.f32 %v3910, %v4535
  %v4619 = vsub.f32 %v3912, %v4539
  %v4620 = vsub.f32 %v3951, %v4543
  %v4621 = vsub.f32 %v3953, %v4547
  %v4622 = vsub.f32 %v3992, %v4551
  %v4623 = vsub.f32 %v3994, %v4555
  %v4624 = vsub.f32 %v4033, %v4559
  %v4625 = vsub.f32 %v4035, %v4563
  %v4626 = vsub.f32 %v4074, %v4567
  %v4627 = vsub.f32 %v4076, %v4571
  %v4628 = vsub.f32 %v4115, %v4575
  %v4629 = vsub.f32 %v4117, %v4579
  %v4630 = vsub.f32 %v4156, %v4583
  %v4631 = vsub.f32 %v4158, %v4587
  %v4632 = vsub.f32 %v4197, %v4591
  %v4633 = vsub.f32 %v4199, %v4595
  %v4634 = vsub.f32 %v4238, %v4599
  %v4635 = vsub.f32 %v4240, %v4603
  %v4636 = vand.u32 2147483647, %v4604
  %v4637 = vand.u32 2147483647, %v4605
  %v4638 = vand.u32 2147483647, %v4606
  %v4639 = vand.u32 2147483647, %v4607
  %v4640 = vand.u32 2147483647, %v4608
  %v4641 = vand.u32 2147483647, %v4609
  %v4642 = vand.u32 2147483647, %v4610
  %v4643 = vand.u32 2147483647, %v4611
  %v4644 = vand.u32 2147483647, %v4612
  %v4645 = vand.u32 2147483647, %v4613
  %v4646 = vand.u32 2147483647, %v4614
  %v4647 = vand.u32 2147483647, %v4615
  %v4648 = vand.u32 2147483647, %v4616
  %v4649 = vand.u32 2147483647, %v4617
  %v4650 = vand.u32 2147483647, %v4618
  %v4651 = vand.u32 2147483647, %v4619
  %v4652 = vand.u32 2147483647, %v4620
  %v4653 = vand.u32 2147483647, %v4621
  %v4654 = vand.u32 2147483647, %v4622
  %v4655 = vand.u32 2147483647, %v4623
  %v4656 = vand.u32 2147483647, %v4624
  %v4657 = vand.u32 2147483647, %v4625
  %v4658 = vand.u32 2147483647, %v4626
  %v4659 = vand.u32 2147483647, %v4627
  %v4660 = vand.u32 2147483647, %v4628
  %v4661 = vand.u32 2147483647, %v4629
  %v4662 = vand.u32 2147483647, %v4630
  %v4663 = vand.u32 2147483647, %v4631
  %v4664 = vand.u32 2147483647, %v4632
  %v4665 = vand.u32 2147483647, %v4633
  %v4666 = vand.u32 2147483647, %v4634
  %v4667 = vand.u32 2147483647, %v4635
  %v4668 = vadd.f32 %v4636, %v4652
  %v4669 = vadd.f32 %v4637, %v4653
  %v4670 = vadd.f32 %v4638, %v4654
  %v4671 = vadd.f32 %v4639, %v4655
  %v4672 = vadd.f32 %v4640, %v4656
  %v4673 = vadd.f32 %v4641, %v4657
  %v4674 = vadd.f32 %v4642, %v4658
  %v4675 = vadd.f32 %v4643, %v4659
  %v4676 = vadd.f32 %v4644, %v4660
  %v4677 = vadd.f32 %v4645, %v4661
  %v4678 = vadd.f32 %v4646, %v4662
  %v4679 = vadd.f32 %v4647, %v4663
  %v4680 = vadd.f32 %v4648, %v4664
  %v4681 = vadd.f32 %v4649, %v4665
  %v4682 = vadd.f32 %v4650, %v4666
  %v4683 = vadd.f32 %v4651, %v4667
  %v4684 = vadd.f32 %v4668, %v4676
  %v4685 = vadd.f32 %v4669, %v4677
  %v4686 = vadd.f32 %v4670, %v4678
  %v4687 = vadd.f32 %v4671, %v4679
  %v4688 = vadd.f32 %v4672, %v4680
  %v4689 = vadd.f32 %v4673, %v4681
  %v4690 = vadd.f32 %v4674, %v4682
  %v4691 = vadd.f32 %v4675, %v4683
  %v4692 = vadd.f32 %v4684, %v4688
  %v4693 = vadd.f32 %v4685, %v4689
  %v4694 = vadd.f32 %v4686, %v4690
  %v4695 = vadd.f32 %v4687, %v4691
  %v4696 = vadd.f32 %v4692, %v4694
  %v4697 = vadd.f32 %v4693, %v4695
  %v4698 = vadd.f32 %v4696, %v4697
  %4700 = vrot.lane.b32.xlu0 %v4698, 64
  %v4701 = vpop.permute.xlu0 %4700
  %v4703 = vadd.f32 %v4698, %v4701
  %v4704 = vsub.f32 0.0, %v4703
  %v4705 = vmul.f32 %v4704, 1.442695
  %v4706 = vpow.pop %v4705
  %v4707 = vadd.f32 %v4475, %v4706
  %v4708 = vsub.f32 %v4707, 1.0
  %v4709 = vld [vmem:[%s2 + $0x1] sm:$0x1]
  %v4710 = vld [vmem:[%s2 + $0x3] sm:$0x1]
  %v4711 = vlaneseq
  %v4712 = vshrl.u32 %v4711, 7
  %v4713 = vsub.s32 0, %v4712
  %v4714 = vrot.slane %v4709, %v4713
  %4716 = vrot.lane.b32.xlu0 %v4714, 64
  %v4717 = vpop.permute.xlu0 %4716
  %v4719 = vmul.f32 %v3448, %v4717
  %4721 = vrot.lane.b32.xlu0 %v4719, 64
  %v4722 = vpop.permute.xlu0 %4721
  %vm4724 = vcmask 517120
  %v4725 = vsel %vm4724, %v4722, 0.0
  %4726 = vadd.xlane.f32.xlu0 %v4725
  %v4727 = vpop.xlane.xlu0 %4726
  %v4728 = vmul.f32 %v4708, %v4717
  %v4729 = vsel %vm4724, %v4728, 0.0
  %4730 = vadd.xlane.f32.xlu0 %v4729
  %v4731 = vpop.xlane.xlu0 %4730
  %v4732 = vadd.f32 %v4727, %v4731
  %v4733 = vlaneseq
  %v4734 = vshrl.u32 %v4733, 7
  %v4735 = vsub.s32 0, %v4734
  %v4736 = vrot.slane %v4710, %v4735
  %v4737 = vadd.f32 %v4732, %v4736
  %v4738 = vxor.u32 %v4737, 2147483648
  %v4739 = vmul.f32 %v4738, 1.442695
  %v4740 = vpow.pop %v4739
  %v4741 = vadd.f32 %v4740, 1.0
  %v4742 = vrcp.pop %v4741
  %v4743 = vmul.f32 1.0, %v4742
  %vm4744 = vcmask 1024
  %4745 = vst.msk [vmem:[%s4] sm:$0x3] %vm4744, %v4743
  // Predicated region
  $region51: #{discriminator_forward.1} parent=0 // pred_check
    _
  $region52: #{discriminator_forward.1} parent=0 // pred_check_branch
    %4747 = sbr.rel (0) target = $region54
  $region53: #{discriminator_forward.1} parent=0 // pred_region
    _
  $region54: #{discriminator_forward.1} parent=0 // pred_fallthru
    _
  // Predicated region
  $region55: #{discriminator_forward.1} parent=0 // pred_check
    _
  $region56: #{discriminator_forward.1} parent=0 // pred_check_branch
    %4749 = sbr.rel (0) target = $region58
  $region57: #{discriminator_forward.1} parent=0 // pred_region
    _
  $region58: #{discriminator_forward.1} parent=0 // pred_fallthru
    _
  %4750 = vsyncmov [#allocation3]
  %s4751 = vpop.sfrf %4750
  %p4752 = scmp.eq.s32.totalorder %s4751, 0
  %p4753 = pneg %p4752
  %4755 = shalt.err (%p4753)

</llo_original>
